<compile_context>
chip_gen: v6e
topology: v6e:2x2x1
jax: 0.10.0
libtpu: 0.0.40
codegen_flags: <defaults>
</compile_context>

<pallas_src>
import functools
import math

import jax
import jax.numpy as jnp
from jax.experimental import pallas as pl
from jax.experimental.pallas import tpu as pltpu

# ---- ModelConfig constants ----
MAX_SIZE_VALUE = 5100
HIDDEN = 128
NUM_HEADS = 4
HEAD_DIM = HIDDEN // NUM_HEADS
NUM_LAYERS = 2
NUM_LABELS = 2
NUM_TYPES = 2
FF = 4 * HIDDEN
LN_EPS = 1e-5
ATTN_SCALE = 1.0 / math.sqrt(HEAD_DIM)


def _cdiv(a, b):
    return -(-a // b)


def _layer_norm(x, gamma, beta):
    # x: (M, H) f32, gamma/beta: (1, H) f32 (biased variance, like torch)
    mu = jnp.mean(x, axis=-1, keepdims=True)
    var = jnp.mean((x - mu) ** 2, axis=-1, keepdims=True)
    return (x - mu) * jax.lax.rsqrt(var + LN_EPS) * gamma + beta


def encoder_kernel(x_ref, seg_ref,
                   wqkv_ref, bqkv_ref, wo_ref, bo_ref,
                   ln1_w_ref, ln1_b_ref,
                   w1_ref, b1_ref, w2_ref, b2_ref,
                   ln2_w_ref, ln2_b_ref,
                   dense_w_ref, dense_b_ref,
                   out_ref, *, batch):
    # x_ref: (tile_l*B, H) f32, rows flattened as l*B + b.
    # out_ref: (NUM_LABELS, tile_l*B) f32 (lane-dense, transposed on the host).
    M, H = x_ref.shape
    B = batch
    T = M // B
    x2 = x_ref[...].astype(jnp.float32)          # f32 residual stream, kept 2-D
    seg = seg_ref[...]                           # (H, H) block-diagonal head mask, f32

    for layer in range(NUM_LAYERS):
        # ---- QKV projection (bf16 MXU operands, f32 accumulation) ----
        qkv = jnp.dot(x2.astype(jnp.bfloat16), wqkv_ref[layer],
                      preferred_element_type=jnp.float32) + bqkv_ref[layer]
        q = qkv[:, 0 * H:1 * H].reshape(T, B, H)
        k = qkv[:, 1 * H:2 * H].reshape(T, B, H)
        v = qkv[:, 2 * H:3 * H].reshape(T, B, H)

        # ---- Multi-head attention over the *batch* axis, batched over T.
        # One lane-dense 128x128 block-diagonal matmul replicates each head's
        # score across that head's 32 lanes, so softmax and the P@V reduction
        # run directly on (T,B,B,H) with no (.,.,.,4)-minor tensors.
        prod = q[:, :, None, :] * k[:, None, :, :]                    # (T,B,B,H) f32
        # TODO(synk): this reshape can relayout when B is not a multiple of 8;
        # kept because Mosaic dot_general wants 2-D operands here.
        scores = jnp.dot(prod.reshape(-1, H), seg,
                         preferred_element_type=jnp.float32)
        scores = scores.reshape(T, B, B, H) * ATTN_SCALE
        scores = scores - jnp.max(scores, axis=2, keepdims=True)
        p = jnp.exp(scores)
        p = p * pl.reciprocal(jnp.sum(p, axis=2, keepdims=True), approx=True)
        # TODO(synk): for B >~ 16 this O(T*B^2*H) VPU path should switch to
        # per-head MXU dot_generals batched over (T, heads); fine for small B.
        attn = jnp.sum(p * v[:, None, :, :], axis=2)                  # (T, B, H)

        attn2 = jnp.dot(attn.reshape(M, H).astype(jnp.bfloat16), wo_ref[layer],
                        preferred_element_type=jnp.float32) + bo_ref[layer]

        # TODO(synk): dropout is stochastic in train mode; identity here (eval).
        x2 = _layer_norm(x2 + attn2, ln1_w_ref[layer], ln1_b_ref[layer])

        # ---- FFN 128 -> 512 -> relu -> 128 ----
        h1 = jnp.dot(x2.astype(jnp.bfloat16), w1_ref[layer],
                     preferred_element_type=jnp.float32) + b1_ref[layer]
        h1 = jnp.maximum(h1, 0.0)
        h2 = jnp.dot(h1.astype(jnp.bfloat16), w2_ref[layer],
                     preferred_element_type=jnp.float32) + b2_ref[layer]
        x2 = _layer_norm(x2 + h2, ln2_w_ref[layer], ln2_b_ref[layer])

    # ---- Classifier head, written lane-dense as (NUM_LABELS, M).
    # Contract both operands on H so the output transpose is fused into the
    # matmul (equivalent to dense_w @ x2.T); dropout = identity.
    logits_t = jax.lax.dot_general(
        dense_w_ref[...], x2.astype(jnp.bfloat16),
        dimension_numbers=(((1,), (1,)), ((), ())),
        preferred_element_type=jnp.float32)
    out_ref[...] = logits_t + dense_b_ref[...]


def positional_encoding(length, hidden):
    position = jnp.arange(length, dtype=jnp.float32)[:, None]
    div_term = jnp.exp(jnp.arange(0, hidden, 2, dtype=jnp.float32)
                       * -(math.log(10000.0) / hidden))
    pe = jnp.zeros((length, hidden), jnp.float32)
    pe = pe.at[:, 0::2].set(jnp.sin(position * div_term))
    pe = pe.at[:, 1::2].set(jnp.cos(position * div_term))
    return pe


def init_params(key):
    # PyTorch-layout parameters (Linear weights stored (out, in)).
    keys = jax.random.split(key, 8)
    s = 0.02

    def nrm(k, shape):
        return (s * jax.random.normal(k, shape)).astype(jnp.float32)

    return {
        'emb_left': nrm(keys[0], (MAX_SIZE_VALUE + 1, HIDDEN)),
        'emb_size': nrm(keys[1], (MAX_SIZE_VALUE + 1, HIDDEN)),
        'emb_type': nrm(keys[2], (NUM_TYPES, HIDDEN)),
        'wqkv': nrm(keys[3], (NUM_LAYERS, 3 * HIDDEN, HIDDEN)),
        'bqkv': jnp.zeros((NUM_LAYERS, 3 * HIDDEN), jnp.float32),
        'wo': nrm(keys[4], (NUM_LAYERS, HIDDEN, HIDDEN)),
        'bo': jnp.zeros((NUM_LAYERS, HIDDEN), jnp.float32),
        'ln1_w': jnp.ones((NUM_LAYERS, HIDDEN), jnp.float32),
        'ln1_b': jnp.zeros((NUM_LAYERS, HIDDEN), jnp.float32),
        'w1': nrm(keys[5], (NUM_LAYERS, FF, HIDDEN)),
        'b1': jnp.zeros((NUM_LAYERS, FF), jnp.float32),
        'w2': nrm(keys[6], (NUM_LAYERS, HIDDEN, FF)),
        'b2': jnp.zeros((NUM_LAYERS, HIDDEN), jnp.float32),
        'ln2_w': jnp.ones((NUM_LAYERS, HIDDEN), jnp.float32),
        'ln2_b': jnp.zeros((NUM_LAYERS, HIDDEN), jnp.float32),
        'dense_w': nrm(keys[7], (NUM_LABELS, HIDDEN)),
        'dense_b': jnp.zeros((1, NUM_LABELS), jnp.float32),
    }


def prepare_params(params):
    """Host-side prep: pre-transpose matmul weights (no in-kernel .T), cast MXU
    operands to bf16, precompute the block-diagonal head-segment matrix, and
    give biases / LN params a broadcast row.  The head/score matmul stays f32
    to match the reference numerics for softmax inputs."""
    def t(w):   # (layers, out, in) -> (layers, in, out), bf16
        return jnp.swapaxes(w, -1, -2).astype(jnp.bfloat16)

    def b(x):   # (layers, d) -> (layers, 1, d), f32
        return x[:, None, :].astype(jnp.float32)

    lane = jnp.arange(HIDDEN, dtype=jnp.int32)
    seg = (lane[:, None] // HEAD_DIM == lane[None, :] // HEAD_DIM)
    seg = seg.astype(jnp.float32)                                 # (H, H)

    return {
        'emb_left': params['emb_left'],
        'emb_size': params['emb_size'],
        'emb_type': params['emb_type'],
        'seg': seg,
        'wqkv': t(params['wqkv']),                                # (layers, H, 3H)
        'bqkv': b(params['bqkv']),
        'wo': t(params['wo']),                                    # (layers, H, H)
        'bo': b(params['bo']),
        'ln1_w': b(params['ln1_w']),
        'ln1_b': b(params['ln1_b']),
        'w1': t(params['w1']),                                    # (layers, H, FF)
        'b1': b(params['b1']),
        'w2': t(params['w2']),                                    # (layers, FF, H)
        'b2': b(params['b2']),
        'ln2_w': b(params['ln2_w']),
        'ln2_b': b(params['ln2_b']),
        'dense_w': params['dense_w'].astype(jnp.bfloat16),        # (NUM_LABELS, H)
        'dense_b': params['dense_b'].reshape(NUM_LABELS, 1).astype(jnp.float32),
    }


def _vmem_limit_bytes():
    # Per-generation VMEM budget: ~3/4 of physical, capped; 48 MiB fallback is
    # safe everywhere (v7x has only 64 MiB VMEM per TensorCore).
    cap = None
    try:
        info = pltpu.get_tpu_info()
        for name in ("vmem_capacity_bytes", "vmem_bytes", "vmem_size_bytes"):
            cap = getattr(info, name, None)
            if cap:
                break
    except Exception:
        cap = None
    if not cap:
        return 48 << 20
    return int(min(int(cap) * 3 // 4, 96 << 20))


def _choose_tile_l(L, B, vmem_limit):
    """Rows per grid step, budgeted against the live f32 attention temporaries
    (~3 x (T,B,B,H), sublane-padded when B<8) plus qkv/h1/residual buffers."""
    padB = _cdiv(B, 8) * 8
    bytes_per_row = (3 * padB * HIDDEN + 16 * HIDDEN) * 4
    budget = min(max(vmem_limit // 4, 4 << 20), 24 << 20)
    m_cap = max(B, budget // bytes_per_row)          # row cap from VMEM budget
    m_target = min(2048, m_cap)

    if L * B <= min(m_target, 512):
        return L                                      # tiny problem: one grid step

    unit = 128 // math.gcd(B, 128)   # tile_l multiple => lane dim multiple of 128
    n_tiles = max(2, _cdiv(L * B, m_target))          # >=2 steps so v7x can split L
    tile_l = _cdiv(_cdiv(L, n_tiles), unit) * unit
    cap_l = max(unit, (max(m_cap // B, 1) // unit) * unit)
    return max(unit, min(tile_l, cap_l))


def _const_spec(arr):
    # Full-array block, resident across the L grid (constant block index).
    nd = arr.ndim
    return pl.BlockSpec(arr.shape, lambda i, _nd=nd: (0,) * _nd)


def sequence_labeling_forward(prepared, inputs_left_space, inputs_size, inputs_type):
    # Glue: embedding gathers + positional encoding in plain JAX.
    emb = (prepared['emb_left'][inputs_left_space]
           + prepared['emb_size'][inputs_size]
           + prepared['emb_type'][inputs_type])                   # (B, L, H)
    Bsz, L, H = emb.shape
    pe = positional_encoding(L, H)                                # (L, H)
    x = (emb + pe[None, :, :]).astype(jnp.float32)

    # Kernel layout: rows flattened as l*B + b (attention mixes over B per
    # position L, reproducing the PyTorch batch_first=False behaviour).
    x_t = jnp.transpose(x, (1, 0, 2))                             # (L, B, H)

    vmem_limit = _vmem_limit_bytes()
    tile_l = _choose_tile_l(L, Bsz, vmem_limit)
    num_tiles = _cdiv(L, tile_l)
    L_pad = num_tiles * tile_l
    if L_pad != L:
        # Padded L positions are fully independent (attention is over B only),
        # so zero-padding is exact; padded rows are sliced off below.
        x_t = jnp.pad(x_t, ((0, L_pad - L), (0, 0), (0, 0)))
    x_flat = x_t.reshape(L_pad * Bsz, H)                          # (L_pad*B, H)

    weight_args = (prepared['seg'],
                   prepared['wqkv'], prepared['bqkv'], prepared['wo'], prepared['bo'],
                   prepared['ln1_w'], prepared['ln1_b'],
                   prepared['w1'], prepared['b1'], prepared['w2'], prepared['b2'],
                   prepared['ln2_w'], prepared['ln2_b'],
                   prepared['dense_w'], prepared['dense_b'])

    in_specs = [pl.BlockSpec((tile_l * Bsz, H), lambda i: (i, 0))]
    in_specs += [_const_spec(w) for w in weight_args]             # len == #inputs

    out = pl.pallas_call(
        functools.partial(encoder_kernel, batch=Bsz),
        out_shape=jax.ShapeDtypeStruct((NUM_LABELS, L_pad * Bsz), jnp.float32),
        grid=(num_tiles,),
        in_specs=in_specs,
        out_specs=pl.BlockSpec((NUM_LABELS, tile_l * Bsz), lambda i: (0, i)),
        compiler_params=pltpu.CompilerParams(
            dimension_semantics=("parallel",),
            vmem_limit_bytes=vmem_limit),
    )(x_flat, *weight_args)

    out = out[:, :L * Bsz].reshape(NUM_LABELS, L, Bsz)            # drop L padding
    return jnp.transpose(out, (2, 1, 0))                          # (B, L, NUM_LABELS)


if __name__ == "__main__":
    key = jax.random.PRNGKey(0)
    pkey, k1, k2, k3 = jax.random.split(key, 4)
    params = init_params(pkey)
    prepared = prepare_params(params)

    B, L = 4, 8
    inputs_left_space = jax.random.randint(k1, (B, L), 0, MAX_SIZE_VALUE + 1,
                                           dtype=jnp.int32)
    inputs_size = jax.random.randint(k2, (B, L), 0, MAX_SIZE_VALUE + 1,
                                     dtype=jnp.int32)
    inputs_type = jax.random.randint(k3, (B, L), 0, NUM_TYPES, dtype=jnp.int32)

    fwd = jax.jit(sequence_labeling_forward)
    out = fwd(prepared, inputs_left_space, inputs_size, inputs_type)
    out = jax.block_until_ready(out)

    assert out.shape == (B, L, NUM_LABELS), out.shape
    assert bool(jnp.all(jnp.isfinite(out)))
    print("KERNEL_OK")
</pallas_src>

<mosaic_0001>
module attributes {stable_mosaic.version = 11 : i64} {
  func.func @encoder_kernel(%arg0: i32, %arg1: memref<32x128xf32, #tpu.memory_space<vmem>>, %arg2: memref<128x128xf32, #tpu.memory_space<vmem>>, %arg3: memref<2x128x384xbf16, #tpu.memory_space<vmem>>, %arg4: memref<2x1x384xf32, #tpu.memory_space<vmem>>, %arg5: memref<2x128x128xbf16, #tpu.memory_space<vmem>>, %arg6: memref<2x1x128xf32, #tpu.memory_space<vmem>>, %arg7: memref<2x1x128xf32, #tpu.memory_space<vmem>>, %arg8: memref<2x1x128xf32, #tpu.memory_space<vmem>>, %arg9: memref<2x128x512xbf16, #tpu.memory_space<vmem>>, %arg10: memref<2x1x512xf32, #tpu.memory_space<vmem>>, %arg11: memref<2x512x128xbf16, #tpu.memory_space<vmem>>, %arg12: memref<2x1x128xf32, #tpu.memory_space<vmem>>, %arg13: memref<2x1x128xf32, #tpu.memory_space<vmem>>, %arg14: memref<2x1x128xf32, #tpu.memory_space<vmem>>, %arg15: memref<2x128xbf16, #tpu.memory_space<vmem>>, %arg16: memref<2x1xf32, #tpu.memory_space<vmem>>, %arg17: memref<2x32xf32, #tpu.memory_space<vmem>>) attributes {dimension_semantics = [#tpu.dimension_semantics<parallel>], iteration_bounds = array<i64: 1>, scalar_prefetch = 0 : i64, scratch_operands = 0 : i64, tpu.core_type = #tpu.core_type<tc>, window_params = [{transform_indices = @transform_0, window_bounds = array<i64: 32, 128>}, {pipeline_mode = #tpu.pipeline_mode<synchronous>, transform_indices = @transform_1, window_bounds = array<i64: 128, 128>}, {pipeline_mode = #tpu.pipeline_mode<synchronous>, transform_indices = @transform_2, window_bounds = array<i64: 2, 128, 384>}, {pipeline_mode = #tpu.pipeline_mode<synchronous>, transform_indices = @transform_3, window_bounds = array<i64: 2, 1, 384>}, {pipeline_mode = #tpu.pipeline_mode<synchronous>, transform_indices = @transform_4, window_bounds = array<i64: 2, 128, 128>}, {pipeline_mode = #tpu.pipeline_mode<synchronous>, transform_indices = @transform_5, window_bounds = array<i64: 2, 1, 128>}, {pipeline_mode = #tpu.pipeline_mode<synchronous>, transform_indices = @transform_6, window_bounds = array<i64: 2, 1, 128>}, {pipeline_mode = #tpu.pipeline_mode<synchronous>, transform_indices = @transform_7, window_bounds = array<i64: 2, 1, 128>}, {pipeline_mode = #tpu.pipeline_mode<synchronous>, transform_indices = @transform_8, window_bounds = array<i64: 2, 128, 512>}, {pipeline_mode = #tpu.pipeline_mode<synchronous>, transform_indices = @transform_9, window_bounds = array<i64: 2, 1, 512>}, {pipeline_mode = #tpu.pipeline_mode<synchronous>, transform_indices = @transform_10, window_bounds = array<i64: 2, 512, 128>}, {pipeline_mode = #tpu.pipeline_mode<synchronous>, transform_indices = @transform_11, window_bounds = array<i64: 2, 1, 128>}, {pipeline_mode = #tpu.pipeline_mode<synchronous>, transform_indices = @transform_12, window_bounds = array<i64: 2, 1, 128>}, {pipeline_mode = #tpu.pipeline_mode<synchronous>, transform_indices = @transform_13, window_bounds = array<i64: 2, 1, 128>}, {pipeline_mode = #tpu.pipeline_mode<synchronous>, transform_indices = @transform_14, window_bounds = array<i64: 2, 128>}, {pipeline_mode = #tpu.pipeline_mode<synchronous>, transform_indices = @transform_15, window_bounds = array<i64: 2, 1>}, {transform_indices = @transform_16, window_bounds = array<i64: 2, 32>}]} {
    %c0 = arith.constant 0 : index
    %c0_0 = arith.constant 0 : index
    %0 = vector.load %arg1[%c0, %c0_0] : memref<32x128xf32, #tpu.memory_space<vmem>>, vector<32x128xf32>
    %c0_1 = arith.constant 0 : index
    %c0_2 = arith.constant 0 : index
    %1 = vector.load %arg2[%c0_1, %c0_2] : memref<128x128xf32, #tpu.memory_space<vmem>>, vector<128x128xf32>
    %2 = arith.truncf %0 : vector<32x128xf32> to vector<32x128xbf16>
    %c0_3 = arith.constant 0 : index
    %c0_4 = arith.constant 0 : index
    %c0_5 = arith.constant 0 : index
    %3 = vector.load %arg3[%c0_3, %c0_4, %c0_5] : memref<2x128x384xbf16, #tpu.memory_space<vmem>>, vector<1x128x384xbf16>
    %4 = vector.shape_cast %3 : vector<1x128x384xbf16> to vector<128x384xbf16>
    %cst = arith.constant dense<0.000000e+00> : vector<32x384xf32>
    %5 = tpu.matmul %2, %4, %cst {dimension_numbers = #tpu.dot_dimension_numbers<[1], [0], [0], [1], [0, 0, 1, 1], [], []>} : vector<32x128xbf16>, vector<128x384xbf16>, vector<32x384xf32> -> vector<32x384xf32>
    %c0_6 = arith.constant 0 : index
    %c0_7 = arith.constant 0 : index
    %c0_8 = arith.constant 0 : index
    %6 = vector.load %arg4[%c0_6, %c0_7, %c0_8] : memref<2x1x384xf32, #tpu.memory_space<vmem>>, vector<1x1x384xf32>
    %7 = vector.shape_cast %6 : vector<1x1x384xf32> to vector<1x384xf32>
    %8 = vector.broadcast %7 : vector<1x384xf32> to vector<32x384xf32>
    %9 = arith.addf %5, %8 : vector<32x384xf32>
    %10 = vector.extract_strided_slice %9 {offsets = [0, 0], sizes = [32, 128], strides = [1, 1]} : vector<32x384xf32> to vector<32x128xf32>
    %11 = vector.shape_cast %10 : vector<32x128xf32> to vector<8x4x128xf32>
    %12 = vector.extract_strided_slice %9 {offsets = [0, 128], sizes = [32, 128], strides = [1, 1]} : vector<32x384xf32> to vector<32x128xf32>
    %13 = vector.shape_cast %12 : vector<32x128xf32> to vector<8x4x128xf32>
    %14 = vector.extract_strided_slice %9 {offsets = [0, 256], sizes = [32, 128], strides = [1, 1]} : vector<32x384xf32> to vector<32x128xf32>
    %15 = vector.shape_cast %14 : vector<32x128xf32> to vector<8x4x128xf32>
    %16 = vector.shape_cast %11 : vector<8x4x128xf32> to vector<8x4x1x128xf32>
    %17 = vector.shape_cast %13 : vector<8x4x128xf32> to vector<8x1x4x128xf32>
    %18 = vector.broadcast %16 : vector<8x4x1x128xf32> to vector<8x4x4x128xf32>
    %19 = vector.broadcast %17 : vector<8x1x4x128xf32> to vector<8x4x4x128xf32>
    %20 = arith.mulf %18, %19 : vector<8x4x4x128xf32>
    %21 = vector.shape_cast %20 : vector<8x4x4x128xf32> to vector<128x128xf32>
    %cst_9 = arith.constant dense<0.000000e+00> : vector<128x128xf32>
    %22 = tpu.matmul %21, %1, %cst_9 {dimension_numbers = #tpu.dot_dimension_numbers<[1], [0], [0], [1], [0, 0, 1, 1], [], []>} : vector<128x128xf32>, vector<128x128xf32>, vector<128x128xf32> -> vector<128x128xf32>
    %23 = vector.shape_cast %22 : vector<128x128xf32> to vector<8x4x4x128xf32>
    %cst_10 = arith.constant 0.176776692 : f32
    %24 = vector.broadcast %cst_10 : f32 to vector<8x4x4x128xf32>
    %25 = arith.mulf %23, %24 : vector<8x4x4x128xf32>
    %cst_11 = arith.constant dense<0xFF800000> : vector<8x4x128xf32>
    %26 = vector.multi_reduction <maximumf>, %25, %cst_11 [2] : vector<8x4x4x128xf32> to vector<8x4x128xf32>
    %27 = vector.shape_cast %26 : vector<8x4x128xf32> to vector<8x4x1x128xf32>
    %28 = vector.broadcast %27 : vector<8x4x1x128xf32> to vector<8x4x4x128xf32>
    %29 = arith.subf %25, %28 : vector<8x4x4x128xf32>
    %30 = math.exp %29 : vector<8x4x4x128xf32>
    %cst_12 = arith.constant dense<0.000000e+00> : vector<8x4x128xf32>
    %31 = vector.multi_reduction <add>, %30, %cst_12 [2] : vector<8x4x4x128xf32> to vector<8x4x128xf32>
    %32 = vector.shape_cast %31 : vector<8x4x128xf32> to vector<8x4x1x128xf32>
    %33 = tpu.reciprocal %32 {approx = true} : vector<8x4x1x128xf32> -> vector<8x4x1x128xf32>
    %34 = vector.broadcast %33 : vector<8x4x1x128xf32> to vector<8x4x4x128xf32>
    %35 = arith.mulf %30, %34 : vector<8x4x4x128xf32>
    %36 = vector.shape_cast %15 : vector<8x4x128xf32> to vector<8x1x4x128xf32>
    %37 = vector.broadcast %36 : vector<8x1x4x128xf32> to vector<8x4x4x128xf32>
    %38 = arith.mulf %35, %37 : vector<8x4x4x128xf32>
    %cst_13 = arith.constant dense<0.000000e+00> : vector<8x4x128xf32>
    %39 = vector.multi_reduction <add>, %38, %cst_13 [2] : vector<8x4x4x128xf32> to vector<8x4x128xf32>
    %40 = vector.shape_cast %39 : vector<8x4x128xf32> to vector<32x128xf32>
    %41 = arith.truncf %40 : vector<32x128xf32> to vector<32x128xbf16>
    %c0_14 = arith.constant 0 : index
    %c0_15 = arith.constant 0 : index
    %c0_16 = arith.constant 0 : index
    %42 = vector.load %arg5[%c0_14, %c0_15, %c0_16] : memref<2x128x128xbf16, #tpu.memory_space<vmem>>, vector<1x128x128xbf16>
    %43 = vector.shape_cast %42 : vector<1x128x128xbf16> to vector<128x128xbf16>
    %cst_17 = arith.constant dense<0.000000e+00> : vector<32x128xf32>
    %44 = tpu.matmul %41, %43, %cst_17 {dimension_numbers = #tpu.dot_dimension_numbers<[1], [0], [0], [1], [0, 0, 1, 1], [], []>} : vector<32x128xbf16>, vector<128x128xbf16>, vector<32x128xf32> -> vector<32x128xf32>
    %c0_18 = arith.constant 0 : index
    %c0_19 = arith.constant 0 : index
    %c0_20 = arith.constant 0 : index
    %45 = vector.load %arg6[%c0_18, %c0_19, %c0_20] : memref<2x1x128xf32, #tpu.memory_space<vmem>>, vector<1x1x128xf32>
    %46 = vector.shape_cast %45 : vector<1x1x128xf32> to vector<1x128xf32>
    %47 = vector.broadcast %46 : vector<1x128xf32> to vector<32x128xf32>
    %48 = arith.addf %44, %47 : vector<32x128xf32>
    %49 = arith.addf %0, %48 : vector<32x128xf32>
    %c0_21 = arith.constant 0 : index
    %c0_22 = arith.constant 0 : index
    %c0_23 = arith.constant 0 : index
    %50 = vector.load %arg7[%c0_21, %c0_22, %c0_23] : memref<2x1x128xf32, #tpu.memory_space<vmem>>, vector<1x1x128xf32>
    %51 = vector.shape_cast %50 : vector<1x1x128xf32> to vector<1x128xf32>
    %c0_24 = arith.constant 0 : index
    %c0_25 = arith.constant 0 : index
    %c0_26 = arith.constant 0 : index
    %52 = vector.load %arg8[%c0_24, %c0_25, %c0_26] : memref<2x1x128xf32, #tpu.memory_space<vmem>>, vector<1x1x128xf32>
    %53 = vector.shape_cast %52 : vector<1x1x128xf32> to vector<1x128xf32>
    %cst_27 = arith.constant dense<0.000000e+00> : vector<32xf32>
    %54 = vector.multi_reduction <add>, %49, %cst_27 [1] : vector<32x128xf32> to vector<32xf32>
    %55 = vector.shape_cast %54 : vector<32xf32> to vector<32x1xf32>
    %cst_28 = arith.constant 1.280000e+02 : f32
    %56 = vector.broadcast %cst_28 : f32 to vector<32x1xf32>
    %57 = arith.divf %55, %56 : vector<32x1xf32>
    %58 = vector.broadcast %57 : vector<32x1xf32> to vector<32x128xf32>
    %59 = arith.subf %49, %58 : vector<32x128xf32>
    %60 = arith.mulf %59, %59 : vector<32x128xf32>
    %cst_29 = arith.constant dense<0.000000e+00> : vector<32xf32>
    %61 = vector.multi_reduction <add>, %60, %cst_29 [1] : vector<32x128xf32> to vector<32xf32>
    %62 = vector.shape_cast %61 : vector<32xf32> to vector<32x1xf32>
    %cst_30 = arith.constant 1.280000e+02 : f32
    %63 = vector.broadcast %cst_30 : f32 to vector<32x1xf32>
    %64 = arith.divf %62, %63 : vector<32x1xf32>
    %65 = vector.broadcast %57 : vector<32x1xf32> to vector<32x128xf32>
    %66 = arith.subf %49, %65 : vector<32x128xf32>
    %cst_31 = arith.constant 9.99999974E-6 : f32
    %67 = vector.broadcast %cst_31 : f32 to vector<32x1xf32>
    %68 = arith.addf %64, %67 : vector<32x1xf32>
    %69 = math.rsqrt %68 : vector<32x1xf32>
    %70 = vector.broadcast %69 : vector<32x1xf32> to vector<32x128xf32>
    %71 = arith.mulf %66, %70 : vector<32x128xf32>
    %72 = vector.broadcast %51 : vector<1x128xf32> to vector<32x128xf32>
    %73 = arith.mulf %71, %72 : vector<32x128xf32>
    %74 = vector.broadcast %53 : vector<1x128xf32> to vector<32x128xf32>
    %75 = arith.addf %73, %74 : vector<32x128xf32>
    %76 = arith.truncf %75 : vector<32x128xf32> to vector<32x128xbf16>
    %c0_32 = arith.constant 0 : index
    %c0_33 = arith.constant 0 : index
    %c0_34 = arith.constant 0 : index
    %77 = vector.load %arg9[%c0_32, %c0_33, %c0_34] : memref<2x128x512xbf16, #tpu.memory_space<vmem>>, vector<1x128x512xbf16>
    %78 = vector.shape_cast %77 : vector<1x128x512xbf16> to vector<128x512xbf16>
    %cst_35 = arith.constant dense<0.000000e+00> : vector<32x512xf32>
    %79 = tpu.matmul %76, %78, %cst_35 {dimension_numbers = #tpu.dot_dimension_numbers<[1], [0], [0], [1], [0, 0, 1, 1], [], []>} : vector<32x128xbf16>, vector<128x512xbf16>, vector<32x512xf32> -> vector<32x512xf32>
    %c0_36 = arith.constant 0 : index
    %c0_37 = arith.constant 0 : index
    %c0_38 = arith.constant 0 : index
    %80 = vector.load %arg10[%c0_36, %c0_37, %c0_38] : memref<2x1x512xf32, #tpu.memory_space<vmem>>, vector<1x1x512xf32>
    %81 = vector.shape_cast %80 : vector<1x1x512xf32> to vector<1x512xf32>
    %82 = vector.broadcast %81 : vector<1x512xf32> to vector<32x512xf32>
    %83 = arith.addf %79, %82 : vector<32x512xf32>
    %cst_39 = arith.constant 0.000000e+00 : f32
    %84 = vector.broadcast %cst_39 : f32 to vector<32x512xf32>
    %85 = arith.maximumf %83, %84 : vector<32x512xf32>
    %86 = arith.truncf %85 : vector<32x512xf32> to vector<32x512xbf16>
    %c0_40 = arith.constant 0 : index
    %c0_41 = arith.constant 0 : index
    %c0_42 = arith.constant 0 : index
    %87 = vector.load %arg11[%c0_40, %c0_41, %c0_42] : memref<2x512x128xbf16, #tpu.memory_space<vmem>>, vector<1x512x128xbf16>
    %88 = vector.shape_cast %87 : vector<1x512x128xbf16> to vector<512x128xbf16>
    %cst_43 = arith.constant dense<0.000000e+00> : vector<32x128xf32>
    %89 = tpu.matmul %86, %88, %cst_43 {dimension_numbers = #tpu.dot_dimension_numbers<[1], [0], [0], [1], [0, 0, 1, 1], [], []>} : vector<32x512xbf16>, vector<512x128xbf16>, vector<32x128xf32> -> vector<32x128xf32>
    %c0_44 = arith.constant 0 : index
    %c0_45 = arith.constant 0 : index
    %c0_46 = arith.constant 0 : index
    %90 = vector.load %arg12[%c0_44, %c0_45, %c0_46] : memref<2x1x128xf32, #tpu.memory_space<vmem>>, vector<1x1x128xf32>
    %91 = vector.shape_cast %90 : vector<1x1x128xf32> to vector<1x128xf32>
    %92 = vector.broadcast %91 : vector<1x128xf32> to vector<32x128xf32>
    %93 = arith.addf %89, %92 : vector<32x128xf32>
    %94 = arith.addf %75, %93 : vector<32x128xf32>
    %c0_47 = arith.constant 0 : index
    %c0_48 = arith.constant 0 : index
    %c0_49 = arith.constant 0 : index
    %95 = vector.load %arg13[%c0_47, %c0_48, %c0_49] : memref<2x1x128xf32, #tpu.memory_space<vmem>>, vector<1x1x128xf32>
    %96 = vector.shape_cast %95 : vector<1x1x128xf32> to vector<1x128xf32>
    %c0_50 = arith.constant 0 : index
    %c0_51 = arith.constant 0 : index
    %c0_52 = arith.constant 0 : index
    %97 = vector.load %arg14[%c0_50, %c0_51, %c0_52] : memref<2x1x128xf32, #tpu.memory_space<vmem>>, vector<1x1x128xf32>
    %98 = vector.shape_cast %97 : vector<1x1x128xf32> to vector<1x128xf32>
    %cst_53 = arith.constant dense<0.000000e+00> : vector<32xf32>
    %99 = vector.multi_reduction <add>, %94, %cst_53 [1] : vector<32x128xf32> to vector<32xf32>
    %100 = vector.shape_cast %99 : vector<32xf32> to vector<32x1xf32>
    %cst_54 = arith.constant 1.280000e+02 : f32
    %101 = vector.broadcast %cst_54 : f32 to vector<32x1xf32>
    %102 = arith.divf %100, %101 : vector<32x1xf32>
    %103 = vector.broadcast %102 : vector<32x1xf32> to vector<32x128xf32>
    %104 = arith.subf %94, %103 : vector<32x128xf32>
    %105 = arith.mulf %104, %104 : vector<32x128xf32>
    %cst_55 = arith.constant dense<0.000000e+00> : vector<32xf32>
    %106 = vector.multi_reduction <add>, %105, %cst_55 [1] : vector<32x128xf32> to vector<32xf32>
    %107 = vector.shape_cast %106 : vector<32xf32> to vector<32x1xf32>
    %cst_56 = arith.constant 1.280000e+02 : f32
    %108 = vector.broadcast %cst_56 : f32 to vector<32x1xf32>
    %109 = arith.divf %107, %108 : vector<32x1xf32>
    %110 = vector.broadcast %102 : vector<32x1xf32> to vector<32x128xf32>
    %111 = arith.subf %94, %110 : vector<32x128xf32>
    %cst_57 = arith.constant 9.99999974E-6 : f32
    %112 = vector.broadcast %cst_57 : f32 to vector<32x1xf32>
    %113 = arith.addf %109, %112 : vector<32x1xf32>
    %114 = math.rsqrt %113 : vector<32x1xf32>
    %115 = vector.broadcast %114 : vector<32x1xf32> to vector<32x128xf32>
    %116 = arith.mulf %111, %115 : vector<32x128xf32>
    %117 = vector.broadcast %96 : vector<1x128xf32> to vector<32x128xf32>
    %118 = arith.mulf %116, %117 : vector<32x128xf32>
    %119 = vector.broadcast %98 : vector<1x128xf32> to vector<32x128xf32>
    %120 = arith.addf %118, %119 : vector<32x128xf32>
    %121 = arith.truncf %120 : vector<32x128xf32> to vector<32x128xbf16>
    %c1 = arith.constant 1 : index
    %c0_58 = arith.constant 0 : index
    %c0_59 = arith.constant 0 : index
    %122 = vector.load %arg3[%c1, %c0_58, %c0_59] : memref<2x128x384xbf16, #tpu.memory_space<vmem>>, vector<1x128x384xbf16>
    %123 = vector.shape_cast %122 : vector<1x128x384xbf16> to vector<128x384xbf16>
    %cst_60 = arith.constant dense<0.000000e+00> : vector<32x384xf32>
    %124 = tpu.matmul %121, %123, %cst_60 {dimension_numbers = #tpu.dot_dimension_numbers<[1], [0], [0], [1], [0, 0, 1, 1], [], []>} : vector<32x128xbf16>, vector<128x384xbf16>, vector<32x384xf32> -> vector<32x384xf32>
    %c1_61 = arith.constant 1 : index
    %c0_62 = arith.constant 0 : index
    %c0_63 = arith.constant 0 : index
    %125 = vector.load %arg4[%c1_61, %c0_62, %c0_63] : memref<2x1x384xf32, #tpu.memory_space<vmem>>, vector<1x1x384xf32>
    %126 = vector.shape_cast %125 : vector<1x1x384xf32> to vector<1x384xf32>
    %127 = vector.broadcast %126 : vector<1x384xf32> to vector<32x384xf32>
    %128 = arith.addf %124, %127 : vector<32x384xf32>
    %129 = vector.extract_strided_slice %128 {offsets = [0, 0], sizes = [32, 128], strides = [1, 1]} : vector<32x384xf32> to vector<32x128xf32>
    %130 = vector.shape_cast %129 : vector<32x128xf32> to vector<8x4x128xf32>
    %131 = vector.extract_strided_slice %128 {offsets = [0, 128], sizes = [32, 128], strides = [1, 1]} : vector<32x384xf32> to vector<32x128xf32>
    %132 = vector.shape_cast %131 : vector<32x128xf32> to vector<8x4x128xf32>
    %133 = vector.extract_strided_slice %128 {offsets = [0, 256], sizes = [32, 128], strides = [1, 1]} : vector<32x384xf32> to vector<32x128xf32>
    %134 = vector.shape_cast %133 : vector<32x128xf32> to vector<8x4x128xf32>
    %135 = vector.shape_cast %130 : vector<8x4x128xf32> to vector<8x4x1x128xf32>
    %136 = vector.shape_cast %132 : vector<8x4x128xf32> to vector<8x1x4x128xf32>
    %137 = vector.broadcast %135 : vector<8x4x1x128xf32> to vector<8x4x4x128xf32>
    %138 = vector.broadcast %136 : vector<8x1x4x128xf32> to vector<8x4x4x128xf32>
    %139 = arith.mulf %137, %138 : vector<8x4x4x128xf32>
    %140 = vector.shape_cast %139 : vector<8x4x4x128xf32> to vector<128x128xf32>
    %cst_64 = arith.constant dense<0.000000e+00> : vector<128x128xf32>
    %141 = tpu.matmul %140, %1, %cst_64 {dimension_numbers = #tpu.dot_dimension_numbers<[1], [0], [0], [1], [0, 0, 1, 1], [], []>} : vector<128x128xf32>, vector<128x128xf32>, vector<128x128xf32> -> vector<128x128xf32>
    %142 = vector.shape_cast %141 : vector<128x128xf32> to vector<8x4x4x128xf32>
    %cst_65 = arith.constant 0.176776692 : f32
    %143 = vector.broadcast %cst_65 : f32 to vector<8x4x4x128xf32>
    %144 = arith.mulf %142, %143 : vector<8x4x4x128xf32>
    %cst_66 = arith.constant dense<0xFF800000> : vector<8x4x128xf32>
    %145 = vector.multi_reduction <maximumf>, %144, %cst_66 [2] : vector<8x4x4x128xf32> to vector<8x4x128xf32>
    %146 = vector.shape_cast %145 : vector<8x4x128xf32> to vector<8x4x1x128xf32>
    %147 = vector.broadcast %146 : vector<8x4x1x128xf32> to vector<8x4x4x128xf32>
    %148 = arith.subf %144, %147 : vector<8x4x4x128xf32>
    %149 = math.exp %148 : vector<8x4x4x128xf32>
    %cst_67 = arith.constant dense<0.000000e+00> : vector<8x4x128xf32>
    %150 = vector.multi_reduction <add>, %149, %cst_67 [2] : vector<8x4x4x128xf32> to vector<8x4x128xf32>
    %151 = vector.shape_cast %150 : vector<8x4x128xf32> to vector<8x4x1x128xf32>
    %152 = tpu.reciprocal %151 {approx = true} : vector<8x4x1x128xf32> -> vector<8x4x1x128xf32>
    %153 = vector.broadcast %152 : vector<8x4x1x128xf32> to vector<8x4x4x128xf32>
    %154 = arith.mulf %149, %153 : vector<8x4x4x128xf32>
    %155 = vector.shape_cast %134 : vector<8x4x128xf32> to vector<8x1x4x128xf32>
    %156 = vector.broadcast %155 : vector<8x1x4x128xf32> to vector<8x4x4x128xf32>
    %157 = arith.mulf %154, %156 : vector<8x4x4x128xf32>
    %cst_68 = arith.constant dense<0.000000e+00> : vector<8x4x128xf32>
    %158 = vector.multi_reduction <add>, %157, %cst_68 [2] : vector<8x4x4x128xf32> to vector<8x4x128xf32>
    %159 = vector.shape_cast %158 : vector<8x4x128xf32> to vector<32x128xf32>
    %160 = arith.truncf %159 : vector<32x128xf32> to vector<32x128xbf16>
    %c1_69 = arith.constant 1 : index
    %c0_70 = arith.constant 0 : index
    %c0_71 = arith.constant 0 : index
    %161 = vector.load %arg5[%c1_69, %c0_70, %c0_71] : memref<2x128x128xbf16, #tpu.memory_space<vmem>>, vector<1x128x128xbf16>
    %162 = vector.shape_cast %161 : vector<1x128x128xbf16> to vector<128x128xbf16>
    %cst_72 = arith.constant dense<0.000000e+00> : vector<32x128xf32>
    %163 = tpu.matmul %160, %162, %cst_72 {dimension_numbers = #tpu.dot_dimension_numbers<[1], [0], [0], [1], [0, 0, 1, 1], [], []>} : vector<32x128xbf16>, vector<128x128xbf16>, vector<32x128xf32> -> vector<32x128xf32>
    %c1_73 = arith.constant 1 : index
    %c0_74 = arith.constant 0 : index
    %c0_75 = arith.constant 0 : index
    %164 = vector.load %arg6[%c1_73, %c0_74, %c0_75] : memref<2x1x128xf32, #tpu.memory_space<vmem>>, vector<1x1x128xf32>
    %165 = vector.shape_cast %164 : vector<1x1x128xf32> to vector<1x128xf32>
    %166 = vector.broadcast %165 : vector<1x128xf32> to vector<32x128xf32>
    %167 = arith.addf %163, %166 : vector<32x128xf32>
    %168 = arith.addf %120, %167 : vector<32x128xf32>
    %c1_76 = arith.constant 1 : index
    %c0_77 = arith.constant 0 : index
    %c0_78 = arith.constant 0 : index
    %169 = vector.load %arg7[%c1_76, %c0_77, %c0_78] : memref<2x1x128xf32, #tpu.memory_space<vmem>>, vector<1x1x128xf32>
    %170 = vector.shape_cast %169 : vector<1x1x128xf32> to vector<1x128xf32>
    %c1_79 = arith.constant 1 : index
    %c0_80 = arith.constant 0 : index
    %c0_81 = arith.constant 0 : index
    %171 = vector.load %arg8[%c1_79, %c0_80, %c0_81] : memref<2x1x128xf32, #tpu.memory_space<vmem>>, vector<1x1x128xf32>
    %172 = vector.shape_cast %171 : vector<1x1x128xf32> to vector<1x128xf32>
    %cst_82 = arith.constant dense<0.000000e+00> : vector<32xf32>
    %173 = vector.multi_reduction <add>, %168, %cst_82 [1] : vector<32x128xf32> to vector<32xf32>
    %174 = vector.shape_cast %173 : vector<32xf32> to vector<32x1xf32>
    %cst_83 = arith.constant 1.280000e+02 : f32
    %175 = vector.broadcast %cst_83 : f32 to vector<32x1xf32>
    %176 = arith.divf %174, %175 : vector<32x1xf32>
    %177 = vector.broadcast %176 : vector<32x1xf32> to vector<32x128xf32>
    %178 = arith.subf %168, %177 : vector<32x128xf32>
    %179 = arith.mulf %178, %178 : vector<32x128xf32>
    %cst_84 = arith.constant dense<0.000000e+00> : vector<32xf32>
    %180 = vector.multi_reduction <add>, %179, %cst_84 [1] : vector<32x128xf32> to vector<32xf32>
    %181 = vector.shape_cast %180 : vector<32xf32> to vector<32x1xf32>
    %cst_85 = arith.constant 1.280000e+02 : f32
    %182 = vector.broadcast %cst_85 : f32 to vector<32x1xf32>
    %183 = arith.divf %181, %182 : vector<32x1xf32>
    %184 = vector.broadcast %176 : vector<32x1xf32> to vector<32x128xf32>
    %185 = arith.subf %168, %184 : vector<32x128xf32>
    %cst_86 = arith.constant 9.99999974E-6 : f32
    %186 = vector.broadcast %cst_86 : f32 to vector<32x1xf32>
    %187 = arith.addf %183, %186 : vector<32x1xf32>
    %188 = math.rsqrt %187 : vector<32x1xf32>
    %189 = vector.broadcast %188 : vector<32x1xf32> to vector<32x128xf32>
    %190 = arith.mulf %185, %189 : vector<32x128xf32>
    %191 = vector.broadcast %170 : vector<1x128xf32> to vector<32x128xf32>
    %192 = arith.mulf %190, %191 : vector<32x128xf32>
    %193 = vector.broadcast %172 : vector<1x128xf32> to vector<32x128xf32>
    %194 = arith.addf %192, %193 : vector<32x128xf32>
    %195 = arith.truncf %194 : vector<32x128xf32> to vector<32x128xbf16>
    %c1_87 = arith.constant 1 : index
    %c0_88 = arith.constant 0 : index
    %c0_89 = arith.constant 0 : index
    %196 = vector.load %arg9[%c1_87, %c0_88, %c0_89] : memref<2x128x512xbf16, #tpu.memory_space<vmem>>, vector<1x128x512xbf16>
    %197 = vector.shape_cast %196 : vector<1x128x512xbf16> to vector<128x512xbf16>
    %cst_90 = arith.constant dense<0.000000e+00> : vector<32x512xf32>
    %198 = tpu.matmul %195, %197, %cst_90 {dimension_numbers = #tpu.dot_dimension_numbers<[1], [0], [0], [1], [0, 0, 1, 1], [], []>} : vector<32x128xbf16>, vector<128x512xbf16>, vector<32x512xf32> -> vector<32x512xf32>
    %c1_91 = arith.constant 1 : index
    %c0_92 = arith.constant 0 : index
    %c0_93 = arith.constant 0 : index
    %199 = vector.load %arg10[%c1_91, %c0_92, %c0_93] : memref<2x1x512xf32, #tpu.memory_space<vmem>>, vector<1x1x512xf32>
    %200 = vector.shape_cast %199 : vector<1x1x512xf32> to vector<1x512xf32>
    %201 = vector.broadcast %200 : vector<1x512xf32> to vector<32x512xf32>
    %202 = arith.addf %198, %201 : vector<32x512xf32>
    %cst_94 = arith.constant 0.000000e+00 : f32
    %203 = vector.broadcast %cst_94 : f32 to vector<32x512xf32>
    %204 = arith.maximumf %202, %203 : vector<32x512xf32>
    %205 = arith.truncf %204 : vector<32x512xf32> to vector<32x512xbf16>
    %c1_95 = arith.constant 1 : index
    %c0_96 = arith.constant 0 : index
    %c0_97 = arith.constant 0 : index
    %206 = vector.load %arg11[%c1_95, %c0_96, %c0_97] : memref<2x512x128xbf16, #tpu.memory_space<vmem>>, vector<1x512x128xbf16>
    %207 = vector.shape_cast %206 : vector<1x512x128xbf16> to vector<512x128xbf16>
    %cst_98 = arith.constant dense<0.000000e+00> : vector<32x128xf32>
    %208 = tpu.matmul %205, %207, %cst_98 {dimension_numbers = #tpu.dot_dimension_numbers<[1], [0], [0], [1], [0, 0, 1, 1], [], []>} : vector<32x512xbf16>, vector<512x128xbf16>, vector<32x128xf32> -> vector<32x128xf32>
    %c1_99 = arith.constant 1 : index
    %c0_100 = arith.constant 0 : index
    %c0_101 = arith.constant 0 : index
    %209 = vector.load %arg12[%c1_99, %c0_100, %c0_101] : memref<2x1x128xf32, #tpu.memory_space<vmem>>, vector<1x1x128xf32>
    %210 = vector.shape_cast %209 : vector<1x1x128xf32> to vector<1x128xf32>
    %211 = vector.broadcast %210 : vector<1x128xf32> to vector<32x128xf32>
    %212 = arith.addf %208, %211 : vector<32x128xf32>
    %213 = arith.addf %194, %212 : vector<32x128xf32>
    %c1_102 = arith.constant 1 : index
    %c0_103 = arith.constant 0 : index
    %c0_104 = arith.constant 0 : index
    %214 = vector.load %arg13[%c1_102, %c0_103, %c0_104] : memref<2x1x128xf32, #tpu.memory_space<vmem>>, vector<1x1x128xf32>
    %215 = vector.shape_cast %214 : vector<1x1x128xf32> to vector<1x128xf32>
    %c1_105 = arith.constant 1 : index
    %c0_106 = arith.constant 0 : index
    %c0_107 = arith.constant 0 : index
    %216 = vector.load %arg14[%c1_105, %c0_106, %c0_107] : memref<2x1x128xf32, #tpu.memory_space<vmem>>, vector<1x1x128xf32>
    %217 = vector.shape_cast %216 : vector<1x1x128xf32> to vector<1x128xf32>
    %cst_108 = arith.constant dense<0.000000e+00> : vector<32xf32>
    %218 = vector.multi_reduction <add>, %213, %cst_108 [1] : vector<32x128xf32> to vector<32xf32>
    %219 = vector.shape_cast %218 : vector<32xf32> to vector<32x1xf32>
    %cst_109 = arith.constant 1.280000e+02 : f32
    %220 = vector.broadcast %cst_109 : f32 to vector<32x1xf32>
    %221 = arith.divf %219, %220 : vector<32x1xf32>
    %222 = vector.broadcast %221 : vector<32x1xf32> to vector<32x128xf32>
    %223 = arith.subf %213, %222 : vector<32x128xf32>
    %224 = arith.mulf %223, %223 : vector<32x128xf32>
    %cst_110 = arith.constant dense<0.000000e+00> : vector<32xf32>
    %225 = vector.multi_reduction <add>, %224, %cst_110 [1] : vector<32x128xf32> to vector<32xf32>
    %226 = vector.shape_cast %225 : vector<32xf32> to vector<32x1xf32>
    %cst_111 = arith.constant 1.280000e+02 : f32
    %227 = vector.broadcast %cst_111 : f32 to vector<32x1xf32>
    %228 = arith.divf %226, %227 : vector<32x1xf32>
    %229 = vector.broadcast %221 : vector<32x1xf32> to vector<32x128xf32>
    %230 = arith.subf %213, %229 : vector<32x128xf32>
    %cst_112 = arith.constant 9.99999974E-6 : f32
    %231 = vector.broadcast %cst_112 : f32 to vector<32x1xf32>
    %232 = arith.addf %228, %231 : vector<32x1xf32>
    %233 = math.rsqrt %232 : vector<32x1xf32>
    %234 = vector.broadcast %233 : vector<32x1xf32> to vector<32x128xf32>
    %235 = arith.mulf %230, %234 : vector<32x128xf32>
    %236 = vector.broadcast %215 : vector<1x128xf32> to vector<32x128xf32>
    %237 = arith.mulf %235, %236 : vector<32x128xf32>
    %238 = vector.broadcast %217 : vector<1x128xf32> to vector<32x128xf32>
    %239 = arith.addf %237, %238 : vector<32x128xf32>
    %c0_113 = arith.constant 0 : index
    %c0_114 = arith.constant 0 : index
    %240 = vector.load %arg15[%c0_113, %c0_114] : memref<2x128xbf16, #tpu.memory_space<vmem>>, vector<2x128xbf16>
    %241 = arith.truncf %239 : vector<32x128xf32> to vector<32x128xbf16>
    %cst_115 = arith.constant dense<0.000000e+00> : vector<2x32xf32>
    %242 = tpu.matmul %240, %241, %cst_115 {dimension_numbers = #tpu.dot_dimension_numbers<[1], [1], [0], [0], [0, 0, 1, 0], [], []>} : vector<2x128xbf16>, vector<32x128xbf16>, vector<2x32xf32> -> vector<2x32xf32>
    %c0_116 = arith.constant 0 : index
    %c0_117 = arith.constant 0 : index
    %243 = vector.load %arg16[%c0_116, %c0_117] : memref<2x1xf32, #tpu.memory_space<vmem>>, vector<2x1xf32>
    %244 = vector.broadcast %243 : vector<2x1xf32> to vector<2x32xf32>
    %245 = arith.addf %242, %244 : vector<2x32xf32>
    %c0_118 = arith.constant 0 : index
    %c0_119 = arith.constant 0 : index
    %246 = vector.load %arg17[%c0_118, %c0_119] : memref<2x32xf32, #tpu.memory_space<vmem>>, vector<2x32xf32>
    tpu.vector_store %arg17[%c0_118, %c0_119], %245 {strides = array<i32>} : memref<2x32xf32, #tpu.memory_space<vmem>>, vector<2x32xf32>,
    return
  }
  func.func @transform_0(%arg0: i32) -> (i32, i32) {
    %c0_i32 = arith.constant 0 : i32
    %c0_i32_0 = arith.constant 0 : i32
    return %arg0, %c0_i32 : i32, i32
  }
  func.func @transform_1(%arg0: i32) -> (i32, i32) {
    %c0_i32 = arith.constant 0 : i32
    %c0_i32_0 = arith.constant 0 : i32
    %c0_i32_1 = arith.constant 0 : i32
    return %c0_i32, %c0_i32_0 : i32, i32
  }
  func.func @transform_2(%arg0: i32) -> (i32, i32, i32) {
    %c0_i32 = arith.constant 0 : i32
    %c0_i32_0 = arith.constant 0 : i32
    %c0_i32_1 = arith.constant 0 : i32
    %c0_i32_2 = arith.constant 0 : i32
    return %c0_i32, %c0_i32_0, %c0_i32_1 : i32, i32, i32
  }
  func.func @transform_3(%arg0: i32) -> (i32, i32, i32) {
    %c0_i32 = arith.constant 0 : i32
    %c0_i32_0 = arith.constant 0 : i32
    %c0_i32_1 = arith.constant 0 : i32
    %c0_i32_2 = arith.constant 0 : i32
    return %c0_i32, %c0_i32_0, %c0_i32_1 : i32, i32, i32
  }
  func.func @transform_4(%arg0: i32) -> (i32, i32, i32) {
    %c0_i32 = arith.constant 0 : i32
    %c0_i32_0 = arith.constant 0 : i32
    %c0_i32_1 = arith.constant 0 : i32
    %c0_i32_2 = arith.constant 0 : i32
    return %c0_i32, %c0_i32_0, %c0_i32_1 : i32, i32, i32
  }
  func.func @transform_5(%arg0: i32) -> (i32, i32, i32) {
    %c0_i32 = arith.constant 0 : i32
    %c0_i32_0 = arith.constant 0 : i32
    %c0_i32_1 = arith.constant 0 : i32
    %c0_i32_2 = arith.constant 0 : i32
    return %c0_i32, %c0_i32_0, %c0_i32_1 : i32, i32, i32
  }
  func.func @transform_6(%arg0: i32) -> (i32, i32, i32) {
    %c0_i32 = arith.constant 0 : i32
    %c0_i32_0 = arith.constant 0 : i32
    %c0_i32_1 = arith.constant 0 : i32
    %c0_i32_2 = arith.constant 0 : i32
    return %c0_i32, %c0_i32_0, %c0_i32_1 : i32, i32, i32
  }
  func.func @transform_7(%arg0: i32) -> (i32, i32, i32) {
    %c0_i32 = arith.constant 0 : i32
    %c0_i32_0 = arith.constant 0 : i32
    %c0_i32_1 = arith.constant 0 : i32
    %c0_i32_2 = arith.constant 0 : i32
    return %c0_i32, %c0_i32_0, %c0_i32_1 : i32, i32, i32
  }
  func.func @transform_8(%arg0: i32) -> (i32, i32, i32) {
    %c0_i32 = arith.constant 0 : i32
    %c0_i32_0 = arith.constant 0 : i32
    %c0_i32_1 = arith.constant 0 : i32
    %c0_i32_2 = arith.constant 0 : i32
    return %c0_i32, %c0_i32_0, %c0_i32_1 : i32, i32, i32
  }
  func.func @transform_9(%arg0: i32) -> (i32, i32, i32) {
    %c0_i32 = arith.constant 0 : i32
    %c0_i32_0 = arith.constant 0 : i32
    %c0_i32_1 = arith.constant 0 : i32
    %c0_i32_2 = arith.constant 0 : i32
    return %c0_i32, %c0_i32_0, %c0_i32_1 : i32, i32, i32
  }
  func.func @transform_10(%arg0: i32) -> (i32, i32, i32) {
    %c0_i32 = arith.constant 0 : i32
    %c0_i32_0 = arith.constant 0 : i32
    %c0_i32_1 = arith.constant 0 : i32
    %c0_i32_2 = arith.constant 0 : i32
    return %c0_i32, %c0_i32_0, %c0_i32_1 : i32, i32, i32
  }
  func.func @transform_11(%arg0: i32) -> (i32, i32, i32) {
    %c0_i32 = arith.constant 0 : i32
    %c0_i32_0 = arith.constant 0 : i32
    %c0_i32_1 = arith.constant 0 : i32
    %c0_i32_2 = arith.constant 0 : i32
    return %c0_i32, %c0_i32_0, %c0_i32_1 : i32, i32, i32
  }
  func.func @transform_12(%arg0: i32) -> (i32, i32, i32) {
    %c0_i32 = arith.constant 0 : i32
    %c0_i32_0 = arith.constant 0 : i32
    %c0_i32_1 = arith.constant 0 : i32
    %c0_i32_2 = arith.constant 0 : i32
    return %c0_i32, %c0_i32_0, %c0_i32_1 : i32, i32, i32
  }
  func.func @transform_13(%arg0: i32) -> (i32, i32, i32) {
    %c0_i32 = arith.constant 0 : i32
    %c0_i32_0 = arith.constant 0 : i32
    %c0_i32_1 = arith.constant 0 : i32
    %c0_i32_2 = arith.constant 0 : i32
    return %c0_i32, %c0_i32_0, %c0_i32_1 : i32, i32, i32
  }
  func.func @transform_14(%arg0: i32) -> (i32, i32) {
    %c0_i32 = arith.constant 0 : i32
    %c0_i32_0 = arith.constant 0 : i32
    %c0_i32_1 = arith.constant 0 : i32
    return %c0_i32, %c0_i32_0 : i32, i32
  }
  func.func @transform_15(%arg0: i32) -> (i32, i32) {
    %c0_i32 = arith.constant 0 : i32
    %c0_i32_0 = arith.constant 0 : i32
    %c0_i32_1 = arith.constant 0 : i32
    return %c0_i32, %c0_i32_0 : i32, i32
  }
  func.func @transform_16(%arg0: i32) -> (i32, i32) {
    %c0_i32 = arith.constant 0 : i32
    %c0_i32_0 = arith.constant 0 : i32
    return %c0_i32, %arg0 : i32, i32
  }
}

</mosaic_0001>

<llo_original>
// kernel: sequence_labeling_forward.1
$region0: #{sequence_labeling_forward.1}
  #allocation0 [shape = 'u32[]', space=smem, size = 0x4, offset = 0x4, fixed_abs, tag = 'smem constant byte address 0x4 - core index']
  #allocation1 [shape = 'u32[144,128]{1,0:T(1,128)}', space=vmem, size = 0x12000, scoped, tag = 'internal scratch']
  %s0 = inlined_call_operand.vmem [shape: f32[32,128], index: 0, kind: input, shape index: {}]
  %s1 = inlined_call_operand.hbm [shape: f32[128,128], index: 1, kind: input, shape index: {}]
  %s2 = inlined_call_operand.hbm [shape: bf16[2,128,384], index: 2, kind: input, shape index: {}]
  %s3 = inlined_call_operand.hbm [shape: f32[2,1,384], index: 3, kind: input, shape index: {}]
  %s4 = inlined_call_operand.hbm [shape: bf16[2,128,128], index: 4, kind: input, shape index: {}]
  %s5 = inlined_call_operand.hbm [shape: f32[2,1,128], index: 5, kind: input, shape index: {}]
  %s6 = inlined_call_operand.hbm [shape: f32[2,1,128], index: 6, kind: input, shape index: {}]
  %s7 = inlined_call_operand.hbm [shape: f32[2,1,128], index: 7, kind: input, shape index: {}]
  %s8 = inlined_call_operand.hbm [shape: bf16[2,128,512], index: 8, kind: input, shape index: {}]
  %s9 = inlined_call_operand.hbm [shape: f32[2,1,512], index: 9, kind: input, shape index: {}]
  %s10 = inlined_call_operand.hbm [shape: bf16[2,512,128], index: 10, kind: input, shape index: {}]
  %s11 = inlined_call_operand.hbm [shape: f32[2,1,128], index: 11, kind: input, shape index: {}]
  %s12 = inlined_call_operand.hbm [shape: f32[2,1,128], index: 12, kind: input, shape index: {}]
  %s13 = inlined_call_operand.hbm [shape: f32[2,1,128], index: 13, kind: input, shape index: {}]
  %s14 = inlined_call_operand.hbm [shape: bf16[2,128], index: 14, kind: input, shape index: {}]
  %s15 = inlined_call_operand.vmem [shape: f32[2,1], index: 15, kind: input, shape index: {}]
  %s16 = inlined_call_operand.vmem [shape: f32[2,32], index: 16, kind: output, shape index: {}]
  %s17 = sld [smem:[#allocation0]]
  $region130: #{sequence_labeling_forward.1} parent=0
    _
  %s19 = ssub.s32 1, %s17
  %s20 = scalar_select 0, %s19, %s17
  $region1: #{sequence_labeling_forward.1} parent=0
    #allocation2 [shape = 'u8[65536]{0}', space=vmem, size = 0x10000, scoped, tag = 'input window, operand 1, single buffered']
    #allocation3 [shape = 's32[1]{0}', space=sflag, size = 0x4, scoped, tag = 'scoped memory for sequence_labeling_forward.1']
    #allocation4 [shape = 'u8[196608]{0}', space=vmem, size = 0x30000, scoped, tag = 'input window, operand 2, single buffered']
    #allocation5 [shape = 's32[1]{0}', space=sflag, size = 0x4, scoped, tag = 'scoped memory for sequence_labeling_forward.1']
    #allocation6 [shape = 'u8[3072]{0}', space=vmem, size = 0xc00, scoped, tag = 'input window, operand 3, single buffered']
    #allocation7 [shape = 'u8[65536]{0}', space=vmem, size = 0x10000, scoped, tag = 'input window, operand 4, single buffered']
    #allocation8 [shape = 's32[1]{0}', space=sflag, size = 0x4, scoped, tag = 'scoped memory for sequence_labeling_forward.1']
    #allocation9 [shape = 'u8[1024]{0}', space=vmem, size = 0x400, scoped, tag = 'input window, operand 5, single buffered']
    #allocation10 [shape = 'u8[1024]{0}', space=vmem, size = 0x400, scoped, tag = 'input window, operand 6, single buffered']
    #allocation11 [shape = 's32[1]{0}', space=sflag, size = 0x4, scoped, tag = 'scoped memory for sequence_labeling_forward.1']
    #allocation12 [shape = 'u8[1024]{0}', space=vmem, size = 0x400, scoped, tag = 'input window, operand 7, single buffered']
    #allocation13 [shape = 'u8[262144]{0}', space=vmem, size = 0x40000, scoped, tag = 'input window, operand 8, single buffered']
    #allocation14 [shape = 's32[1]{0}', space=sflag, size = 0x4, scoped, tag = 'scoped memory for sequence_labeling_forward.1']
    #allocation15 [shape = 'u8[4096]{0}', space=vmem, size = 0x1000, scoped, tag = 'input window, operand 9, single buffered']
    #allocation16 [shape = 'u8[262144]{0}', space=vmem, size = 0x40000, scoped, tag = 'input window, operand 10, single buffered']
    #allocation17 [shape = 's32[1]{0}', space=sflag, size = 0x4, scoped, tag = 'scoped memory for sequence_labeling_forward.1']
    #allocation18 [shape = 'u8[1024]{0}', space=vmem, size = 0x400, scoped, tag = 'input window, operand 11, single buffered']
    #allocation19 [shape = 'u8[1024]{0}', space=vmem, size = 0x400, scoped, tag = 'input window, operand 12, single buffered']
    #allocation20 [shape = 's32[1]{0}', space=sflag, size = 0x4, scoped, tag = 'scoped memory for sequence_labeling_forward.1']
    #allocation21 [shape = 'u8[1024]{0}', space=vmem, size = 0x400, scoped, tag = 'input window, operand 13, single buffered']
    #allocation22 [shape = 'u8[512]{0}', space=vmem, size = 0x400, scoped, tag = 'input window, operand 14, single buffered']
    #allocation23 [shape = 's32[1]{0}', space=sflag, size = 0x4, scoped, tag = 'scoped memory for sequence_labeling_forward.1']
    %21 = vsyncpa [#allocation3], 0
    %22 = vsyncpa [#allocation5], 0
    %23 = vsyncpa [#allocation8], 0
    %24 = vsyncpa [#allocation11], 0
    %25 = vsyncpa [#allocation14], 0
    %26 = vsyncpa [#allocation17], 0
    %27 = vsyncpa [#allocation20], 0
    %28 = vsyncpa [#allocation23], 0
    // Predicated region
    $region2: #{sequence_labeling_forward.1} parent=1 // pred_check
      _
    $region3: #{sequence_labeling_forward.1} parent=1 // pred_check_branch
      %30 = sbr.rel (0) target = $region5
    $region4: #{sequence_labeling_forward.1} parent=1 // pred_region
      _
    $region5: #{sequence_labeling_forward.1} parent=1 // pred_fallthru
      _
    // Predicated region
    $region6: #{sequence_labeling_forward.1} parent=1 // pred_check
      _
    $region7: #{sequence_labeling_forward.1} parent=1 // pred_check_branch
      %32 = sbr.rel (0) target = $region9
    $region8: #{sequence_labeling_forward.1} parent=1 // pred_region
      %s34 = ssub.s32 2048, 2048
      %35 = vsyncadd [#allocation3], %s34
      %s36 = sshll.u32 [#allocation2], 4
      %s37 = int_to_ptr.vmem [resolvable:$true] %s36
      %42 = dma.hbm_to_vmem [thread:$0]  %s1, 2048, %s37, [#allocation3], 128, 128, 8
    $region9: #{sequence_labeling_forward.1} parent=1 // pred_fallthru
      _
    // Predicated region
    $region10: #{sequence_labeling_forward.1} parent=1 // pred_check
      _
    $region11: #{sequence_labeling_forward.1} parent=1 // pred_check_branch
      %44 = sbr.rel (0) target = $region13
    $region12: #{sequence_labeling_forward.1} parent=1 // pred_region
      %s46 = ssub.s32 6144, 6144
      %47 = vsyncadd [#allocation5], %s46
      %s48 = sshll.u32 [#allocation4], 4
      %s49 = int_to_ptr.vmem [resolvable:$true] %s48
      %54 = dma.hbm_to_vmem [thread:$0]  %s2, 6144, %s49, [#allocation5], 192, 192, 12
    $region13: #{sequence_labeling_forward.1} parent=1 // pred_fallthru
      _
    // Predicated region
    $region14: #{sequence_labeling_forward.1} parent=1 // pred_check
      _
    $region15: #{sequence_labeling_forward.1} parent=1 // pred_check_branch
      %56 = sbr.rel (0) target = $region17
    $region16: #{sequence_labeling_forward.1} parent=1 // pred_region
      %s58 = ssub.s32 96, 96
      %59 = vsyncadd [#allocation5], %s58
      %s60 = sshll.u32 [#allocation6], 4
      %s61 = int_to_ptr.vmem [resolvable:$true] %s60
      %66 = dma.hbm_to_vmem [thread:$0]  %s3, 96, %s61, [#allocation5], 48, 48, 3
    $region17: #{sequence_labeling_forward.1} parent=1 // pred_fallthru
      _
    // Predicated region
    $region18: #{sequence_labeling_forward.1} parent=1 // pred_check
      _
    $region19: #{sequence_labeling_forward.1} parent=1 // pred_check_branch
      %68 = sbr.rel (0) target = $region21
    $region20: #{sequence_labeling_forward.1} parent=1 // pred_region
      %s70 = ssub.s32 2048, 2048
      %71 = vsyncadd [#allocation8], %s70
      %s72 = sshll.u32 [#allocation7], 4
      %s73 = int_to_ptr.vmem [resolvable:$true] %s72
      %78 = dma.hbm_to_vmem [thread:$0]  %s4, 2048, %s73, [#allocation8], 64, 64, 4
    $region21: #{sequence_labeling_forward.1} parent=1 // pred_fallthru
      _
    // Predicated region
    $region22: #{sequence_labeling_forward.1} parent=1 // pred_check
      _
    $region23: #{sequence_labeling_forward.1} parent=1 // pred_check_branch
      %80 = sbr.rel (0) target = $region25
    $region24: #{sequence_labeling_forward.1} parent=1 // pred_region
      %s82 = ssub.s32 32, 32
      %83 = vsyncadd [#allocation8], %s82
      %s84 = sshll.u32 [#allocation9], 4
      %s85 = int_to_ptr.vmem [resolvable:$true] %s84
      %90 = dma.hbm_to_vmem [thread:$0]  %s5, 32, %s85, [#allocation8], 16, 16, 1
    $region25: #{sequence_labeling_forward.1} parent=1 // pred_fallthru
      _
    // Predicated region
    $region26: #{sequence_labeling_forward.1} parent=1 // pred_check
      _
    $region27: #{sequence_labeling_forward.1} parent=1 // pred_check_branch
      %92 = sbr.rel (0) target = $region29
    $region28: #{sequence_labeling_forward.1} parent=1 // pred_region
      %s94 = ssub.s32 32, 32
      %95 = vsyncadd [#allocation11], %s94
      %s96 = sshll.u32 [#allocation10], 4
      %s97 = int_to_ptr.vmem [resolvable:$true] %s96
      %102 = dma.hbm_to_vmem [thread:$0]  %s6, 32, %s97, [#allocation11], 16, 16, 1
    $region29: #{sequence_labeling_forward.1} parent=1 // pred_fallthru
      _
    // Predicated region
    $region30: #{sequence_labeling_forward.1} parent=1 // pred_check
      _
    $region31: #{sequence_labeling_forward.1} parent=1 // pred_check_branch
      %104 = sbr.rel (0) target = $region33
    $region32: #{sequence_labeling_forward.1} parent=1 // pred_region
      %s106 = ssub.s32 32, 32
      %107 = vsyncadd [#allocation11], %s106
      %s108 = sshll.u32 [#allocation12], 4
      %s109 = int_to_ptr.vmem [resolvable:$true] %s108
      %114 = dma.hbm_to_vmem [thread:$0]  %s7, 32, %s109, [#allocation11], 16, 16, 1
    $region33: #{sequence_labeling_forward.1} parent=1 // pred_fallthru
      _
    // Predicated region
    $region34: #{sequence_labeling_forward.1} parent=1 // pred_check
      _
    $region35: #{sequence_labeling_forward.1} parent=1 // pred_check_branch
      %116 = sbr.rel (0) target = $region37
    $region36: #{sequence_labeling_forward.1} parent=1 // pred_region
      %s118 = ssub.s32 8192, 8192
      %119 = vsyncadd [#allocation14], %s118
      %s120 = sshll.u32 [#allocation13], 4
      %s121 = int_to_ptr.vmem [resolvable:$true] %s120
      %126 = dma.hbm_to_vmem [thread:$0]  %s8, 8192, %s121, [#allocation14], 256, 256, 16
    $region37: #{sequence_labeling_forward.1} parent=1 // pred_fallthru
      _
    // Predicated region
    $region38: #{sequence_labeling_forward.1} parent=1 // pred_check
      _
    $region39: #{sequence_labeling_forward.1} parent=1 // pred_check_branch
      %128 = sbr.rel (0) target = $region41
    $region40: #{sequence_labeling_forward.1} parent=1 // pred_region
      %s130 = ssub.s32 128, 128
      %131 = vsyncadd [#allocation14], %s130
      %s132 = sshll.u32 [#allocation15], 4
      %s133 = int_to_ptr.vmem [resolvable:$true] %s132
      %138 = dma.hbm_to_vmem [thread:$0]  %s9, 128, %s133, [#allocation14], 64, 64, 4
    $region41: #{sequence_labeling_forward.1} parent=1 // pred_fallthru
      _
    // Predicated region
    $region42: #{sequence_labeling_forward.1} parent=1 // pred_check
      _
    $region43: #{sequence_labeling_forward.1} parent=1 // pred_check_branch
      %140 = sbr.rel (0) target = $region45
    $region44: #{sequence_labeling_forward.1} parent=1 // pred_region
      %s142 = ssub.s32 8192, 8192
      %143 = vsyncadd [#allocation17], %s142
      %s144 = sshll.u32 [#allocation16], 4
      %s145 = int_to_ptr.vmem [resolvable:$true] %s144
      %150 = dma.hbm_to_vmem [thread:$0]  %s10, 8192, %s145, [#allocation17], 64, 64, 4
    $region45: #{sequence_labeling_forward.1} parent=1 // pred_fallthru
      _
    // Predicated region
    $region46: #{sequence_labeling_forward.1} parent=1 // pred_check
      _
    $region47: #{sequence_labeling_forward.1} parent=1 // pred_check_branch
      %152 = sbr.rel (0) target = $region49
    $region48: #{sequence_labeling_forward.1} parent=1 // pred_region
      %s154 = ssub.s32 32, 32
      %155 = vsyncadd [#allocation17], %s154
      %s156 = sshll.u32 [#allocation18], 4
      %s157 = int_to_ptr.vmem [resolvable:$true] %s156
      %162 = dma.hbm_to_vmem [thread:$0]  %s11, 32, %s157, [#allocation17], 16, 16, 1
    $region49: #{sequence_labeling_forward.1} parent=1 // pred_fallthru
      _
    // Predicated region
    $region50: #{sequence_labeling_forward.1} parent=1 // pred_check
      _
    $region51: #{sequence_labeling_forward.1} parent=1 // pred_check_branch
      %164 = sbr.rel (0) target = $region53
    $region52: #{sequence_labeling_forward.1} parent=1 // pred_region
      %s166 = ssub.s32 32, 32
      %167 = vsyncadd [#allocation20], %s166
      %s168 = sshll.u32 [#allocation19], 4
      %s169 = int_to_ptr.vmem [resolvable:$true] %s168
      %174 = dma.hbm_to_vmem [thread:$0]  %s12, 32, %s169, [#allocation20], 16, 16, 1
    $region53: #{sequence_labeling_forward.1} parent=1 // pred_fallthru
      _
    // Predicated region
    $region54: #{sequence_labeling_forward.1} parent=1 // pred_check
      _
    $region55: #{sequence_labeling_forward.1} parent=1 // pred_check_branch
      %176 = sbr.rel (0) target = $region57
    $region56: #{sequence_labeling_forward.1} parent=1 // pred_region
      %s178 = ssub.s32 32, 32
      %179 = vsyncadd [#allocation20], %s178
      %s180 = sshll.u32 [#allocation21], 4
      %s181 = int_to_ptr.vmem [resolvable:$true] %s180
      %186 = dma.hbm_to_vmem [thread:$0]  %s13, 32, %s181, [#allocation20], 16, 16, 1
    $region57: #{sequence_labeling_forward.1} parent=1 // pred_fallthru
      _
    // Predicated region
    $region58: #{sequence_labeling_forward.1} parent=1 // pred_check
      _
    $region59: #{sequence_labeling_forward.1} parent=1 // pred_check_branch
      %188 = sbr.rel (0) target = $region61
    $region60: #{sequence_labeling_forward.1} parent=1 // pred_region
      %s190 = ssub.s32 16, 16
      %191 = vsyncadd [#allocation23], %s190
      %s193 = sshll.u32 [#allocation22], 4
      %s194 = int_to_ptr.vmem [resolvable:$true] %s193
      %196 = dma.hbm_to_vmem [thread:$0]  %s14, 16, %s194, [#allocation23]
    $region61: #{sequence_labeling_forward.1} parent=1 // pred_fallthru
      _
    // Predicated region
    $region62: #{sequence_labeling_forward.1} parent=1 // pred_check
      _
    $region63: #{sequence_labeling_forward.1} parent=1 // pred_check_branch
      %198 = sbr.rel (0) target = $region65
    $region64: #{sequence_labeling_forward.1} parent=1 // pred_region
      _
    $region65: #{sequence_labeling_forward.1} parent=1 // pred_fallthru
      _
    // Predicated region
    $region66: #{sequence_labeling_forward.1} parent=1 // pred_check
      _
    $region67: #{sequence_labeling_forward.1} parent=1 // pred_check_branch
      %200 = sbr.rel (0) target = $region69
    $region68: #{sequence_labeling_forward.1} parent=1 // pred_region
      %201 = dma.done [#allocation3], 2048
    $region69: #{sequence_labeling_forward.1} parent=1 // pred_fallthru
      _
    // Predicated region
    $region70: #{sequence_labeling_forward.1} parent=1 // pred_check
      _
    $region71: #{sequence_labeling_forward.1} parent=1 // pred_check_branch
      %203 = sbr.rel (0) target = $region73
    $region72: #{sequence_labeling_forward.1} parent=1 // pred_region
      %204 = dma.done [#allocation5], 6144
    $region73: #{sequence_labeling_forward.1} parent=1 // pred_fallthru
      _
    // Predicated region
    $region74: #{sequence_labeling_forward.1} parent=1 // pred_check
      _
    $region75: #{sequence_labeling_forward.1} parent=1 // pred_check_branch
      %206 = sbr.rel (0) target = $region77
    $region76: #{sequence_labeling_forward.1} parent=1 // pred_region
      %207 = dma.done [#allocation5], 96
    $region77: #{sequence_labeling_forward.1} parent=1 // pred_fallthru
      _
    // Predicated region
    $region78: #{sequence_labeling_forward.1} parent=1 // pred_check
      _
    $region79: #{sequence_labeling_forward.1} parent=1 // pred_check_branch
      %209 = sbr.rel (0) target = $region81
    $region80: #{sequence_labeling_forward.1} parent=1 // pred_region
      %210 = dma.done [#allocation8], 2048
    $region81: #{sequence_labeling_forward.1} parent=1 // pred_fallthru
      _
    // Predicated region
    $region82: #{sequence_labeling_forward.1} parent=1 // pred_check
      _
    $region83: #{sequence_labeling_forward.1} parent=1 // pred_check_branch
      %212 = sbr.rel (0) target = $region85
    $region84: #{sequence_labeling_forward.1} parent=1 // pred_region
      %213 = dma.done [#allocation8], 32
    $region85: #{sequence_labeling_forward.1} parent=1 // pred_fallthru
      _
    // Predicated region
    $region86: #{sequence_labeling_forward.1} parent=1 // pred_check
      _
    $region87: #{sequence_labeling_forward.1} parent=1 // pred_check_branch
      %215 = sbr.rel (0) target = $region89
    $region88: #{sequence_labeling_forward.1} parent=1 // pred_region
      %216 = dma.done [#allocation11], 32
    $region89: #{sequence_labeling_forward.1} parent=1 // pred_fallthru
      _
    // Predicated region
    $region90: #{sequence_labeling_forward.1} parent=1 // pred_check
      _
    $region91: #{sequence_labeling_forward.1} parent=1 // pred_check_branch
      %218 = sbr.rel (0) target = $region93
    $region92: #{sequence_labeling_forward.1} parent=1 // pred_region
      %219 = dma.done [#allocation11], 32
    $region93: #{sequence_labeling_forward.1} parent=1 // pred_fallthru
      _
    // Predicated region
    $region94: #{sequence_labeling_forward.1} parent=1 // pred_check
      _
    $region95: #{sequence_labeling_forward.1} parent=1 // pred_check_branch
      %221 = sbr.rel (0) target = $region97
    $region96: #{sequence_labeling_forward.1} parent=1 // pred_region
      %222 = dma.done [#allocation14], 8192
    $region97: #{sequence_labeling_forward.1} parent=1 // pred_fallthru
      _
    // Predicated region
    $region98: #{sequence_labeling_forward.1} parent=1 // pred_check
      _
    $region99: #{sequence_labeling_forward.1} parent=1 // pred_check_branch
      %224 = sbr.rel (0) target = $region101
    $region100: #{sequence_labeling_forward.1} parent=1 // pred_region
      %225 = dma.done [#allocation14], 128
    $region101: #{sequence_labeling_forward.1} parent=1 // pred_fallthru
      _
    // Predicated region
    $region102: #{sequence_labeling_forward.1} parent=1 // pred_check
      _
    $region103: #{sequence_labeling_forward.1} parent=1 // pred_check_branch
      %227 = sbr.rel (0) target = $region105
    $region104: #{sequence_labeling_forward.1} parent=1 // pred_region
      %228 = dma.done [#allocation17], 8192
    $region105: #{sequence_labeling_forward.1} parent=1 // pred_fallthru
      _
    // Predicated region
    $region106: #{sequence_labeling_forward.1} parent=1 // pred_check
      _
    $region107: #{sequence_labeling_forward.1} parent=1 // pred_check_branch
      %230 = sbr.rel (0) target = $region109
    $region108: #{sequence_labeling_forward.1} parent=1 // pred_region
      %231 = dma.done [#allocation17], 32
    $region109: #{sequence_labeling_forward.1} parent=1 // pred_fallthru
      _
    // Predicated region
    $region110: #{sequence_labeling_forward.1} parent=1 // pred_check
      _
    $region111: #{sequence_labeling_forward.1} parent=1 // pred_check_branch
      %233 = sbr.rel (0) target = $region113
    $region112: #{sequence_labeling_forward.1} parent=1 // pred_region
      %234 = dma.done [#allocation20], 32
    $region113: #{sequence_labeling_forward.1} parent=1 // pred_fallthru
      _
    // Predicated region
    $region114: #{sequence_labeling_forward.1} parent=1 // pred_check
      _
    $region115: #{sequence_labeling_forward.1} parent=1 // pred_check_branch
      %236 = sbr.rel (0) target = $region117
    $region116: #{sequence_labeling_forward.1} parent=1 // pred_region
      %237 = dma.done [#allocation20], 32
    $region117: #{sequence_labeling_forward.1} parent=1 // pred_fallthru
      _
    // Predicated region
    $region118: #{sequence_labeling_forward.1} parent=1 // pred_check
      _
    $region119: #{sequence_labeling_forward.1} parent=1 // pred_check_branch
      %239 = sbr.rel (0) target = $region121
    $region120: #{sequence_labeling_forward.1} parent=1 // pred_region
      %240 = dma.done [#allocation23], 16
    $region121: #{sequence_labeling_forward.1} parent=1 // pred_fallthru
      _
    %v242 = vld [vmem:[%s0] sm:$0xff]
    %v243 = vld [vmem:[%s0 + $0x8] sm:$0xff]
    %v244 = vld [vmem:[%s0 + $0x10] sm:$0xff]
    %v245 = vld [vmem:[%s0 + $0x18] sm:$0xff]
    %v246 = vld [vmem:[#allocation2] sm:$0xff]
    %v247 = vld [vmem:[#allocation2 + $0x8] sm:$0xff]
    %v248 = vld [vmem:[#allocation2 + $0x10] sm:$0xff]
    %v249 = vld [vmem:[#allocation2 + $0x18] sm:$0xff]
    %v250 = vld [vmem:[#allocation2 + $0x20] sm:$0xff]
    %v251 = vld [vmem:[#allocation2 + $0x28] sm:$0xff]
    %v252 = vld [vmem:[#allocation2 + $0x30] sm:$0xff]
    %v253 = vld [vmem:[#allocation2 + $0x38] sm:$0xff]
    %v254 = vld [vmem:[#allocation2 + $0x40] sm:$0xff]
    %v255 = vld [vmem:[#allocation2 + $0x48] sm:$0xff]
    %v256 = vld [vmem:[#allocation2 + $0x50] sm:$0xff]
    %v257 = vld [vmem:[#allocation2 + $0x58] sm:$0xff]
    %v258 = vld [vmem:[#allocation2 + $0x60] sm:$0xff]
    %v259 = vld [vmem:[#allocation2 + $0x68] sm:$0xff]
    %v260 = vld [vmem:[#allocation2 + $0x70] sm:$0xff]
    %v261 = vld [vmem:[#allocation2 + $0x78] sm:$0xff]
    %v262 = vpack.c.bf16 %v243, %v242
    %v263 = vpack.c.bf16 %v245, %v244
    %v264 = vld [vmem:[#allocation4] sm:$0xff]
    %v265 = vld [vmem:[#allocation4 + $0x8] sm:$0xf]
    %v266 = vld [vmem:[#allocation4 + $0xc] sm:$0xff]
    %v267 = vld [vmem:[#allocation4 + $0x14] sm:$0xf]
    %v268 = vld [vmem:[#allocation4 + $0x18] sm:$0xff]
    %v269 = vld [vmem:[#allocation4 + $0x20] sm:$0xf]
    %v270 = vld [vmem:[#allocation4 + $0x24] sm:$0xff]
    %v271 = vld [vmem:[#allocation4 + $0x2c] sm:$0xf]
    %v272 = vld [vmem:[#allocation4 + $0x30] sm:$0xff]
    %v273 = vld [vmem:[#allocation4 + $0x38] sm:$0xf]
    %v274 = vld [vmem:[#allocation4 + $0x3c] sm:$0xff]
    %v275 = vld [vmem:[#allocation4 + $0x44] sm:$0xf]
    %v276 = vld [vmem:[#allocation4 + $0x48] sm:$0xff]
    %v277 = vld [vmem:[#allocation4 + $0x50] sm:$0xf]
    %v278 = vld [vmem:[#allocation4 + $0x54] sm:$0xff]
    %v279 = vld [vmem:[#allocation4 + $0x5c] sm:$0xf]
    %v280 = vld [vmem:[#allocation4 + $0x60] sm:$0xff]
    %v281 = vld [vmem:[#allocation4 + $0x68] sm:$0xf]
    %v282 = vld [vmem:[#allocation4 + $0x6c] sm:$0xff]
    %v283 = vld [vmem:[#allocation4 + $0x74] sm:$0xf]
    %v284 = vld [vmem:[#allocation4 + $0x78] sm:$0xff]
    %v285 = vld [vmem:[#allocation4 + $0x80] sm:$0xf]
    %v286 = vld [vmem:[#allocation4 + $0x84] sm:$0xff]
    %v287 = vld [vmem:[#allocation4 + $0x8c] sm:$0xf]
    %v288 = vld [vmem:[#allocation4 + $0x90] sm:$0xff]
    %v289 = vld [vmem:[#allocation4 + $0x98] sm:$0xf]
    %v290 = vld [vmem:[#allocation4 + $0x9c] sm:$0xff]
    %v291 = vld [vmem:[#allocation4 + $0xa4] sm:$0xf]
    %v292 = vld [vmem:[#allocation4 + $0xa8] sm:$0xff]
    %v293 = vld [vmem:[#allocation4 + $0xb0] sm:$0xf]
    %v294 = vld [vmem:[#allocation4 + $0xb4] sm:$0xff]
    %v295 = vld [vmem:[#allocation4 + $0xbc] sm:$0xf]
    %v296 = vld [vmem:[#allocation6] sm:$0x7]
    %v298 = vlaneseq
    %v299 = vshrl.u32 %v298, 7
    %v300 = vsub.s32 0, %v299
    %v301 = vrot.slane %v296, %v300
    %v302 = vlaneseq
    %v303 = vshrl.u32 %v302, 7
    %v304 = vsub.s32 1, %v303
    %v305 = vrot.slane %v296, %v304
    %v306 = vlaneseq
    %v307 = vshrl.u32 %v306, 7
    %v308 = vsub.s32 2, %v307
    %v309 = vrot.slane %v296, %v308
    %v345 = vunpack.c.l.b16 %v264
    %v346 = vunpack.c.h.b16 %v264
    %v347 = vunpack.c.l.b16 %v265
    %v348 = vunpack.c.l.b16 %v266
    %v349 = vunpack.c.h.b16 %v266
    %v350 = vunpack.c.l.b16 %v267
    %v351 = vunpack.c.l.b16 %v268
    %v352 = vunpack.c.h.b16 %v268
    %v353 = vunpack.c.l.b16 %v269
    %v354 = vunpack.c.l.b16 %v270
    %v355 = vunpack.c.h.b16 %v270
    %v356 = vunpack.c.l.b16 %v271
    %v357 = vunpack.c.l.b16 %v272
    %v358 = vunpack.c.h.b16 %v272
    %v359 = vunpack.c.l.b16 %v273
    %v360 = vunpack.c.l.b16 %v274
    %v361 = vunpack.c.h.b16 %v274
    %v362 = vunpack.c.l.b16 %v275
    %v363 = vunpack.c.l.b16 %v276
    %v364 = vunpack.c.h.b16 %v276
    %v365 = vunpack.c.l.b16 %v277
    %v366 = vunpack.c.l.b16 %v278
    %v367 = vunpack.c.h.b16 %v278
    %v368 = vunpack.c.l.b16 %v279
    %v369 = vunpack.c.l.b16 %v280
    %v370 = vunpack.c.h.b16 %v280
    %v371 = vunpack.c.l.b16 %v281
    %v372 = vunpack.c.l.b16 %v282
    %v373 = vunpack.c.h.b16 %v282
    %v374 = vunpack.c.l.b16 %v283
    %v375 = vunpack.c.l.b16 %v284
    %v376 = vunpack.c.h.b16 %v284
    %v377 = vunpack.c.l.b16 %v285
    %v378 = vunpack.c.l.b16 %v286
    %v379 = vunpack.c.h.b16 %v286
    %v380 = vunpack.c.l.b16 %v287
    %v381 = vunpack.c.l.b16 %v288
    %v382 = vunpack.c.h.b16 %v288
    %v383 = vunpack.c.l.b16 %v289
    %v384 = vunpack.c.l.b16 %v290
    %v385 = vunpack.c.h.b16 %v290
    %v386 = vunpack.c.l.b16 %v291
    %v387 = vunpack.c.l.b16 %v292
    %v388 = vunpack.c.h.b16 %v292
    %v389 = vunpack.c.l.b16 %v293
    %v390 = vunpack.c.l.b16 %v294
    %v391 = vunpack.c.h.b16 %v294
    %v392 = vunpack.c.l.b16 %v295
    %v393 = vpack.c.b16 %v348, %v345
    %v394 = vpack.c.b16 %v349, %v346
    %v395 = vpack.c.b16 %v350, %v347
    %v396 = vpack.c.b16 %v354, %v351
    %v397 = vpack.c.b16 %v355, %v352
    %v398 = vpack.c.b16 %v356, %v353
    %v399 = vpack.c.b16 %v360, %v357
    %v400 = vpack.c.b16 %v361, %v358
    %v401 = vpack.c.b16 %v362, %v359
    %v402 = vpack.c.b16 %v366, %v363
    %v403 = vpack.c.b16 %v367, %v364
    %v404 = vpack.c.b16 %v368, %v365
    %v405 = vpack.c.b16 %v372, %v369
    %v406 = vpack.c.b16 %v373, %v370
    %v407 = vpack.c.b16 %v374, %v371
    %v408 = vpack.c.b16 %v378, %v375
    %v409 = vpack.c.b16 %v379, %v376
    %v410 = vpack.c.b16 %v380, %v377
    %v411 = vpack.c.b16 %v384, %v381
    %v412 = vpack.c.b16 %v385, %v382
    %v413 = vpack.c.b16 %v386, %v383
    %v414 = vpack.c.b16 %v390, %v387
    %v415 = vpack.c.b16 %v391, %v388
    %v416 = vpack.c.b16 %v392, %v389
    %441 = vmatprep.subr.bf16.mxu0 %v415
    %442 = vmatpush1.bf16.msra.mxu0 %v414
    %443 = vmatprep.subr.bf16.mxu0 %v412
    %444 = vmatpush1.bf16.msra.mxu0 %v411
    %445 = vmatprep.subr.bf16.mxu0 %v409
    %446 = vmatpush1.bf16.msra.mxu0 %v408
    %447 = vmatprep.subr.bf16.mxu0 %v406
    %448 = vmatpush1.bf16.msra.mxu0 %v405
    %449 = vmatprep.subr.bf16.mxu0 %v403
    %450 = vmatpush1.bf16.msra.mxu0 %v402
    %451 = vmatprep.subr.bf16.mxu0 %v400
    %452 = vmatpush1.bf16.msra.mxu0 %v399
    %453 = vmatprep.subr.bf16.mxu0 %v397
    %454 = vmatpush1.bf16.msra.mxu0 %v396
    %455 = vmatprep.subr.bf16.mxu0 %v394
    %456 = vmatpush1.bf16.msra.mxu0 %v393
    %457 = vmatprep.subr.bf16.mxu0 0
    %458 = vmatpush2.bf16.msra.mxu0 0
    %459 = vmatprep.subr.bf16.mxu0 0
    %460 = vmatpush2.bf16.msra.mxu0 0
    %461 = vmatprep.subr.bf16.mxu0 0
    %462 = vmatpush2.bf16.msra.mxu0 0
    %463 = vmatprep.subr.bf16.mxu0 0
    %464 = vmatpush2.bf16.msra.mxu0 0
    %465 = vmatprep.subr.bf16.mxu0 0
    %466 = vmatpush2.bf16.msra.mxu0 0
    %467 = vmatprep.subr.bf16.mxu0 0
    %468 = vmatpush2.bf16.msra.mxu0 0
    %469 = vmatprep.subr.bf16.mxu0 0
    %470 = vmatpush2.bf16.msra.mxu0 0
    %471 = vmatprep.subr.bf16.mxu0 0
    %472 = vmatpush2.bf16.msra.mxu0 0
    %473 = vmatprep.mubr.bf16.mxu0 0
    %474 = vmatmul.mubr.bf16.gmra.mxu0 %v262
    %v475 = vpop.f32.mrf.mxu0
    %v476 = vadd.f32 %v301, %v475
    %v477 = vpop.f32.mrf.mxu0
    %v478 = vadd.f32 %v305, %v477
    %v479 = vpop.f32.mrf.mxu0
    %v480 = vadd.f32 %v301, %v479
    %v481 = vpop.f32.mrf.mxu0
    %v482 = vadd.f32 %v305, %v481
    %483 = vmatprep.mubr.bf16.mxu0 0
    %484 = vmatmul.mubr.bf16.gmra.mxu0 %v263
    %v485 = vpop.f32.mrf.mxu0
    %v486 = vadd.f32 %v301, %v485
    %v487 = vpop.f32.mrf.mxu0
    %v488 = vadd.f32 %v305, %v487
    %v489 = vpop.f32.mrf.mxu0
    %v490 = vadd.f32 %v301, %v489
    %v491 = vpop.f32.mrf.mxu0
    %v492 = vadd.f32 %v305, %v491
    %493 = vdwg.mxu0
    %494 = vmatprep.subr.bf16.mxu0 0
    %495 = vmatpush1.bf16.msra.mxu0 %v416
    %496 = vmatprep.subr.bf16.mxu0 0
    %497 = vmatpush1.bf16.msra.mxu0 %v413
    %498 = vmatprep.subr.bf16.mxu0 0
    %499 = vmatpush1.bf16.msra.mxu0 %v410
    %500 = vmatprep.subr.bf16.mxu0 0
    %501 = vmatpush1.bf16.msra.mxu0 %v407
    %502 = vmatprep.subr.bf16.mxu0 0
    %503 = vmatpush1.bf16.msra.mxu0 %v404
    %504 = vmatprep.subr.bf16.mxu0 0
    %505 = vmatpush1.bf16.msra.mxu0 %v401
    %506 = vmatprep.subr.bf16.mxu0 0
    %507 = vmatpush1.bf16.msra.mxu0 %v398
    %508 = vmatprep.subr.bf16.mxu0 0
    %509 = vmatpush1.bf16.msra.mxu0 %v395
    %510 = vmatprep.subr.bf16.mxu0 0
    %511 = vmatpush2.bf16.msra.mxu0 0
    %512 = vmatprep.subr.bf16.mxu0 0
    %513 = vmatpush2.bf16.msra.mxu0 0
    %514 = vmatprep.subr.bf16.mxu0 0
    %515 = vmatpush2.bf16.msra.mxu0 0
    %516 = vmatprep.subr.bf16.mxu0 0
    %517 = vmatpush2.bf16.msra.mxu0 0
    %518 = vmatprep.subr.bf16.mxu0 0
    %519 = vmatpush2.bf16.msra.mxu0 0
    %520 = vmatprep.subr.bf16.mxu0 0
    %521 = vmatpush2.bf16.msra.mxu0 0
    %522 = vmatprep.subr.bf16.mxu0 0
    %523 = vmatpush2.bf16.msra.mxu0 0
    %524 = vmatprep.subr.bf16.mxu0 0
    %525 = vmatpush2.bf16.msra.mxu0 0
    %526 = vmatprep.mubr.bf16.mxu0 0
    %527 = vmatmul.mubr.bf16.gmra.mxu0 %v262
    %v528 = vpop.f32.mrf.mxu0
    %v529 = vadd.f32 %v309, %v528
    %v530 = vpop.f32.mrf.mxu0
    %v531 = vpop.f32.mrf.mxu0
    %v532 = vadd.f32 %v309, %v531
    %v533 = vpop.f32.mrf.mxu0
    %534 = vmatprep.mubr.bf16.mxu0 0
    %535 = vmatmul.mubr.bf16.gmra.mxu0 %v263
    %v536 = vpop.f32.mrf.mxu0
    %v537 = vadd.f32 %v309, %v536
    %v538 = vpop.f32.mrf.mxu0
    %v539 = vpop.f32.mrf.mxu0
    %v540 = vadd.f32 %v309, %v539
    %v541 = vpop.f32.mrf.mxu0
    %542 = vdwg.mxu0
    %v547 = vcombine.high %v476, %v476
    %v549 = vunpack.c.l.s4 1966171168
    %v550 = vunpack.c.0.s8 %v549
    %v551 = vlaneseq
    %v552 = vshrl.u32 %v551, 7
    %v553 = vsub.s32 %v550, %v552
    %v554 = vrot.slane %v476, %v553
    %v556 = vunpack.c.l.s4 1966171168
    %v557 = vunpack.c.0.s8 %v556
    %v558 = vlaneseq
    %v559 = vshrl.u32 %v558, 7
    %v560 = vsub.s32 %v557, %v559
    %v561 = vrot.slane %v547, %v560
    %v562 = vcombine.high %v554, %v554
    %v563 = vcombine.high %v561, %v561
    %v565 = vunpack.c.l.s4 1966171168
    %v566 = vunpack.c.0.s8 %v565
    %v567 = vlaneseq
    %v568 = vshrl.u32 %v567, 7
    %v569 = vsub.s32 %v566, %v568
    %v570 = vrot.slane %v554, %v569
    %v572 = vunpack.c.l.s4 1966171168
    %v573 = vunpack.c.0.s8 %v572
    %v574 = vlaneseq
    %v575 = vshrl.u32 %v574, 7
    %v576 = vsub.s32 %v573, %v575
    %v577 = vrot.slane %v561, %v576
    %v579 = vunpack.c.l.s4 1966171168
    %v580 = vunpack.c.0.s8 %v579
    %v581 = vlaneseq
    %v582 = vshrl.u32 %v581, 7
    %v583 = vsub.s32 %v580, %v582
    %v584 = vrot.slane %v562, %v583
    %v586 = vunpack.c.l.s4 1966171168
    %v587 = vunpack.c.0.s8 %v586
    %v588 = vlaneseq
    %v589 = vshrl.u32 %v588, 7
    %v590 = vsub.s32 %v587, %v589
    %v591 = vrot.slane %v563, %v590
    %v592 = vcombine.high %v570, %v570
    %v593 = vcombine.high %v577, %v577
    %v594 = vcombine.high %v584, %v584
    %v595 = vcombine.high %v591, %v591
    %v596 = vcombine.high %v480, %v480
    %v598 = vunpack.c.l.s4 1966171168
    %v599 = vunpack.c.0.s8 %v598
    %v600 = vlaneseq
    %v601 = vshrl.u32 %v600, 7
    %v602 = vsub.s32 %v599, %v601
    %v603 = vrot.slane %v480, %v602
    %v605 = vunpack.c.l.s4 1966171168
    %v606 = vunpack.c.0.s8 %v605
    %v607 = vlaneseq
    %v608 = vshrl.u32 %v607, 7
    %v609 = vsub.s32 %v606, %v608
    %v610 = vrot.slane %v596, %v609
    %v611 = vcombine.high %v603, %v603
    %v612 = vcombine.high %v610, %v610
    %v614 = vunpack.c.l.s4 1966171168
    %v615 = vunpack.c.0.s8 %v614
    %v616 = vlaneseq
    %v617 = vshrl.u32 %v616, 7
    %v618 = vsub.s32 %v615, %v617
    %v619 = vrot.slane %v603, %v618
    %v621 = vunpack.c.l.s4 1966171168
    %v622 = vunpack.c.0.s8 %v621
    %v623 = vlaneseq
    %v624 = vshrl.u32 %v623, 7
    %v625 = vsub.s32 %v622, %v624
    %v626 = vrot.slane %v610, %v625
    %v628 = vunpack.c.l.s4 1966171168
    %v629 = vunpack.c.0.s8 %v628
    %v630 = vlaneseq
    %v631 = vshrl.u32 %v630, 7
    %v632 = vsub.s32 %v629, %v631
    %v633 = vrot.slane %v611, %v632
    %v635 = vunpack.c.l.s4 1966171168
    %v636 = vunpack.c.0.s8 %v635
    %v637 = vlaneseq
    %v638 = vshrl.u32 %v637, 7
    %v639 = vsub.s32 %v636, %v638
    %v640 = vrot.slane %v612, %v639
    %v641 = vcombine.high %v619, %v619
    %v642 = vcombine.high %v626, %v626
    %v643 = vcombine.high %v633, %v633
    %v644 = vcombine.high %v640, %v640
    %v645 = vcombine.high %v486, %v486
    %v647 = vunpack.c.l.s4 1966171168
    %v648 = vunpack.c.0.s8 %v647
    %v649 = vlaneseq
    %v650 = vshrl.u32 %v649, 7
    %v651 = vsub.s32 %v648, %v650
    %v652 = vrot.slane %v486, %v651
    %v654 = vunpack.c.l.s4 1966171168
    %v655 = vunpack.c.0.s8 %v654
    %v656 = vlaneseq
    %v657 = vshrl.u32 %v656, 7
    %v658 = vsub.s32 %v655, %v657
    %v659 = vrot.slane %v645, %v658
    %v660 = vcombine.high %v652, %v652
    %v661 = vcombine.high %v659, %v659
    %v663 = vunpack.c.l.s4 1966171168
    %v664 = vunpack.c.0.s8 %v663
    %v665 = vlaneseq
    %v666 = vshrl.u32 %v665, 7
    %v667 = vsub.s32 %v664, %v666
    %v668 = vrot.slane %v652, %v667
    %v670 = vunpack.c.l.s4 1966171168
    %v671 = vunpack.c.0.s8 %v670
    %v672 = vlaneseq
    %v673 = vshrl.u32 %v672, 7
    %v674 = vsub.s32 %v671, %v673
    %v675 = vrot.slane %v659, %v674
    %v677 = vunpack.c.l.s4 1966171168
    %v678 = vunpack.c.0.s8 %v677
    %v679 = vlaneseq
    %v680 = vshrl.u32 %v679, 7
    %v681 = vsub.s32 %v678, %v680
    %v682 = vrot.slane %v660, %v681
    %v684 = vunpack.c.l.s4 1966171168
    %v685 = vunpack.c.0.s8 %v684
    %v686 = vlaneseq
    %v687 = vshrl.u32 %v686, 7
    %v688 = vsub.s32 %v685, %v687
    %v689 = vrot.slane %v661, %v688
    %v690 = vcombine.high %v668, %v668
    %v691 = vcombine.high %v675, %v675
    %v692 = vcombine.high %v682, %v682
    %v693 = vcombine.high %v689, %v689
    %v694 = vcombine.high %v490, %v490
    %v696 = vunpack.c.l.s4 1966171168
    %v697 = vunpack.c.0.s8 %v696
    %v698 = vlaneseq
    %v699 = vshrl.u32 %v698, 7
    %v700 = vsub.s32 %v697, %v699
    %v701 = vrot.slane %v490, %v700
    %v703 = vunpack.c.l.s4 1966171168
    %v704 = vunpack.c.0.s8 %v703
    %v705 = vlaneseq
    %v706 = vshrl.u32 %v705, 7
    %v707 = vsub.s32 %v704, %v706
    %v708 = vrot.slane %v694, %v707
    %v709 = vcombine.high %v701, %v701
    %v710 = vcombine.high %v708, %v708
    %v712 = vunpack.c.l.s4 1966171168
    %v713 = vunpack.c.0.s8 %v712
    %v714 = vlaneseq
    %v715 = vshrl.u32 %v714, 7
    %v716 = vsub.s32 %v713, %v715
    %v717 = vrot.slane %v701, %v716
    %v719 = vunpack.c.l.s4 1966171168
    %v720 = vunpack.c.0.s8 %v719
    %v721 = vlaneseq
    %v722 = vshrl.u32 %v721, 7
    %v723 = vsub.s32 %v720, %v722
    %v724 = vrot.slane %v708, %v723
    %v726 = vunpack.c.l.s4 1966171168
    %v727 = vunpack.c.0.s8 %v726
    %v728 = vlaneseq
    %v729 = vshrl.u32 %v728, 7
    %v730 = vsub.s32 %v727, %v729
    %v731 = vrot.slane %v709, %v730
    %v733 = vunpack.c.l.s4 1966171168
    %v734 = vunpack.c.0.s8 %v733
    %v735 = vlaneseq
    %v736 = vshrl.u32 %v735, 7
    %v737 = vsub.s32 %v734, %v736
    %v738 = vrot.slane %v710, %v737
    %v739 = vcombine.high %v717, %v717
    %v740 = vcombine.high %v724, %v724
    %v741 = vcombine.high %v731, %v731
    %v742 = vcombine.high %v738, %v738
    %v747 = vcombine.high %v478, %v478
    %v748 = vcombine.high %v482, %v482
    %v749 = vcombine.high %v488, %v488
    %v750 = vcombine.high %v492, %v492
    %v755 = vlaneseq
    %v756 = vshrl.u32 %v755, 7
    %v757 = vsub.s32 0, %v756
    %v758 = vrot.slane %v570, %v757
    %v759 = vlaneseq
    %v760 = vshrl.u32 %v759, 7
    %v761 = vsub.s32 0, %v760
    %v762 = vrot.slane %v584, %v761
    %v763 = vlaneseq
    %v764 = vshrl.u32 %v763, 7
    %v765 = vsub.s32 0, %v764
    %v766 = vrot.slane %v592, %v765
    %v767 = vlaneseq
    %v768 = vshrl.u32 %v767, 7
    %v769 = vsub.s32 0, %v768
    %v770 = vrot.slane %v594, %v769
    %v771 = vlaneseq
    %v772 = vshrl.u32 %v771, 7
    %v773 = vsub.s32 0, %v772
    %v774 = vrot.slane %v577, %v773
    %v775 = vlaneseq
    %v776 = vshrl.u32 %v775, 7
    %v777 = vsub.s32 0, %v776
    %v778 = vrot.slane %v591, %v777
    %v779 = vlaneseq
    %v780 = vshrl.u32 %v779, 7
    %v781 = vsub.s32 0, %v780
    %v782 = vrot.slane %v593, %v781
    %v783 = vlaneseq
    %v784 = vshrl.u32 %v783, 7
    %v785 = vsub.s32 0, %v784
    %v786 = vrot.slane %v595, %v785
    %v787 = vlaneseq
    %v788 = vshrl.u32 %v787, 7
    %v789 = vsub.s32 0, %v788
    %v790 = vrot.slane %v619, %v789
    %v791 = vlaneseq
    %v792 = vshrl.u32 %v791, 7
    %v793 = vsub.s32 0, %v792
    %v794 = vrot.slane %v633, %v793
    %v795 = vlaneseq
    %v796 = vshrl.u32 %v795, 7
    %v797 = vsub.s32 0, %v796
    %v798 = vrot.slane %v641, %v797
    %v799 = vlaneseq
    %v800 = vshrl.u32 %v799, 7
    %v801 = vsub.s32 0, %v800
    %v802 = vrot.slane %v643, %v801
    %v803 = vlaneseq
    %v804 = vshrl.u32 %v803, 7
    %v805 = vsub.s32 0, %v804
    %v806 = vrot.slane %v626, %v805
    %v807 = vlaneseq
    %v808 = vshrl.u32 %v807, 7
    %v809 = vsub.s32 0, %v808
    %v810 = vrot.slane %v640, %v809
    %v811 = vlaneseq
    %v812 = vshrl.u32 %v811, 7
    %v813 = vsub.s32 0, %v812
    %v814 = vrot.slane %v642, %v813
    %v815 = vlaneseq
    %v816 = vshrl.u32 %v815, 7
    %v817 = vsub.s32 0, %v816
    %v818 = vrot.slane %v644, %v817
    %v819 = vlaneseq
    %v820 = vshrl.u32 %v819, 7
    %v821 = vsub.s32 0, %v820
    %v822 = vrot.slane %v668, %v821
    %v823 = vlaneseq
    %v824 = vshrl.u32 %v823, 7
    %v825 = vsub.s32 0, %v824
    %v826 = vrot.slane %v682, %v825
    %v827 = vlaneseq
    %v828 = vshrl.u32 %v827, 7
    %v829 = vsub.s32 0, %v828
    %v830 = vrot.slane %v690, %v829
    %v831 = vlaneseq
    %v832 = vshrl.u32 %v831, 7
    %v833 = vsub.s32 0, %v832
    %v834 = vrot.slane %v692, %v833
    %v835 = vlaneseq
    %v836 = vshrl.u32 %v835, 7
    %v837 = vsub.s32 0, %v836
    %v838 = vrot.slane %v675, %v837
    %v839 = vlaneseq
    %v840 = vshrl.u32 %v839, 7
    %v841 = vsub.s32 0, %v840
    %v842 = vrot.slane %v689, %v841
    %v843 = vlaneseq
    %v844 = vshrl.u32 %v843, 7
    %v845 = vsub.s32 0, %v844
    %v846 = vrot.slane %v691, %v845
    %v847 = vlaneseq
    %v848 = vshrl.u32 %v847, 7
    %v849 = vsub.s32 0, %v848
    %v850 = vrot.slane %v693, %v849
    %v851 = vlaneseq
    %v852 = vshrl.u32 %v851, 7
    %v853 = vsub.s32 0, %v852
    %v854 = vrot.slane %v717, %v853
    %v855 = vlaneseq
    %v856 = vshrl.u32 %v855, 7
    %v857 = vsub.s32 0, %v856
    %v858 = vrot.slane %v731, %v857
    %v859 = vlaneseq
    %v860 = vshrl.u32 %v859, 7
    %v861 = vsub.s32 0, %v860
    %v862 = vrot.slane %v739, %v861
    %v863 = vlaneseq
    %v864 = vshrl.u32 %v863, 7
    %v865 = vsub.s32 0, %v864
    %v866 = vrot.slane %v741, %v865
    %v867 = vlaneseq
    %v868 = vshrl.u32 %v867, 7
    %v869 = vsub.s32 0, %v868
    %v870 = vrot.slane %v724, %v869
    %v871 = vlaneseq
    %v872 = vshrl.u32 %v871, 7
    %v873 = vsub.s32 0, %v872
    %v874 = vrot.slane %v738, %v873
    %v875 = vlaneseq
    %v876 = vshrl.u32 %v875, 7
    %v877 = vsub.s32 0, %v876
    %v878 = vrot.slane %v740, %v877
    %v879 = vlaneseq
    %v880 = vshrl.u32 %v879, 7
    %v881 = vsub.s32 0, %v880
    %v882 = vrot.slane %v742, %v881
    %v915 = vmul.f32 %v758, %v478
    %v916 = vmul.f32 %v762, %v478
    %v917 = vmul.f32 %v766, %v478
    %v918 = vmul.f32 %v770, %v478
    %v919 = vmul.f32 %v774, %v747
    %v920 = vmul.f32 %v778, %v747
    %v921 = vmul.f32 %v782, %v747
    %v922 = vmul.f32 %v786, %v747
    %v923 = vmul.f32 %v790, %v482
    %v924 = vmul.f32 %v794, %v482
    %v925 = vmul.f32 %v798, %v482
    %v926 = vmul.f32 %v802, %v482
    %v927 = vmul.f32 %v806, %v748
    %v928 = vmul.f32 %v810, %v748
    %v929 = vmul.f32 %v814, %v748
    %v930 = vmul.f32 %v818, %v748
    %v931 = vmul.f32 %v822, %v488
    %v932 = vmul.f32 %v826, %v488
    %v933 = vmul.f32 %v830, %v488
    %v934 = vmul.f32 %v834, %v488
    %v935 = vmul.f32 %v838, %v749
    %v936 = vmul.f32 %v842, %v749
    %v937 = vmul.f32 %v846, %v749
    %v938 = vmul.f32 %v850, %v749
    %v939 = vmul.f32 %v854, %v492
    %v940 = vmul.f32 %v858, %v492
    %v941 = vmul.f32 %v862, %v492
    %v942 = vmul.f32 %v866, %v492
    %v943 = vmul.f32 %v870, %v750
    %v944 = vmul.f32 %v874, %v750
    %v945 = vmul.f32 %v878, %v750
    %v946 = vmul.f32 %v882, %v750
    %v979 = vcombine.low %v915, %v916
    %v980 = vcombine.low %v917, %v918
    %v981 = vcombine.low %v919, %v920
    %v982 = vcombine.low %v921, %v922
    %v983 = vcombine.low %v923, %v924
    %v984 = vcombine.low %v925, %v926
    %v985 = vcombine.low %v927, %v928
    %v986 = vcombine.low %v929, %v930
    %v987 = vcombine.low %v931, %v932
    %v988 = vcombine.low %v933, %v934
    %v989 = vcombine.low %v935, %v936
    %v990 = vcombine.low %v937, %v938
    %v991 = vcombine.low %v939, %v940
    %v992 = vcombine.low %v941, %v942
    %v993 = vcombine.low %v943, %v944
    %v994 = vcombine.low %v945, %v946
    %1011 = vmatprep.subr.mxu0 0.0
    %1012 = vmatpush1.msra.mxu0 %v261
    %1013 = vmatprep.subr.mxu0 0.0
    %1014 = vmatpush1.msra.mxu0 %v260
    %1015 = vmatprep.subr.mxu0 0.0
    %1016 = vmatpush1.msra.mxu0 %v259
    %1017 = vmatprep.subr.mxu0 0.0
    %1018 = vmatpush1.msra.mxu0 %v258
    %1019 = vmatprep.subr.mxu0 0.0
    %1020 = vmatpush1.msra.mxu0 %v257
    %1021 = vmatprep.subr.mxu0 0.0
    %1022 = vmatpush1.msra.mxu0 %v256
    %1023 = vmatprep.subr.mxu0 0.0
    %1024 = vmatpush1.msra.mxu0 %v255
    %1025 = vmatprep.subr.mxu0 0.0
    %1026 = vmatpush1.msra.mxu0 %v254
    %1027 = vmatprep.subr.mxu0 0.0
    %1028 = vmatpush1.msra.mxu0 %v253
    %1029 = vmatprep.subr.mxu0 0.0
    %1030 = vmatpush1.msra.mxu0 %v252
    %1031 = vmatprep.subr.mxu0 0.0
    %1032 = vmatpush1.msra.mxu0 %v251
    %1033 = vmatprep.subr.mxu0 0.0
    %1034 = vmatpush1.msra.mxu0 %v250
    %1035 = vmatprep.subr.mxu0 0.0
    %1036 = vmatpush1.msra.mxu0 %v249
    %1037 = vmatprep.subr.mxu0 0.0
    %1038 = vmatpush1.msra.mxu0 %v248
    %1039 = vmatprep.subr.mxu0 0.0
    %1040 = vmatpush1.msra.mxu0 %v247
    %1041 = vmatprep.subr.mxu0 0.0
    %1042 = vmatpush1.msra.mxu0 %v246
    %1043 = vmatprep.subr.mxu0 0.0
    %1044 = vmatpush2.msra.mxu0 0.0
    %1045 = vmatprep.subr.mxu0 0.0
    %1046 = vmatpush2.msra.mxu0 0.0
    %1047 = vmatprep.subr.mxu0 0.0
    %1048 = vmatpush2.msra.mxu0 0.0
    %1049 = vmatprep.subr.mxu0 0.0
    %1050 = vmatpush2.msra.mxu0 0.0
    %1051 = vmatprep.subr.mxu0 0.0
    %1052 = vmatpush2.msra.mxu0 0.0
    %1053 = vmatprep.subr.mxu0 0.0
    %1054 = vmatpush2.msra.mxu0 0.0
    %1055 = vmatprep.subr.mxu0 0.0
    %1056 = vmatpush2.msra.mxu0 0.0
    %1057 = vmatprep.subr.mxu0 0.0
    %1058 = vmatpush2.msra.mxu0 0.0
    %1059 = vmatprep.subr.mxu0 0.0
    %1060 = vmatpush2.msra.mxu0 0.0
    %1061 = vmatprep.subr.mxu0 0.0
    %1062 = vmatpush2.msra.mxu0 0.0
    %1063 = vmatprep.subr.mxu0 0.0
    %1064 = vmatpush2.msra.mxu0 0.0
    %1065 = vmatprep.subr.mxu0 0.0
    %1066 = vmatpush2.msra.mxu0 0.0
    %1067 = vmatprep.subr.mxu0 0.0
    %1068 = vmatpush2.msra.mxu0 0.0
    %1069 = vmatprep.subr.mxu0 0.0
    %1070 = vmatpush2.msra.mxu0 0.0
    %1071 = vmatprep.subr.mxu0 0.0
    %1072 = vmatpush2.msra.mxu0 0.0
    %1073 = vmatprep.subr.mxu0 0.0
    %1074 = vmatpush2.msra.mxu0 0.0
    %1075 = vmatprep.mubr.f32.mxu0 0.0
    %1076 = vmatmul.mubr.f32.gmra.mxu0 %v979
    %v1077 = vpop.f32.mrf.mxu0
    %v1078 = vadd.f32 0.0, %v1077
    %v1079 = vpop.f32.mrf.mxu0
    %1080 = vmatprep.mubr.f32.mxu0 0.0
    %1081 = vmatmul.mubr.f32.gmra.mxu0 %v980
    %v1082 = vpop.f32.mrf.mxu0
    %v1083 = vadd.f32 0.0, %v1082
    %v1084 = vpop.f32.mrf.mxu0
    %1085 = vmatprep.mubr.f32.mxu0 0.0
    %1086 = vmatmul.mubr.f32.gmra.mxu0 %v981
    %v1087 = vpop.f32.mrf.mxu0
    %v1088 = vadd.f32 0.0, %v1087
    %v1089 = vpop.f32.mrf.mxu0
    %1090 = vmatprep.mubr.f32.mxu0 0.0
    %1091 = vmatmul.mubr.f32.gmra.mxu0 %v982
    %v1092 = vpop.f32.mrf.mxu0
    %v1093 = vadd.f32 0.0, %v1092
    %v1094 = vpop.f32.mrf.mxu0
    %1095 = vmatprep.mubr.f32.mxu0 0.0
    %1096 = vmatmul.mubr.f32.gmra.mxu0 %v983
    %v1097 = vpop.f32.mrf.mxu0
    %v1098 = vadd.f32 0.0, %v1097
    %v1099 = vpop.f32.mrf.mxu0
    %1100 = vmatprep.mubr.f32.mxu0 0.0
    %1101 = vmatmul.mubr.f32.gmra.mxu0 %v984
    %v1102 = vpop.f32.mrf.mxu0
    %v1103 = vadd.f32 0.0, %v1102
    %v1104 = vpop.f32.mrf.mxu0
    %1105 = vmatprep.mubr.f32.mxu0 0.0
    %1106 = vmatmul.mubr.f32.gmra.mxu0 %v985
    %v1107 = vpop.f32.mrf.mxu0
    %v1108 = vadd.f32 0.0, %v1107
    %v1109 = vpop.f32.mrf.mxu0
    %1110 = vmatprep.mubr.f32.mxu0 0.0
    %1111 = vmatmul.mubr.f32.gmra.mxu0 %v986
    %v1112 = vpop.f32.mrf.mxu0
    %v1113 = vadd.f32 0.0, %v1112
    %v1114 = vpop.f32.mrf.mxu0
    %1115 = vmatprep.mubr.f32.mxu0 0.0
    %1116 = vmatmul.mubr.f32.gmra.mxu0 %v987
    %v1117 = vpop.f32.mrf.mxu0
    %v1118 = vadd.f32 0.0, %v1117
    %v1119 = vpop.f32.mrf.mxu0
    %1120 = vmatprep.mubr.f32.mxu0 0.0
    %1121 = vmatmul.mubr.f32.gmra.mxu0 %v988
    %v1122 = vpop.f32.mrf.mxu0
    %v1123 = vadd.f32 0.0, %v1122
    %v1124 = vpop.f32.mrf.mxu0
    %1125 = vmatprep.mubr.f32.mxu0 0.0
    %1126 = vmatmul.mubr.f32.gmra.mxu0 %v989
    %v1127 = vpop.f32.mrf.mxu0
    %v1128 = vadd.f32 0.0, %v1127
    %v1129 = vpop.f32.mrf.mxu0
    %1130 = vmatprep.mubr.f32.mxu0 0.0
    %1131 = vmatmul.mubr.f32.gmra.mxu0 %v990
    %v1132 = vpop.f32.mrf.mxu0
    %v1133 = vadd.f32 0.0, %v1132
    %v1134 = vpop.f32.mrf.mxu0
    %1135 = vmatprep.mubr.f32.mxu0 0.0
    %1136 = vmatmul.mubr.f32.gmra.mxu0 %v991
    %v1137 = vpop.f32.mrf.mxu0
    %v1138 = vadd.f32 0.0, %v1137
    %v1139 = vpop.f32.mrf.mxu0
    %1140 = vmatprep.mubr.f32.mxu0 0.0
    %1141 = vmatmul.mubr.f32.gmra.mxu0 %v992
    %v1142 = vpop.f32.mrf.mxu0
    %v1143 = vadd.f32 0.0, %v1142
    %v1144 = vpop.f32.mrf.mxu0
    %1145 = vmatprep.mubr.f32.mxu0 0.0
    %1146 = vmatmul.mubr.f32.gmra.mxu0 %v993
    %v1147 = vpop.f32.mrf.mxu0
    %v1148 = vadd.f32 0.0, %v1147
    %v1149 = vpop.f32.mrf.mxu0
    %1150 = vmatprep.mubr.f32.mxu0 0.0
    %1151 = vmatmul.mubr.f32.gmra.mxu0 %v994
    %v1152 = vpop.f32.mrf.mxu0
    %v1153 = vadd.f32 0.0, %v1152
    %v1154 = vpop.f32.mrf.mxu0
    %1155 = vdwg.mxu0
    %v1172 = vcombine.high %v1078, %v1078
    %v1173 = vcombine.high %v1083, %v1083
    %v1174 = vcombine.high %v1088, %v1088
    %v1175 = vcombine.high %v1093, %v1093
    %v1176 = vcombine.high %v1098, %v1098
    %v1177 = vcombine.high %v1103, %v1103
    %v1178 = vcombine.high %v1108, %v1108
    %v1179 = vcombine.high %v1113, %v1113
    %v1180 = vcombine.high %v1118, %v1118
    %v1181 = vcombine.high %v1123, %v1123
    %v1182 = vcombine.high %v1128, %v1128
    %v1183 = vcombine.high %v1133, %v1133
    %v1184 = vcombine.high %v1138, %v1138
    %v1185 = vcombine.high %v1143, %v1143
    %v1186 = vcombine.high %v1148, %v1148
    %v1187 = vcombine.high %v1153, %v1153
    %v1204 = vmul.f32 %v1078, 0.17677669
    %v1205 = vmul.f32 %v1172, 0.17677669
    %v1206 = vmul.f32 %v1083, 0.17677669
    %v1207 = vmul.f32 %v1173, 0.17677669
    %v1208 = vmul.f32 %v1088, 0.17677669
    %v1209 = vmul.f32 %v1174, 0.17677669
    %v1210 = vmul.f32 %v1093, 0.17677669
    %v1211 = vmul.f32 %v1175, 0.17677669
    %v1212 = vmul.f32 %v1098, 0.17677669
    %v1213 = vmul.f32 %v1176, 0.17677669
    %v1214 = vmul.f32 %v1103, 0.17677669
    %v1215 = vmul.f32 %v1177, 0.17677669
    %v1216 = vmul.f32 %v1108, 0.17677669
    %v1217 = vmul.f32 %v1178, 0.17677669
    %v1218 = vmul.f32 %v1113, 0.17677669
    %v1219 = vmul.f32 %v1179, 0.17677669
    %v1220 = vmul.f32 %v1118, 0.17677669
    %v1221 = vmul.f32 %v1180, 0.17677669
    %v1222 = vmul.f32 %v1123, 0.17677669
    %v1223 = vmul.f32 %v1181, 0.17677669
    %v1224 = vmul.f32 %v1128, 0.17677669
    %v1225 = vmul.f32 %v1182, 0.17677669
    %v1226 = vmul.f32 %v1133, 0.17677669
    %v1227 = vmul.f32 %v1183, 0.17677669
    %v1228 = vmul.f32 %v1138, 0.17677669
    %v1229 = vmul.f32 %v1184, 0.17677669
    %v1230 = vmul.f32 %v1143, 0.17677669
    %v1231 = vmul.f32 %v1185, 0.17677669
    %v1232 = vmul.f32 %v1148, 0.17677669
    %v1233 = vmul.f32 %v1186, 0.17677669
    %v1234 = vmul.f32 %v1153, 0.17677669
    %v1235 = vmul.f32 %v1187, 0.17677669
    %vm1236 = vcmask 1043456
    %v1237 = vsel %vm1236, %v1204, -inf
    %v1238 = vrot.slane %v1237, 4
    %v1239 = vmax.f32 %v1237, %v1238
    %v1240 = vrot.slane %v1239, 2
    %v1241 = vmax.f32 %v1239, %v1240
    %v1242 = vrot.slane %v1241, 1
    %v1243 = vmax.f32 %v1241, %v1242
    %v1244 = vsel %vm1236, %v1205, -inf
    %v1245 = vrot.slane %v1244, 4
    %v1246 = vmax.f32 %v1244, %v1245
    %v1247 = vrot.slane %v1246, 2
    %v1248 = vmax.f32 %v1246, %v1247
    %v1249 = vrot.slane %v1248, 1
    %v1250 = vmax.f32 %v1248, %v1249
    %v1251 = vsel %vm1236, %v1206, -inf
    %v1252 = vrot.slane %v1251, 4
    %v1253 = vmax.f32 %v1251, %v1252
    %v1254 = vrot.slane %v1253, 2
    %v1255 = vmax.f32 %v1253, %v1254
    %v1256 = vrot.slane %v1255, 1
    %v1257 = vmax.f32 %v1255, %v1256
    %v1258 = vsel %vm1236, %v1207, -inf
    %v1259 = vrot.slane %v1258, 4
    %v1260 = vmax.f32 %v1258, %v1259
    %v1261 = vrot.slane %v1260, 2
    %v1262 = vmax.f32 %v1260, %v1261
    %v1263 = vrot.slane %v1262, 1
    %v1264 = vmax.f32 %v1262, %v1263
    %v1265 = vsel %vm1236, %v1208, -inf
    %v1266 = vrot.slane %v1265, 4
    %v1267 = vmax.f32 %v1265, %v1266
    %v1268 = vrot.slane %v1267, 2
    %v1269 = vmax.f32 %v1267, %v1268
    %v1270 = vrot.slane %v1269, 1
    %v1271 = vmax.f32 %v1269, %v1270
    %v1272 = vsel %vm1236, %v1209, -inf
    %v1273 = vrot.slane %v1272, 4
    %v1274 = vmax.f32 %v1272, %v1273
    %v1275 = vrot.slane %v1274, 2
    %v1276 = vmax.f32 %v1274, %v1275
    %v1277 = vrot.slane %v1276, 1
    %v1278 = vmax.f32 %v1276, %v1277
    %v1279 = vsel %vm1236, %v1210, -inf
    %v1280 = vrot.slane %v1279, 4
    %v1281 = vmax.f32 %v1279, %v1280
    %v1282 = vrot.slane %v1281, 2
    %v1283 = vmax.f32 %v1281, %v1282
    %v1284 = vrot.slane %v1283, 1
    %v1285 = vmax.f32 %v1283, %v1284
    %v1286 = vsel %vm1236, %v1211, -inf
    %v1287 = vrot.slane %v1286, 4
    %v1288 = vmax.f32 %v1286, %v1287
    %v1289 = vrot.slane %v1288, 2
    %v1290 = vmax.f32 %v1288, %v1289
    %v1291 = vrot.slane %v1290, 1
    %v1292 = vmax.f32 %v1290, %v1291
    %v1293 = vsel %vm1236, %v1212, -inf
    %v1294 = vrot.slane %v1293, 4
    %v1295 = vmax.f32 %v1293, %v1294
    %v1296 = vrot.slane %v1295, 2
    %v1297 = vmax.f32 %v1295, %v1296
    %v1298 = vrot.slane %v1297, 1
    %v1299 = vmax.f32 %v1297, %v1298
    %v1300 = vsel %vm1236, %v1213, -inf
    %v1301 = vrot.slane %v1300, 4
    %v1302 = vmax.f32 %v1300, %v1301
    %v1303 = vrot.slane %v1302, 2
    %v1304 = vmax.f32 %v1302, %v1303
    %v1305 = vrot.slane %v1304, 1
    %v1306 = vmax.f32 %v1304, %v1305
    %v1307 = vsel %vm1236, %v1214, -inf
    %v1308 = vrot.slane %v1307, 4
    %v1309 = vmax.f32 %v1307, %v1308
    %v1310 = vrot.slane %v1309, 2
    %v1311 = vmax.f32 %v1309, %v1310
    %v1312 = vrot.slane %v1311, 1
    %v1313 = vmax.f32 %v1311, %v1312
    %v1314 = vsel %vm1236, %v1215, -inf
    %v1315 = vrot.slane %v1314, 4
    %v1316 = vmax.f32 %v1314, %v1315
    %v1317 = vrot.slane %v1316, 2
    %v1318 = vmax.f32 %v1316, %v1317
    %v1319 = vrot.slane %v1318, 1
    %v1320 = vmax.f32 %v1318, %v1319
    %v1321 = vsel %vm1236, %v1216, -inf
    %v1322 = vrot.slane %v1321, 4
    %v1323 = vmax.f32 %v1321, %v1322
    %v1324 = vrot.slane %v1323, 2
    %v1325 = vmax.f32 %v1323, %v1324
    %v1326 = vrot.slane %v1325, 1
    %v1327 = vmax.f32 %v1325, %v1326
    %v1328 = vsel %vm1236, %v1217, -inf
    %v1329 = vrot.slane %v1328, 4
    %v1330 = vmax.f32 %v1328, %v1329
    %v1331 = vrot.slane %v1330, 2
    %v1332 = vmax.f32 %v1330, %v1331
    %v1333 = vrot.slane %v1332, 1
    %v1334 = vmax.f32 %v1332, %v1333
    %v1335 = vsel %vm1236, %v1218, -inf
    %v1336 = vrot.slane %v1335, 4
    %v1337 = vmax.f32 %v1335, %v1336
    %v1338 = vrot.slane %v1337, 2
    %v1339 = vmax.f32 %v1337, %v1338
    %v1340 = vrot.slane %v1339, 1
    %v1341 = vmax.f32 %v1339, %v1340
    %v1342 = vsel %vm1236, %v1219, -inf
    %v1343 = vrot.slane %v1342, 4
    %v1344 = vmax.f32 %v1342, %v1343
    %v1345 = vrot.slane %v1344, 2
    %v1346 = vmax.f32 %v1344, %v1345
    %v1347 = vrot.slane %v1346, 1
    %v1348 = vmax.f32 %v1346, %v1347
    %v1349 = vsel %vm1236, %v1220, -inf
    %v1350 = vrot.slane %v1349, 4
    %v1351 = vmax.f32 %v1349, %v1350
    %v1352 = vrot.slane %v1351, 2
    %v1353 = vmax.f32 %v1351, %v1352
    %v1354 = vrot.slane %v1353, 1
    %v1355 = vmax.f32 %v1353, %v1354
    %v1356 = vsel %vm1236, %v1221, -inf
    %v1357 = vrot.slane %v1356, 4
    %v1358 = vmax.f32 %v1356, %v1357
    %v1359 = vrot.slane %v1358, 2
    %v1360 = vmax.f32 %v1358, %v1359
    %v1361 = vrot.slane %v1360, 1
    %v1362 = vmax.f32 %v1360, %v1361
    %v1363 = vsel %vm1236, %v1222, -inf
    %v1364 = vrot.slane %v1363, 4
    %v1365 = vmax.f32 %v1363, %v1364
    %v1366 = vrot.slane %v1365, 2
    %v1367 = vmax.f32 %v1365, %v1366
    %v1368 = vrot.slane %v1367, 1
    %v1369 = vmax.f32 %v1367, %v1368
    %v1370 = vsel %vm1236, %v1223, -inf
    %v1371 = vrot.slane %v1370, 4
    %v1372 = vmax.f32 %v1370, %v1371
    %v1373 = vrot.slane %v1372, 2
    %v1374 = vmax.f32 %v1372, %v1373
    %v1375 = vrot.slane %v1374, 1
    %v1376 = vmax.f32 %v1374, %v1375
    %v1377 = vsel %vm1236, %v1224, -inf
    %v1378 = vrot.slane %v1377, 4
    %v1379 = vmax.f32 %v1377, %v1378
    %v1380 = vrot.slane %v1379, 2
    %v1381 = vmax.f32 %v1379, %v1380
    %v1382 = vrot.slane %v1381, 1
    %v1383 = vmax.f32 %v1381, %v1382
    %v1384 = vsel %vm1236, %v1225, -inf
    %v1385 = vrot.slane %v1384, 4
    %v1386 = vmax.f32 %v1384, %v1385
    %v1387 = vrot.slane %v1386, 2
    %v1388 = vmax.f32 %v1386, %v1387
    %v1389 = vrot.slane %v1388, 1
    %v1390 = vmax.f32 %v1388, %v1389
    %v1391 = vsel %vm1236, %v1226, -inf
    %v1392 = vrot.slane %v1391, 4
    %v1393 = vmax.f32 %v1391, %v1392
    %v1394 = vrot.slane %v1393, 2
    %v1395 = vmax.f32 %v1393, %v1394
    %v1396 = vrot.slane %v1395, 1
    %v1397 = vmax.f32 %v1395, %v1396
    %v1398 = vsel %vm1236, %v1227, -inf
    %v1399 = vrot.slane %v1398, 4
    %v1400 = vmax.f32 %v1398, %v1399
    %v1401 = vrot.slane %v1400, 2
    %v1402 = vmax.f32 %v1400, %v1401
    %v1403 = vrot.slane %v1402, 1
    %v1404 = vmax.f32 %v1402, %v1403
    %v1405 = vsel %vm1236, %v1228, -inf
    %v1406 = vrot.slane %v1405, 4
    %v1407 = vmax.f32 %v1405, %v1406
    %v1408 = vrot.slane %v1407, 2
    %v1409 = vmax.f32 %v1407, %v1408
    %v1410 = vrot.slane %v1409, 1
    %v1411 = vmax.f32 %v1409, %v1410
    %v1412 = vsel %vm1236, %v1229, -inf
    %v1413 = vrot.slane %v1412, 4
    %v1414 = vmax.f32 %v1412, %v1413
    %v1415 = vrot.slane %v1414, 2
    %v1416 = vmax.f32 %v1414, %v1415
    %v1417 = vrot.slane %v1416, 1
    %v1418 = vmax.f32 %v1416, %v1417
    %v1419 = vsel %vm1236, %v1230, -inf
    %v1420 = vrot.slane %v1419, 4
    %v1421 = vmax.f32 %v1419, %v1420
    %v1422 = vrot.slane %v1421, 2
    %v1423 = vmax.f32 %v1421, %v1422
    %v1424 = vrot.slane %v1423, 1
    %v1425 = vmax.f32 %v1423, %v1424
    %v1426 = vsel %vm1236, %v1231, -inf
    %v1427 = vrot.slane %v1426, 4
    %v1428 = vmax.f32 %v1426, %v1427
    %v1429 = vrot.slane %v1428, 2
    %v1430 = vmax.f32 %v1428, %v1429
    %v1431 = vrot.slane %v1430, 1
    %v1432 = vmax.f32 %v1430, %v1431
    %v1433 = vsel %vm1236, %v1232, -inf
    %v1434 = vrot.slane %v1433, 4
    %v1435 = vmax.f32 %v1433, %v1434
    %v1436 = vrot.slane %v1435, 2
    %v1437 = vmax.f32 %v1435, %v1436
    %v1438 = vrot.slane %v1437, 1
    %v1439 = vmax.f32 %v1437, %v1438
    %v1440 = vsel %vm1236, %v1233, -inf
    %v1441 = vrot.slane %v1440, 4
    %v1442 = vmax.f32 %v1440, %v1441
    %v1443 = vrot.slane %v1442, 2
    %v1444 = vmax.f32 %v1442, %v1443
    %v1445 = vrot.slane %v1444, 1
    %v1446 = vmax.f32 %v1444, %v1445
    %v1447 = vsel %vm1236, %v1234, -inf
    %v1448 = vrot.slane %v1447, 4
    %v1449 = vmax.f32 %v1447, %v1448
    %v1450 = vrot.slane %v1449, 2
    %v1451 = vmax.f32 %v1449, %v1450
    %v1452 = vrot.slane %v1451, 1
    %v1453 = vmax.f32 %v1451, %v1452
    %v1454 = vsel %vm1236, %v1235, -inf
    %v1455 = vrot.slane %v1454, 4
    %v1456 = vmax.f32 %v1454, %v1455
    %v1457 = vrot.slane %v1456, 2
    %v1458 = vmax.f32 %v1456, %v1457
    %v1459 = vrot.slane %v1458, 1
    %v1460 = vmax.f32 %v1458, %v1459
    %v1461 = vsub.f32 %v1204, %v1243
    %v1462 = vsub.f32 %v1205, %v1250
    %v1463 = vsub.f32 %v1206, %v1257
    %v1464 = vsub.f32 %v1207, %v1264
    %v1465 = vsub.f32 %v1208, %v1271
    %v1466 = vsub.f32 %v1209, %v1278
    %v1467 = vsub.f32 %v1210, %v1285
    %v1468 = vsub.f32 %v1211, %v1292
    %v1469 = vsub.f32 %v1212, %v1299
    %v1470 = vsub.f32 %v1213, %v1306
    %v1471 = vsub.f32 %v1214, %v1313
    %v1472 = vsub.f32 %v1215, %v1320
    %v1473 = vsub.f32 %v1216, %v1327
    %v1474 = vsub.f32 %v1217, %v1334
    %v1475 = vsub.f32 %v1218, %v1341
    %v1476 = vsub.f32 %v1219, %v1348
    %v1477 = vsub.f32 %v1220, %v1355
    %v1478 = vsub.f32 %v1221, %v1362
    %v1479 = vsub.f32 %v1222, %v1369
    %v1480 = vsub.f32 %v1223, %v1376
    %v1481 = vsub.f32 %v1224, %v1383
    %v1482 = vsub.f32 %v1225, %v1390
    %v1483 = vsub.f32 %v1226, %v1397
    %v1484 = vsub.f32 %v1227, %v1404
    %v1485 = vsub.f32 %v1228, %v1411
    %v1486 = vsub.f32 %v1229, %v1418
    %v1487 = vsub.f32 %v1230, %v1425
    %v1488 = vsub.f32 %v1231, %v1432
    %v1489 = vsub.f32 %v1232, %v1439
    %v1490 = vsub.f32 %v1233, %v1446
    %v1491 = vsub.f32 %v1234, %v1453
    %v1492 = vsub.f32 %v1235, %v1460
    %v1493 = vmul.f32 %v1461, 1.442695
    %v1494 = vpow.pop %v1493
    %v1495 = vmul.f32 %v1462, 1.442695
    %v1496 = vpow.pop %v1495
    %v1497 = vmul.f32 %v1463, 1.442695
    %v1498 = vpow.pop %v1497
    %v1499 = vmul.f32 %v1464, 1.442695
    %v1500 = vpow.pop %v1499
    %v1501 = vmul.f32 %v1465, 1.442695
    %v1502 = vpow.pop %v1501
    %v1503 = vmul.f32 %v1466, 1.442695
    %v1504 = vpow.pop %v1503
    %v1505 = vmul.f32 %v1467, 1.442695
    %v1506 = vpow.pop %v1505
    %v1507 = vmul.f32 %v1468, 1.442695
    %v1508 = vpow.pop %v1507
    %v1509 = vmul.f32 %v1469, 1.442695
    %v1510 = vpow.pop %v1509
    %v1511 = vmul.f32 %v1470, 1.442695
    %v1512 = vpow.pop %v1511
    %v1513 = vmul.f32 %v1471, 1.442695
    %v1514 = vpow.pop %v1513
    %v1515 = vmul.f32 %v1472, 1.442695
    %v1516 = vpow.pop %v1515
    %v1517 = vmul.f32 %v1473, 1.442695
    %v1518 = vpow.pop %v1517
    %v1519 = vmul.f32 %v1474, 1.442695
    %v1520 = vpow.pop %v1519
    %v1521 = vmul.f32 %v1475, 1.442695
    %v1522 = vpow.pop %v1521
    %v1523 = vmul.f32 %v1476, 1.442695
    %v1524 = vpow.pop %v1523
    %v1525 = vmul.f32 %v1477, 1.442695
    %v1526 = vpow.pop %v1525
    %v1527 = vmul.f32 %v1478, 1.442695
    %v1528 = vpow.pop %v1527
    %v1529 = vmul.f32 %v1479, 1.442695
    %v1530 = vpow.pop %v1529
    %v1531 = vmul.f32 %v1480, 1.442695
    %v1532 = vpow.pop %v1531
    %v1533 = vmul.f32 %v1481, 1.442695
    %v1534 = vpow.pop %v1533
    %v1535 = vmul.f32 %v1482, 1.442695
    %v1536 = vpow.pop %v1535
    %v1537 = vmul.f32 %v1483, 1.442695
    %v1538 = vpow.pop %v1537
    %v1539 = vmul.f32 %v1484, 1.442695
    %v1540 = vpow.pop %v1539
    %v1541 = vmul.f32 %v1485, 1.442695
    %v1542 = vpow.pop %v1541
    %v1543 = vmul.f32 %v1486, 1.442695
    %v1544 = vpow.pop %v1543
    %v1545 = vmul.f32 %v1487, 1.442695
    %v1546 = vpow.pop %v1545
    %v1547 = vmul.f32 %v1488, 1.442695
    %v1548 = vpow.pop %v1547
    %v1549 = vmul.f32 %v1489, 1.442695
    %v1550 = vpow.pop %v1549
    %v1551 = vmul.f32 %v1490, 1.442695
    %v1552 = vpow.pop %v1551
    %v1553 = vmul.f32 %v1491, 1.442695
    %v1554 = vpow.pop %v1553
    %v1555 = vmul.f32 %v1492, 1.442695
    %v1556 = vpow.pop %v1555
    %v1557 = vsel %vm1236, %v1494, 0.0
    %v1558 = vrot.slane %v1557, 4
    %v1559 = vadd.f32 %v1557, %v1558
    %v1560 = vrot.slane %v1559, 2
    %v1561 = vadd.f32 %v1559, %v1560
    %v1562 = vrot.slane %v1561, 1
    %v1563 = vadd.f32 %v1561, %v1562
    %v1564 = vsel %vm1236, %v1496, 0.0
    %v1565 = vrot.slane %v1564, 4
    %v1566 = vadd.f32 %v1564, %v1565
    %v1567 = vrot.slane %v1566, 2
    %v1568 = vadd.f32 %v1566, %v1567
    %v1569 = vrot.slane %v1568, 1
    %v1570 = vadd.f32 %v1568, %v1569
    %v1571 = vsel %vm1236, %v1498, 0.0
    %v1572 = vrot.slane %v1571, 4
    %v1573 = vadd.f32 %v1571, %v1572
    %v1574 = vrot.slane %v1573, 2
    %v1575 = vadd.f32 %v1573, %v1574
    %v1576 = vrot.slane %v1575, 1
    %v1577 = vadd.f32 %v1575, %v1576
    %v1578 = vsel %vm1236, %v1500, 0.0
    %v1579 = vrot.slane %v1578, 4
    %v1580 = vadd.f32 %v1578, %v1579
    %v1581 = vrot.slane %v1580, 2
    %v1582 = vadd.f32 %v1580, %v1581
    %v1583 = vrot.slane %v1582, 1
    %v1584 = vadd.f32 %v1582, %v1583
    %v1585 = vsel %vm1236, %v1502, 0.0
    %v1586 = vrot.slane %v1585, 4
    %v1587 = vadd.f32 %v1585, %v1586
    %v1588 = vrot.slane %v1587, 2
    %v1589 = vadd.f32 %v1587, %v1588
    %v1590 = vrot.slane %v1589, 1
    %v1591 = vadd.f32 %v1589, %v1590
    %v1592 = vsel %vm1236, %v1504, 0.0
    %v1593 = vrot.slane %v1592, 4
    %v1594 = vadd.f32 %v1592, %v1593
    %v1595 = vrot.slane %v1594, 2
    %v1596 = vadd.f32 %v1594, %v1595
    %v1597 = vrot.slane %v1596, 1
    %v1598 = vadd.f32 %v1596, %v1597
    %v1599 = vsel %vm1236, %v1506, 0.0
    %v1600 = vrot.slane %v1599, 4
    %v1601 = vadd.f32 %v1599, %v1600
    %v1602 = vrot.slane %v1601, 2
    %v1603 = vadd.f32 %v1601, %v1602
    %v1604 = vrot.slane %v1603, 1
    %v1605 = vadd.f32 %v1603, %v1604
    %v1606 = vsel %vm1236, %v1508, 0.0
    %v1607 = vrot.slane %v1606, 4
    %v1608 = vadd.f32 %v1606, %v1607
    %v1609 = vrot.slane %v1608, 2
    %v1610 = vadd.f32 %v1608, %v1609
    %v1611 = vrot.slane %v1610, 1
    %v1612 = vadd.f32 %v1610, %v1611
    %v1613 = vsel %vm1236, %v1510, 0.0
    %v1614 = vrot.slane %v1613, 4
    %v1615 = vadd.f32 %v1613, %v1614
    %v1616 = vrot.slane %v1615, 2
    %v1617 = vadd.f32 %v1615, %v1616
    %v1618 = vrot.slane %v1617, 1
    %v1619 = vadd.f32 %v1617, %v1618
    %v1620 = vsel %vm1236, %v1512, 0.0
    %v1621 = vrot.slane %v1620, 4
    %v1622 = vadd.f32 %v1620, %v1621
    %v1623 = vrot.slane %v1622, 2
    %v1624 = vadd.f32 %v1622, %v1623
    %v1625 = vrot.slane %v1624, 1
    %v1626 = vadd.f32 %v1624, %v1625
    %v1627 = vsel %vm1236, %v1514, 0.0
    %v1628 = vrot.slane %v1627, 4
    %v1629 = vadd.f32 %v1627, %v1628
    %v1630 = vrot.slane %v1629, 2
    %v1631 = vadd.f32 %v1629, %v1630
    %v1632 = vrot.slane %v1631, 1
    %v1633 = vadd.f32 %v1631, %v1632
    %v1634 = vsel %vm1236, %v1516, 0.0
    %v1635 = vrot.slane %v1634, 4
    %v1636 = vadd.f32 %v1634, %v1635
    %v1637 = vrot.slane %v1636, 2
    %v1638 = vadd.f32 %v1636, %v1637
    %v1639 = vrot.slane %v1638, 1
    %v1640 = vadd.f32 %v1638, %v1639
    %v1641 = vsel %vm1236, %v1518, 0.0
    %v1642 = vrot.slane %v1641, 4
    %v1643 = vadd.f32 %v1641, %v1642
    %v1644 = vrot.slane %v1643, 2
    %v1645 = vadd.f32 %v1643, %v1644
    %v1646 = vrot.slane %v1645, 1
    %v1647 = vadd.f32 %v1645, %v1646
    %v1648 = vsel %vm1236, %v1520, 0.0
    %v1649 = vrot.slane %v1648, 4
    %v1650 = vadd.f32 %v1648, %v1649
    %v1651 = vrot.slane %v1650, 2
    %v1652 = vadd.f32 %v1650, %v1651
    %v1653 = vrot.slane %v1652, 1
    %v1654 = vadd.f32 %v1652, %v1653
    %v1655 = vsel %vm1236, %v1522, 0.0
    %v1656 = vrot.slane %v1655, 4
    %v1657 = vadd.f32 %v1655, %v1656
    %v1658 = vrot.slane %v1657, 2
    %v1659 = vadd.f32 %v1657, %v1658
    %v1660 = vrot.slane %v1659, 1
    %v1661 = vadd.f32 %v1659, %v1660
    %v1662 = vsel %vm1236, %v1524, 0.0
    %v1663 = vrot.slane %v1662, 4
    %v1664 = vadd.f32 %v1662, %v1663
    %v1665 = vrot.slane %v1664, 2
    %v1666 = vadd.f32 %v1664, %v1665
    %v1667 = vrot.slane %v1666, 1
    %v1668 = vadd.f32 %v1666, %v1667
    %v1669 = vsel %vm1236, %v1526, 0.0
    %v1670 = vrot.slane %v1669, 4
    %v1671 = vadd.f32 %v1669, %v1670
    %v1672 = vrot.slane %v1671, 2
    %v1673 = vadd.f32 %v1671, %v1672
    %v1674 = vrot.slane %v1673, 1
    %v1675 = vadd.f32 %v1673, %v1674
    %v1676 = vsel %vm1236, %v1528, 0.0
    %v1677 = vrot.slane %v1676, 4
    %v1678 = vadd.f32 %v1676, %v1677
    %v1679 = vrot.slane %v1678, 2
    %v1680 = vadd.f32 %v1678, %v1679
    %v1681 = vrot.slane %v1680, 1
    %v1682 = vadd.f32 %v1680, %v1681
    %v1683 = vsel %vm1236, %v1530, 0.0
    %v1684 = vrot.slane %v1683, 4
    %v1685 = vadd.f32 %v1683, %v1684
    %v1686 = vrot.slane %v1685, 2
    %v1687 = vadd.f32 %v1685, %v1686
    %v1688 = vrot.slane %v1687, 1
    %v1689 = vadd.f32 %v1687, %v1688
    %v1690 = vsel %vm1236, %v1532, 0.0
    %v1691 = vrot.slane %v1690, 4
    %v1692 = vadd.f32 %v1690, %v1691
    %v1693 = vrot.slane %v1692, 2
    %v1694 = vadd.f32 %v1692, %v1693
    %v1695 = vrot.slane %v1694, 1
    %v1696 = vadd.f32 %v1694, %v1695
    %v1697 = vsel %vm1236, %v1534, 0.0
    %v1698 = vrot.slane %v1697, 4
    %v1699 = vadd.f32 %v1697, %v1698
    %v1700 = vrot.slane %v1699, 2
    %v1701 = vadd.f32 %v1699, %v1700
    %v1702 = vrot.slane %v1701, 1
    %v1703 = vadd.f32 %v1701, %v1702
    %v1704 = vsel %vm1236, %v1536, 0.0
    %v1705 = vrot.slane %v1704, 4
    %v1706 = vadd.f32 %v1704, %v1705
    %v1707 = vrot.slane %v1706, 2
    %v1708 = vadd.f32 %v1706, %v1707
    %v1709 = vrot.slane %v1708, 1
    %v1710 = vadd.f32 %v1708, %v1709
    %v1711 = vsel %vm1236, %v1538, 0.0
    %v1712 = vrot.slane %v1711, 4
    %v1713 = vadd.f32 %v1711, %v1712
    %v1714 = vrot.slane %v1713, 2
    %v1715 = vadd.f32 %v1713, %v1714
    %v1716 = vrot.slane %v1715, 1
    %v1717 = vadd.f32 %v1715, %v1716
    %v1718 = vsel %vm1236, %v1540, 0.0
    %v1719 = vrot.slane %v1718, 4
    %v1720 = vadd.f32 %v1718, %v1719
    %v1721 = vrot.slane %v1720, 2
    %v1722 = vadd.f32 %v1720, %v1721
    %v1723 = vrot.slane %v1722, 1
    %v1724 = vadd.f32 %v1722, %v1723
    %v1725 = vsel %vm1236, %v1542, 0.0
    %v1726 = vrot.slane %v1725, 4
    %v1727 = vadd.f32 %v1725, %v1726
    %v1728 = vrot.slane %v1727, 2
    %v1729 = vadd.f32 %v1727, %v1728
    %v1730 = vrot.slane %v1729, 1
    %v1731 = vadd.f32 %v1729, %v1730
    %v1732 = vsel %vm1236, %v1544, 0.0
    %v1733 = vrot.slane %v1732, 4
    %v1734 = vadd.f32 %v1732, %v1733
    %v1735 = vrot.slane %v1734, 2
    %v1736 = vadd.f32 %v1734, %v1735
    %v1737 = vrot.slane %v1736, 1
    %v1738 = vadd.f32 %v1736, %v1737
    %v1739 = vsel %vm1236, %v1546, 0.0
    %v1740 = vrot.slane %v1739, 4
    %v1741 = vadd.f32 %v1739, %v1740
    %v1742 = vrot.slane %v1741, 2
    %v1743 = vadd.f32 %v1741, %v1742
    %v1744 = vrot.slane %v1743, 1
    %v1745 = vadd.f32 %v1743, %v1744
    %v1746 = vsel %vm1236, %v1548, 0.0
    %v1747 = vrot.slane %v1746, 4
    %v1748 = vadd.f32 %v1746, %v1747
    %v1749 = vrot.slane %v1748, 2
    %v1750 = vadd.f32 %v1748, %v1749
    %v1751 = vrot.slane %v1750, 1
    %v1752 = vadd.f32 %v1750, %v1751
    %v1753 = vsel %vm1236, %v1550, 0.0
    %v1754 = vrot.slane %v1753, 4
    %v1755 = vadd.f32 %v1753, %v1754
    %v1756 = vrot.slane %v1755, 2
    %v1757 = vadd.f32 %v1755, %v1756
    %v1758 = vrot.slane %v1757, 1
    %v1759 = vadd.f32 %v1757, %v1758
    %v1760 = vsel %vm1236, %v1552, 0.0
    %v1761 = vrot.slane %v1760, 4
    %v1762 = vadd.f32 %v1760, %v1761
    %v1763 = vrot.slane %v1762, 2
    %v1764 = vadd.f32 %v1762, %v1763
    %v1765 = vrot.slane %v1764, 1
    %v1766 = vadd.f32 %v1764, %v1765
    %v1767 = vsel %vm1236, %v1554, 0.0
    %v1768 = vrot.slane %v1767, 4
    %v1769 = vadd.f32 %v1767, %v1768
    %v1770 = vrot.slane %v1769, 2
    %v1771 = vadd.f32 %v1769, %v1770
    %v1772 = vrot.slane %v1771, 1
    %v1773 = vadd.f32 %v1771, %v1772
    %v1774 = vsel %vm1236, %v1556, 0.0
    %v1775 = vrot.slane %v1774, 4
    %v1776 = vadd.f32 %v1774, %v1775
    %v1777 = vrot.slane %v1776, 2
    %v1778 = vadd.f32 %v1776, %v1777
    %v1779 = vrot.slane %v1778, 1
    %v1780 = vadd.f32 %v1778, %v1779
    %v1781 = vrcp.pop %v1563
    %v1782 = vrcp.pop %v1570
    %v1783 = vrcp.pop %v1577
    %v1784 = vrcp.pop %v1584
    %v1785 = vrcp.pop %v1591
    %v1786 = vrcp.pop %v1598
    %v1787 = vrcp.pop %v1605
    %v1788 = vrcp.pop %v1612
    %v1789 = vrcp.pop %v1619
    %v1790 = vrcp.pop %v1626
    %v1791 = vrcp.pop %v1633
    %v1792 = vrcp.pop %v1640
    %v1793 = vrcp.pop %v1647
    %v1794 = vrcp.pop %v1654
    %v1795 = vrcp.pop %v1661
    %v1796 = vrcp.pop %v1668
    %v1797 = vrcp.pop %v1675
    %v1798 = vrcp.pop %v1682
    %v1799 = vrcp.pop %v1689
    %v1800 = vrcp.pop %v1696
    %v1801 = vrcp.pop %v1703
    %v1802 = vrcp.pop %v1710
    %v1803 = vrcp.pop %v1717
    %v1804 = vrcp.pop %v1724
    %v1805 = vrcp.pop %v1731
    %v1806 = vrcp.pop %v1738
    %v1807 = vrcp.pop %v1745
    %v1808 = vrcp.pop %v1752
    %v1809 = vrcp.pop %v1759
    %v1810 = vrcp.pop %v1766
    %v1811 = vrcp.pop %v1773
    %v1812 = vrcp.pop %v1780
    %v1813 = vmul.f32 %v1494, %v1781
    %v1814 = vmul.f32 %v1496, %v1782
    %v1815 = vmul.f32 %v1498, %v1783
    %v1816 = vmul.f32 %v1500, %v1784
    %v1817 = vmul.f32 %v1502, %v1785
    %v1818 = vmul.f32 %v1504, %v1786
    %v1819 = vmul.f32 %v1506, %v1787
    %v1820 = vmul.f32 %v1508, %v1788
    %v1821 = vmul.f32 %v1510, %v1789
    %v1822 = vmul.f32 %v1512, %v1790
    %v1823 = vmul.f32 %v1514, %v1791
    %v1824 = vmul.f32 %v1516, %v1792
    %v1825 = vmul.f32 %v1518, %v1793
    %v1826 = vmul.f32 %v1520, %v1794
    %v1827 = vmul.f32 %v1522, %v1795
    %v1828 = vmul.f32 %v1524, %v1796
    %v1829 = vmul.f32 %v1526, %v1797
    %v1830 = vmul.f32 %v1528, %v1798
    %v1831 = vmul.f32 %v1530, %v1799
    %v1832 = vmul.f32 %v1532, %v1800
    %v1833 = vmul.f32 %v1534, %v1801
    %v1834 = vmul.f32 %v1536, %v1802
    %v1835 = vmul.f32 %v1538, %v1803
    %v1836 = vmul.f32 %v1540, %v1804
    %v1837 = vmul.f32 %v1542, %v1805
    %v1838 = vmul.f32 %v1544, %v1806
    %v1839 = vmul.f32 %v1546, %v1807
    %v1840 = vmul.f32 %v1548, %v1808
    %v1841 = vmul.f32 %v1550, %v1809
    %v1842 = vmul.f32 %v1552, %v1810
    %v1843 = vmul.f32 %v1554, %v1811
    %v1844 = vmul.f32 %v1556, %v1812
    %v1849 = vcombine.high %v529, %v529
    %v1850 = vcombine.high %v532, %v532
    %v1851 = vcombine.high %v537, %v537
    %v1852 = vcombine.high %v540, %v540
    %v1857 = vmul.f32 %v1813, %v529
    %v1858 = vmul.f32 %v1814, %v529
    %v1859 = vmul.f32 %v1815, %v529
    %v1860 = vmul.f32 %v1816, %v529
    %v1861 = vmul.f32 %v1817, %v1849
    %v1862 = vmul.f32 %v1818, %v1849
    %v1863 = vmul.f32 %v1819, %v1849
    %v1864 = vmul.f32 %v1820, %v1849
    %v1865 = vmul.f32 %v1821, %v532
    %v1866 = vmul.f32 %v1822, %v532
    %v1867 = vmul.f32 %v1823, %v532
    %v1868 = vmul.f32 %v1824, %v532
    %v1869 = vmul.f32 %v1825, %v1850
    %v1870 = vmul.f32 %v1826, %v1850
    %v1871 = vmul.f32 %v1827, %v1850
    %v1872 = vmul.f32 %v1828, %v1850
    %v1873 = vmul.f32 %v1829, %v537
    %v1874 = vmul.f32 %v1830, %v537
    %v1875 = vmul.f32 %v1831, %v537
    %v1876 = vmul.f32 %v1832, %v537
    %v1877 = vmul.f32 %v1833, %v1851
    %v1878 = vmul.f32 %v1834, %v1851
    %v1879 = vmul.f32 %v1835, %v1851
    %v1880 = vmul.f32 %v1836, %v1851
    %v1881 = vmul.f32 %v1837, %v540
    %v1882 = vmul.f32 %v1838, %v540
    %v1883 = vmul.f32 %v1839, %v540
    %v1884 = vmul.f32 %v1840, %v540
    %v1885 = vmul.f32 %v1841, %v1852
    %v1886 = vmul.f32 %v1842, %v1852
    %v1887 = vmul.f32 %v1843, %v1852
    %v1888 = vmul.f32 %v1844, %v1852
    %v1889 = vsel %vm1236, %v1857, 0.0
    %v1890 = vrot.slane %v1889, 4
    %v1891 = vadd.f32 %v1889, %v1890
    %v1892 = vrot.slane %v1891, 2
    %v1893 = vadd.f32 %v1891, %v1892
    %v1894 = vrot.slane %v1893, 1
    %v1895 = vadd.f32 %v1893, %v1894
    %v1896 = vsel %vm1236, %v1858, 0.0
    %v1897 = vrot.slane %v1896, 4
    %v1898 = vadd.f32 %v1896, %v1897
    %v1899 = vrot.slane %v1898, 2
    %v1900 = vadd.f32 %v1898, %v1899
    %v1901 = vrot.slane %v1900, 1
    %v1902 = vadd.f32 %v1900, %v1901
    %v1903 = vsel %vm1236, %v1859, 0.0
    %v1904 = vrot.slane %v1903, 4
    %v1905 = vadd.f32 %v1903, %v1904
    %v1906 = vrot.slane %v1905, 2
    %v1907 = vadd.f32 %v1905, %v1906
    %v1908 = vrot.slane %v1907, 1
    %v1909 = vadd.f32 %v1907, %v1908
    %v1910 = vsel %vm1236, %v1860, 0.0
    %v1911 = vrot.slane %v1910, 4
    %v1912 = vadd.f32 %v1910, %v1911
    %v1913 = vrot.slane %v1912, 2
    %v1914 = vadd.f32 %v1912, %v1913
    %v1915 = vrot.slane %v1914, 1
    %v1916 = vadd.f32 %v1914, %v1915
    %v1917 = vsel %vm1236, %v1861, 0.0
    %v1918 = vrot.slane %v1917, 4
    %v1919 = vadd.f32 %v1917, %v1918
    %v1920 = vrot.slane %v1919, 2
    %v1921 = vadd.f32 %v1919, %v1920
    %v1922 = vrot.slane %v1921, 1
    %v1923 = vadd.f32 %v1921, %v1922
    %v1924 = vsel %vm1236, %v1862, 0.0
    %v1925 = vrot.slane %v1924, 4
    %v1926 = vadd.f32 %v1924, %v1925
    %v1927 = vrot.slane %v1926, 2
    %v1928 = vadd.f32 %v1926, %v1927
    %v1929 = vrot.slane %v1928, 1
    %v1930 = vadd.f32 %v1928, %v1929
    %v1931 = vsel %vm1236, %v1863, 0.0
    %v1932 = vrot.slane %v1931, 4
    %v1933 = vadd.f32 %v1931, %v1932
    %v1934 = vrot.slane %v1933, 2
    %v1935 = vadd.f32 %v1933, %v1934
    %v1936 = vrot.slane %v1935, 1
    %v1937 = vadd.f32 %v1935, %v1936
    %v1938 = vsel %vm1236, %v1864, 0.0
    %v1939 = vrot.slane %v1938, 4
    %v1940 = vadd.f32 %v1938, %v1939
    %v1941 = vrot.slane %v1940, 2
    %v1942 = vadd.f32 %v1940, %v1941
    %v1943 = vrot.slane %v1942, 1
    %v1944 = vadd.f32 %v1942, %v1943
    %v1945 = vsel %vm1236, %v1865, 0.0
    %v1946 = vrot.slane %v1945, 4
    %v1947 = vadd.f32 %v1945, %v1946
    %v1948 = vrot.slane %v1947, 2
    %v1949 = vadd.f32 %v1947, %v1948
    %v1950 = vrot.slane %v1949, 1
    %v1951 = vadd.f32 %v1949, %v1950
    %v1952 = vsel %vm1236, %v1866, 0.0
    %v1953 = vrot.slane %v1952, 4
    %v1954 = vadd.f32 %v1952, %v1953
    %v1955 = vrot.slane %v1954, 2
    %v1956 = vadd.f32 %v1954, %v1955
    %v1957 = vrot.slane %v1956, 1
    %v1958 = vadd.f32 %v1956, %v1957
    %v1959 = vsel %vm1236, %v1867, 0.0
    %v1960 = vrot.slane %v1959, 4
    %v1961 = vadd.f32 %v1959, %v1960
    %v1962 = vrot.slane %v1961, 2
    %v1963 = vadd.f32 %v1961, %v1962
    %v1964 = vrot.slane %v1963, 1
    %v1965 = vadd.f32 %v1963, %v1964
    %v1966 = vsel %vm1236, %v1868, 0.0
    %v1967 = vrot.slane %v1966, 4
    %v1968 = vadd.f32 %v1966, %v1967
    %v1969 = vrot.slane %v1968, 2
    %v1970 = vadd.f32 %v1968, %v1969
    %v1971 = vrot.slane %v1970, 1
    %v1972 = vadd.f32 %v1970, %v1971
    %v1973 = vsel %vm1236, %v1869, 0.0
    %v1974 = vrot.slane %v1973, 4
    %v1975 = vadd.f32 %v1973, %v1974
    %v1976 = vrot.slane %v1975, 2
    %v1977 = vadd.f32 %v1975, %v1976
    %v1978 = vrot.slane %v1977, 1
    %v1979 = vadd.f32 %v1977, %v1978
    %v1980 = vsel %vm1236, %v1870, 0.0
    %v1981 = vrot.slane %v1980, 4
    %v1982 = vadd.f32 %v1980, %v1981
    %v1983 = vrot.slane %v1982, 2
    %v1984 = vadd.f32 %v1982, %v1983
    %v1985 = vrot.slane %v1984, 1
    %v1986 = vadd.f32 %v1984, %v1985
    %v1987 = vsel %vm1236, %v1871, 0.0
    %v1988 = vrot.slane %v1987, 4
    %v1989 = vadd.f32 %v1987, %v1988
    %v1990 = vrot.slane %v1989, 2
    %v1991 = vadd.f32 %v1989, %v1990
    %v1992 = vrot.slane %v1991, 1
    %v1993 = vadd.f32 %v1991, %v1992
    %v1994 = vsel %vm1236, %v1872, 0.0
    %v1995 = vrot.slane %v1994, 4
    %v1996 = vadd.f32 %v1994, %v1995
    %v1997 = vrot.slane %v1996, 2
    %v1998 = vadd.f32 %v1996, %v1997
    %v1999 = vrot.slane %v1998, 1
    %v2000 = vadd.f32 %v1998, %v1999
    %v2001 = vsel %vm1236, %v1873, 0.0
    %v2002 = vrot.slane %v2001, 4
    %v2003 = vadd.f32 %v2001, %v2002
    %v2004 = vrot.slane %v2003, 2
    %v2005 = vadd.f32 %v2003, %v2004
    %v2006 = vrot.slane %v2005, 1
    %v2007 = vadd.f32 %v2005, %v2006
    %v2008 = vsel %vm1236, %v1874, 0.0
    %v2009 = vrot.slane %v2008, 4
    %v2010 = vadd.f32 %v2008, %v2009
    %v2011 = vrot.slane %v2010, 2
    %v2012 = vadd.f32 %v2010, %v2011
    %v2013 = vrot.slane %v2012, 1
    %v2014 = vadd.f32 %v2012, %v2013
    %v2015 = vsel %vm1236, %v1875, 0.0
    %v2016 = vrot.slane %v2015, 4
    %v2017 = vadd.f32 %v2015, %v2016
    %v2018 = vrot.slane %v2017, 2
    %v2019 = vadd.f32 %v2017, %v2018
    %v2020 = vrot.slane %v2019, 1
    %v2021 = vadd.f32 %v2019, %v2020
    %v2022 = vsel %vm1236, %v1876, 0.0
    %v2023 = vrot.slane %v2022, 4
    %v2024 = vadd.f32 %v2022, %v2023
    %v2025 = vrot.slane %v2024, 2
    %v2026 = vadd.f32 %v2024, %v2025
    %v2027 = vrot.slane %v2026, 1
    %v2028 = vadd.f32 %v2026, %v2027
    %v2029 = vsel %vm1236, %v1877, 0.0
    %v2030 = vrot.slane %v2029, 4
    %v2031 = vadd.f32 %v2029, %v2030
    %v2032 = vrot.slane %v2031, 2
    %v2033 = vadd.f32 %v2031, %v2032
    %v2034 = vrot.slane %v2033, 1
    %v2035 = vadd.f32 %v2033, %v2034
    %v2036 = vsel %vm1236, %v1878, 0.0
    %v2037 = vrot.slane %v2036, 4
    %v2038 = vadd.f32 %v2036, %v2037
    %v2039 = vrot.slane %v2038, 2
    %v2040 = vadd.f32 %v2038, %v2039
    %v2041 = vrot.slane %v2040, 1
    %v2042 = vadd.f32 %v2040, %v2041
    %v2043 = vsel %vm1236, %v1879, 0.0
    %v2044 = vrot.slane %v2043, 4
    %v2045 = vadd.f32 %v2043, %v2044
    %v2046 = vrot.slane %v2045, 2
    %v2047 = vadd.f32 %v2045, %v2046
    %v2048 = vrot.slane %v2047, 1
    %v2049 = vadd.f32 %v2047, %v2048
    %v2050 = vsel %vm1236, %v1880, 0.0
    %v2051 = vrot.slane %v2050, 4
    %v2052 = vadd.f32 %v2050, %v2051
    %v2053 = vrot.slane %v2052, 2
    %v2054 = vadd.f32 %v2052, %v2053
    %v2055 = vrot.slane %v2054, 1
    %v2056 = vadd.f32 %v2054, %v2055
    %v2057 = vsel %vm1236, %v1881, 0.0
    %v2058 = vrot.slane %v2057, 4
    %v2059 = vadd.f32 %v2057, %v2058
    %v2060 = vrot.slane %v2059, 2
    %v2061 = vadd.f32 %v2059, %v2060
    %v2062 = vrot.slane %v2061, 1
    %v2063 = vadd.f32 %v2061, %v2062
    %v2064 = vsel %vm1236, %v1882, 0.0
    %v2065 = vrot.slane %v2064, 4
    %v2066 = vadd.f32 %v2064, %v2065
    %v2067 = vrot.slane %v2066, 2
    %v2068 = vadd.f32 %v2066, %v2067
    %v2069 = vrot.slane %v2068, 1
    %v2070 = vadd.f32 %v2068, %v2069
    %v2071 = vsel %vm1236, %v1883, 0.0
    %v2072 = vrot.slane %v2071, 4
    %v2073 = vadd.f32 %v2071, %v2072
    %v2074 = vrot.slane %v2073, 2
    %v2075 = vadd.f32 %v2073, %v2074
    %v2076 = vrot.slane %v2075, 1
    %v2077 = vadd.f32 %v2075, %v2076
    %v2078 = vsel %vm1236, %v1884, 0.0
    %v2079 = vrot.slane %v2078, 4
    %v2080 = vadd.f32 %v2078, %v2079
    %v2081 = vrot.slane %v2080, 2
    %v2082 = vadd.f32 %v2080, %v2081
    %v2083 = vrot.slane %v2082, 1
    %v2084 = vadd.f32 %v2082, %v2083
    %v2085 = vsel %vm1236, %v1885, 0.0
    %v2086 = vrot.slane %v2085, 4
    %v2087 = vadd.f32 %v2085, %v2086
    %v2088 = vrot.slane %v2087, 2
    %v2089 = vadd.f32 %v2087, %v2088
    %v2090 = vrot.slane %v2089, 1
    %v2091 = vadd.f32 %v2089, %v2090
    %v2092 = vsel %vm1236, %v1886, 0.0
    %v2093 = vrot.slane %v2092, 4
    %v2094 = vadd.f32 %v2092, %v2093
    %v2095 = vrot.slane %v2094, 2
    %v2096 = vadd.f32 %v2094, %v2095
    %v2097 = vrot.slane %v2096, 1
    %v2098 = vadd.f32 %v2096, %v2097
    %v2099 = vsel %vm1236, %v1887, 0.0
    %v2100 = vrot.slane %v2099, 4
    %v2101 = vadd.f32 %v2099, %v2100
    %v2102 = vrot.slane %v2101, 2
    %v2103 = vadd.f32 %v2101, %v2102
    %v2104 = vrot.slane %v2103, 1
    %v2105 = vadd.f32 %v2103, %v2104
    %v2106 = vsel %vm1236, %v1888, 0.0
    %v2107 = vrot.slane %v2106, 4
    %v2108 = vadd.f32 %v2106, %v2107
    %v2109 = vrot.slane %v2108, 2
    %v2110 = vadd.f32 %v2108, %v2109
    %v2111 = vrot.slane %v2110, 1
    %v2112 = vadd.f32 %v2110, %v2111
    %v2113 = vpack.c.bf16 %v1895, %v1895
    %v2114 = vpack.c.bf16 %v1902, %v1902
    %v2115 = vpack.c.bf16 %v1909, %v1909
    %v2116 = vpack.c.bf16 %v1916, %v1916
    %v2117 = vpack.c.bf16 %v1923, %v1923
    %v2118 = vpack.c.bf16 %v1930, %v1930
    %v2119 = vpack.c.bf16 %v1937, %v1937
    %v2120 = vpack.c.bf16 %v1944, %v1944
    %v2121 = vpack.c.bf16 %v1951, %v1951
    %v2122 = vpack.c.bf16 %v1958, %v1958
    %v2123 = vpack.c.bf16 %v1965, %v1965
    %v2124 = vpack.c.bf16 %v1972, %v1972
    %v2125 = vpack.c.bf16 %v1979, %v1979
    %v2126 = vpack.c.bf16 %v1986, %v1986
    %v2127 = vpack.c.bf16 %v1993, %v1993
    %v2128 = vpack.c.bf16 %v2000, %v2000
    %v2129 = vpack.c.bf16 %v2007, %v2007
    %v2130 = vpack.c.bf16 %v2014, %v2014
    %v2131 = vpack.c.bf16 %v2021, %v2021
    %v2132 = vpack.c.bf16 %v2028, %v2028
    %v2133 = vpack.c.bf16 %v2035, %v2035
    %v2134 = vpack.c.bf16 %v2042, %v2042
    %v2135 = vpack.c.bf16 %v2049, %v2049
    %v2136 = vpack.c.bf16 %v2056, %v2056
    %v2137 = vpack.c.bf16 %v2063, %v2063
    %v2138 = vpack.c.bf16 %v2070, %v2070
    %v2139 = vpack.c.bf16 %v2077, %v2077
    %v2140 = vpack.c.bf16 %v2084, %v2084
    %v2141 = vpack.c.bf16 %v2091, %v2091
    %v2142 = vpack.c.bf16 %v2098, %v2098
    %v2143 = vpack.c.bf16 %v2105, %v2105
    %v2144 = vpack.c.bf16 %v2112, %v2112
    %v2145 = vld [vmem:[#allocation7] sm:$0xf]
    %v2146 = vld [vmem:[#allocation7 + $0x4] sm:$0xf]
    %v2147 = vld [vmem:[#allocation7 + $0x8] sm:$0xf]
    %v2148 = vld [vmem:[#allocation7 + $0xc] sm:$0xf]
    %v2149 = vld [vmem:[#allocation7 + $0x10] sm:$0xf]
    %v2150 = vld [vmem:[#allocation7 + $0x14] sm:$0xf]
    %v2151 = vld [vmem:[#allocation7 + $0x18] sm:$0xf]
    %v2152 = vld [vmem:[#allocation7 + $0x1c] sm:$0xf]
    %v2153 = vld [vmem:[#allocation7 + $0x20] sm:$0xf]
    %v2154 = vld [vmem:[#allocation7 + $0x24] sm:$0xf]
    %v2155 = vld [vmem:[#allocation7 + $0x28] sm:$0xf]
    %v2156 = vld [vmem:[#allocation7 + $0x2c] sm:$0xf]
    %v2157 = vld [vmem:[#allocation7 + $0x30] sm:$0xf]
    %v2158 = vld [vmem:[#allocation7 + $0x34] sm:$0xf]
    %v2159 = vld [vmem:[#allocation7 + $0x38] sm:$0xf]
    %v2160 = vld [vmem:[#allocation7 + $0x3c] sm:$0xf]
    %v2161 = vld [vmem:[#allocation9] sm:$0x1]
    %v2163 = vlaneseq
    %v2164 = vshrl.u32 %v2163, 7
    %v2165 = vsub.s32 0, %v2164
    %v2166 = vrot.slane %v2161, %v2165
    %v2200 = vunpack.c.l.b16 %v2113
    %v2201 = vunpack.c.l.b16 %v2114
    %v2202 = vunpack.c.l.b16 %v2115
    %v2203 = vunpack.c.l.b16 %v2116
    %v2204 = vunpack.c.l.b16 %v2117
    %v2205 = vunpack.c.l.b16 %v2118
    %v2206 = vunpack.c.l.b16 %v2119
    %v2207 = vunpack.c.l.b16 %v2120
    %v2208 = vunpack.c.l.b16 %v2121
    %v2209 = vunpack.c.l.b16 %v2122
    %v2210 = vunpack.c.l.b16 %v2123
    %v2211 = vunpack.c.l.b16 %v2124
    %v2212 = vunpack.c.l.b16 %v2125
    %v2213 = vunpack.c.l.b16 %v2126
    %v2214 = vunpack.c.l.b16 %v2127
    %v2215 = vunpack.c.l.b16 %v2128
    %v2216 = vunpack.c.l.b16 %v2129
    %v2217 = vunpack.c.l.b16 %v2130
    %v2218 = vunpack.c.l.b16 %v2131
    %v2219 = vunpack.c.l.b16 %v2132
    %v2220 = vunpack.c.l.b16 %v2133
    %v2221 = vunpack.c.l.b16 %v2134
    %v2222 = vunpack.c.l.b16 %v2135
    %v2223 = vunpack.c.l.b16 %v2136
    %v2224 = vunpack.c.l.b16 %v2137
    %v2225 = vunpack.c.l.b16 %v2138
    %v2226 = vunpack.c.l.b16 %v2139
    %v2227 = vunpack.c.l.b16 %v2140
    %v2228 = vunpack.c.l.b16 %v2141
    %v2229 = vunpack.c.l.b16 %v2142
    %v2230 = vunpack.c.l.b16 %v2143
    %v2231 = vunpack.c.l.b16 %v2144
    %vm2232 = vcmask 1041409
    %v2233 = vsel %vm2232, %v2201, %v2200
    %vm2234 = vcmask 1042434
    %v2235 = vsel %vm2234, %v2202, %v2233
    %vm2236 = vcmask 1043459
    %v2237 = vsel %vm2236, %v2203, %v2235
    %vm2238 = vcmask 1044484
    %v2239 = vsel %vm2238, %v2204, %v2237
    %vm2240 = vcmask 1045509
    %v2241 = vsel %vm2240, %v2205, %v2239
    %vm2242 = vcmask 1046534
    %v2243 = vsel %vm2242, %v2206, %v2241
    %vm2244 = vcmask 1047559
    %v2245 = vsel %vm2244, %v2207, %v2243
    %v2246 = vsel %vm2232, %v2209, %v2208
    %v2247 = vsel %vm2234, %v2210, %v2246
    %v2248 = vsel %vm2236, %v2211, %v2247
    %v2249 = vsel %vm2238, %v2212, %v2248
    %v2250 = vsel %vm2240, %v2213, %v2249
    %v2251 = vsel %vm2242, %v2214, %v2250
    %v2252 = vsel %vm2244, %v2215, %v2251
    %v2253 = vsel %vm2232, %v2217, %v2216
    %v2254 = vsel %vm2234, %v2218, %v2253
    %v2255 = vsel %vm2236, %v2219, %v2254
    %v2256 = vsel %vm2238, %v2220, %v2255
    %v2257 = vsel %vm2240, %v2221, %v2256
    %v2258 = vsel %vm2242, %v2222, %v2257
    %v2259 = vsel %vm2244, %v2223, %v2258
    %v2260 = vsel %vm2232, %v2225, %v2224
    %v2261 = vsel %vm2234, %v2226, %v2260
    %v2262 = vsel %vm2236, %v2227, %v2261
    %v2263 = vsel %vm2238, %v2228, %v2262
    %v2264 = vsel %vm2240, %v2229, %v2263
    %v2265 = vsel %vm2242, %v2230, %v2264
    %v2266 = vsel %vm2244, %v2231, %v2265
    %v2267 = vpack.c.b16 %v2252, %v2245
    %v2268 = vpack.c.b16 %v2266, %v2259
    %v2287 = vunpack.c.l.b16 %v2145
    %v2288 = vunpack.c.l.b16 %v2146
    %v2289 = vunpack.c.l.b16 %v2147
    %v2290 = vunpack.c.l.b16 %v2148
    %v2291 = vunpack.c.l.b16 %v2149
    %v2292 = vunpack.c.l.b16 %v2150
    %v2293 = vunpack.c.l.b16 %v2151
    %v2294 = vunpack.c.l.b16 %v2152
    %v2295 = vunpack.c.l.b16 %v2153
    %v2296 = vunpack.c.l.b16 %v2154
    %v2297 = vunpack.c.l.b16 %v2155
    %v2298 = vunpack.c.l.b16 %v2156
    %v2299 = vunpack.c.l.b16 %v2157
    %v2300 = vunpack.c.l.b16 %v2158
    %v2301 = vunpack.c.l.b16 %v2159
    %v2302 = vunpack.c.l.b16 %v2160
    %v2303 = vpack.c.b16 %v2288, %v2287
    %v2304 = vpack.c.b16 %v2290, %v2289
    %v2305 = vpack.c.b16 %v2292, %v2291
    %v2306 = vpack.c.b16 %v2294, %v2293
    %v2307 = vpack.c.b16 %v2296, %v2295
    %v2308 = vpack.c.b16 %v2298, %v2297
    %v2309 = vpack.c.b16 %v2300, %v2299
    %v2310 = vpack.c.b16 %v2302, %v2301
    %2319 = vmatprep.subr.bf16.mxu0 0
    %2320 = vmatpush1.bf16.msra.mxu0 %v2310
    %2321 = vmatprep.subr.bf16.mxu0 0
    %2322 = vmatpush1.bf16.msra.mxu0 %v2309
    %2323 = vmatprep.subr.bf16.mxu0 0
    %2324 = vmatpush1.bf16.msra.mxu0 %v2308
    %2325 = vmatprep.subr.bf16.mxu0 0
    %2326 = vmatpush1.bf16.msra.mxu0 %v2307
    %2327 = vmatprep.subr.bf16.mxu0 0
    %2328 = vmatpush1.bf16.msra.mxu0 %v2306
    %2329 = vmatprep.subr.bf16.mxu0 0
    %2330 = vmatpush1.bf16.msra.mxu0 %v2305
    %2331 = vmatprep.subr.bf16.mxu0 0
    %2332 = vmatpush1.bf16.msra.mxu0 %v2304
    %2333 = vmatprep.subr.bf16.mxu0 0
    %2334 = vmatpush1.bf16.msra.mxu0 %v2303
    %2335 = vmatprep.subr.bf16.mxu0 0
    %2336 = vmatpush2.bf16.msra.mxu0 0
    %2337 = vmatprep.subr.bf16.mxu0 0
    %2338 = vmatpush2.bf16.msra.mxu0 0
    %2339 = vmatprep.subr.bf16.mxu0 0
    %2340 = vmatpush2.bf16.msra.mxu0 0
    %2341 = vmatprep.subr.bf16.mxu0 0
    %2342 = vmatpush2.bf16.msra.mxu0 0
    %2343 = vmatprep.subr.bf16.mxu0 0
    %2344 = vmatpush2.bf16.msra.mxu0 0
    %2345 = vmatprep.subr.bf16.mxu0 0
    %2346 = vmatpush2.bf16.msra.mxu0 0
    %2347 = vmatprep.subr.bf16.mxu0 0
    %2348 = vmatpush2.bf16.msra.mxu0 0
    %2349 = vmatprep.subr.bf16.mxu0 0
    %2350 = vmatpush2.bf16.msra.mxu0 0
    %2351 = vmatprep.mubr.bf16.mxu0 0
    %2352 = vmatmul.mubr.bf16.gmra.mxu0 %v2267
    %v2353 = vpop.f32.mrf.mxu0
    %v2354 = vadd.f32 %v2166, %v2353
    %v2355 = vpop.f32.mrf.mxu0
    %v2356 = vpop.f32.mrf.mxu0
    %v2357 = vadd.f32 %v2166, %v2356
    %v2358 = vpop.f32.mrf.mxu0
    %2359 = vmatprep.mubr.bf16.mxu0 0
    %2360 = vmatmul.mubr.bf16.gmra.mxu0 %v2268
    %v2361 = vpop.f32.mrf.mxu0
    %v2362 = vadd.f32 %v2166, %v2361
    %v2363 = vpop.f32.mrf.mxu0
    %v2364 = vpop.f32.mrf.mxu0
    %v2365 = vadd.f32 %v2166, %v2364
    %v2366 = vpop.f32.mrf.mxu0
    %2367 = vdwg.mxu0
    %v2368 = vadd.f32 %v242, %v2354
    %v2369 = vadd.f32 %v243, %v2357
    %v2370 = vadd.f32 %v244, %v2362
    %v2371 = vadd.f32 %v245, %v2365
    %v2372 = vld [vmem:[#allocation10] sm:$0x1]
    %v2373 = vld [vmem:[#allocation12] sm:$0x1]
    %2374 = vadd.xlane.f32.xlu0 %v2368
    %v2375 = vpop.xlane.xlu0 %2374
    %2376 = vadd.xlane.f32.xlu0 %v2369
    %v2377 = vpop.xlane.xlu0 %2376
    %2378 = vadd.xlane.f32.xlu0 %v2370
    %v2379 = vpop.xlane.xlu0 %2378
    %2380 = vadd.xlane.f32.xlu0 %v2371
    %v2381 = vpop.xlane.xlu0 %2380
    %v2382 = vrcp.pop 128.0
    %v2383 = vmul.f32 %v2375, %v2382
    %v2384 = vmul.f32 %v2377, %v2382
    %v2385 = vmul.f32 %v2379, %v2382
    %v2386 = vmul.f32 %v2381, %v2382
    %v2387 = vsub.f32 %v2368, %v2383
    %v2388 = vsub.f32 %v2369, %v2384
    %v2389 = vsub.f32 %v2370, %v2385
    %v2390 = vsub.f32 %v2371, %v2386
    %v2391 = vmul.f32 %v2387, %v2387
    %v2392 = vmul.f32 %v2388, %v2388
    %v2393 = vmul.f32 %v2389, %v2389
    %v2394 = vmul.f32 %v2390, %v2390
    %2395 = vadd.xlane.f32.xlu0 %v2391
    %v2396 = vpop.xlane.xlu0 %2395
    %2397 = vadd.xlane.f32.xlu0 %v2392
    %v2398 = vpop.xlane.xlu0 %2397
    %2399 = vadd.xlane.f32.xlu0 %v2393
    %v2400 = vpop.xlane.xlu0 %2399
    %2401 = vadd.xlane.f32.xlu0 %v2394
    %v2402 = vpop.xlane.xlu0 %2401
    %v2403 = vmul.f32 %v2396, %v2382
    %v2404 = vmul.f32 %v2398, %v2382
    %v2405 = vmul.f32 %v2400, %v2382
    %v2406 = vmul.f32 %v2402, %v2382
    %v2407 = vadd.f32 %v2403, 1e-05
    %v2408 = vadd.f32 %v2404, 1e-05
    %v2409 = vadd.f32 %v2405, 1e-05
    %v2410 = vadd.f32 %v2406, 1e-05
    %v2411 = vrsqrt.pop %v2407
    %v2412 = vrsqrt.pop %v2408
    %v2413 = vrsqrt.pop %v2409
    %v2414 = vrsqrt.pop %v2410
    %v2415 = vmul.f32 %v2387, %v2411
    %v2416 = vmul.f32 %v2388, %v2412
    %v2417 = vmul.f32 %v2389, %v2413
    %v2418 = vmul.f32 %v2390, %v2414
    %v2420 = vlaneseq
    %v2421 = vshrl.u32 %v2420, 7
    %v2422 = vsub.s32 0, %v2421
    %v2423 = vrot.slane %v2372, %v2422
    %v2425 = vmul.f32 %v2415, %v2423
    %v2426 = vmul.f32 %v2416, %v2423
    %v2427 = vmul.f32 %v2417, %v2423
    %v2428 = vmul.f32 %v2418, %v2423
    %v2430 = vlaneseq
    %v2431 = vshrl.u32 %v2430, 7
    %v2432 = vsub.s32 0, %v2431
    %v2433 = vrot.slane %v2373, %v2432
    %v2435 = vadd.f32 %v2425, %v2433
    %v2436 = vadd.f32 %v2426, %v2433
    %v2437 = vadd.f32 %v2427, %v2433
    %v2438 = vadd.f32 %v2428, %v2433
    %v2439 = vpack.c.bf16 %v2436, %v2435
    %v2440 = vpack.c.bf16 %v2438, %v2437
    %v2441 = vld [vmem:[#allocation13] sm:$0xff]
    %v2442 = vld [vmem:[#allocation13 + $0x8] sm:$0xff]
    %v2443 = vld [vmem:[#allocation13 + $0x10] sm:$0xff]
    %v2444 = vld [vmem:[#allocation13 + $0x18] sm:$0xff]
    %v2445 = vld [vmem:[#allocation13 + $0x20] sm:$0xff]
    %v2446 = vld [vmem:[#allocation13 + $0x28] sm:$0xff]
    %v2447 = vld [vmem:[#allocation13 + $0x30] sm:$0xff]
    %v2448 = vld [vmem:[#allocation13 + $0x38] sm:$0xff]
    %v2449 = vld [vmem:[#allocation13 + $0x40] sm:$0xff]
    %v2450 = vld [vmem:[#allocation13 + $0x48] sm:$0xff]
    %v2451 = vld [vmem:[#allocation13 + $0x50] sm:$0xff]
    %v2452 = vld [vmem:[#allocation13 + $0x58] sm:$0xff]
    %v2453 = vld [vmem:[#allocation13 + $0x60] sm:$0xff]
    %v2454 = vld [vmem:[#allocation13 + $0x68] sm:$0xff]
    %v2455 = vld [vmem:[#allocation13 + $0x70] sm:$0xff]
    %v2456 = vld [vmem:[#allocation13 + $0x78] sm:$0xff]
    %v2457 = vld [vmem:[#allocation13 + $0x80] sm:$0xff]
    %v2458 = vld [vmem:[#allocation13 + $0x88] sm:$0xff]
    %v2459 = vld [vmem:[#allocation13 + $0x90] sm:$0xff]
    %v2460 = vld [vmem:[#allocation13 + $0x98] sm:$0xff]
    %v2461 = vld [vmem:[#allocation13 + $0xa0] sm:$0xff]
    %v2462 = vld [vmem:[#allocation13 + $0xa8] sm:$0xff]
    %v2463 = vld [vmem:[#allocation13 + $0xb0] sm:$0xff]
    %v2464 = vld [vmem:[#allocation13 + $0xb8] sm:$0xff]
    %v2465 = vld [vmem:[#allocation13 + $0xc0] sm:$0xff]
    %v2466 = vld [vmem:[#allocation13 + $0xc8] sm:$0xff]
    %v2467 = vld [vmem:[#allocation13 + $0xd0] sm:$0xff]
    %v2468 = vld [vmem:[#allocation13 + $0xd8] sm:$0xff]
    %v2469 = vld [vmem:[#allocation13 + $0xe0] sm:$0xff]
    %v2470 = vld [vmem:[#allocation13 + $0xe8] sm:$0xff]
    %v2471 = vld [vmem:[#allocation13 + $0xf0] sm:$0xff]
    %v2472 = vld [vmem:[#allocation13 + $0xf8] sm:$0xff]
    %v2473 = vld [vmem:[#allocation15] sm:$0xf]
    %v2475 = vlaneseq
    %v2476 = vshrl.u32 %v2475, 7
    %v2477 = vsub.s32 0, %v2476
    %v2478 = vrot.slane %v2473, %v2477
    %v2479 = vlaneseq
    %v2480 = vshrl.u32 %v2479, 7
    %v2481 = vsub.s32 1, %v2480
    %v2482 = vrot.slane %v2473, %v2481
    %v2483 = vlaneseq
    %v2484 = vshrl.u32 %v2483, 7
    %v2485 = vsub.s32 2, %v2484
    %v2486 = vrot.slane %v2473, %v2485
    %v2487 = vlaneseq
    %v2488 = vshrl.u32 %v2487, 7
    %v2489 = vsub.s32 3, %v2488
    %v2490 = vrot.slane %v2473, %v2489
    %v2527 = vunpack.c.l.b16 %v2441
    %v2528 = vunpack.c.h.b16 %v2441
    %v2529 = vunpack.c.l.b16 %v2442
    %v2530 = vunpack.c.h.b16 %v2442
    %v2531 = vunpack.c.l.b16 %v2443
    %v2532 = vunpack.c.h.b16 %v2443
    %v2533 = vunpack.c.l.b16 %v2444
    %v2534 = vunpack.c.h.b16 %v2444
    %v2535 = vunpack.c.l.b16 %v2445
    %v2536 = vunpack.c.h.b16 %v2445
    %v2537 = vunpack.c.l.b16 %v2446
    %v2538 = vunpack.c.h.b16 %v2446
    %v2539 = vunpack.c.l.b16 %v2447
    %v2540 = vunpack.c.h.b16 %v2447
    %v2541 = vunpack.c.l.b16 %v2448
    %v2542 = vunpack.c.h.b16 %v2448
    %v2543 = vunpack.c.l.b16 %v2449
    %v2544 = vunpack.c.h.b16 %v2449
    %v2545 = vunpack.c.l.b16 %v2450
    %v2546 = vunpack.c.h.b16 %v2450
    %v2547 = vunpack.c.l.b16 %v2451
    %v2548 = vunpack.c.h.b16 %v2451
    %v2549 = vunpack.c.l.b16 %v2452
    %v2550 = vunpack.c.h.b16 %v2452
    %v2551 = vunpack.c.l.b16 %v2453
    %v2552 = vunpack.c.h.b16 %v2453
    %v2553 = vunpack.c.l.b16 %v2454
    %v2554 = vunpack.c.h.b16 %v2454
    %v2555 = vunpack.c.l.b16 %v2455
    %v2556 = vunpack.c.h.b16 %v2455
    %v2557 = vunpack.c.l.b16 %v2456
    %v2558 = vunpack.c.h.b16 %v2456
    %v2559 = vunpack.c.l.b16 %v2457
    %v2560 = vunpack.c.h.b16 %v2457
    %v2561 = vunpack.c.l.b16 %v2458
    %v2562 = vunpack.c.h.b16 %v2458
    %v2563 = vunpack.c.l.b16 %v2459
    %v2564 = vunpack.c.h.b16 %v2459
    %v2565 = vunpack.c.l.b16 %v2460
    %v2566 = vunpack.c.h.b16 %v2460
    %v2567 = vunpack.c.l.b16 %v2461
    %v2568 = vunpack.c.h.b16 %v2461
    %v2569 = vunpack.c.l.b16 %v2462
    %v2570 = vunpack.c.h.b16 %v2462
    %v2571 = vunpack.c.l.b16 %v2463
    %v2572 = vunpack.c.h.b16 %v2463
    %v2573 = vunpack.c.l.b16 %v2464
    %v2574 = vunpack.c.h.b16 %v2464
    %v2575 = vunpack.c.l.b16 %v2465
    %v2576 = vunpack.c.h.b16 %v2465
    %v2577 = vunpack.c.l.b16 %v2466
    %v2578 = vunpack.c.h.b16 %v2466
    %v2579 = vunpack.c.l.b16 %v2467
    %v2580 = vunpack.c.h.b16 %v2467
    %v2581 = vunpack.c.l.b16 %v2468
    %v2582 = vunpack.c.h.b16 %v2468
    %v2583 = vunpack.c.l.b16 %v2469
    %v2584 = vunpack.c.h.b16 %v2469
    %v2585 = vunpack.c.l.b16 %v2470
    %v2586 = vunpack.c.h.b16 %v2470
    %v2587 = vunpack.c.l.b16 %v2471
    %v2588 = vunpack.c.h.b16 %v2471
    %v2589 = vunpack.c.l.b16 %v2472
    %v2590 = vunpack.c.h.b16 %v2472
    %v2591 = vpack.c.b16 %v2531, %v2527
    %v2592 = vpack.c.b16 %v2532, %v2528
    %v2593 = vpack.c.b16 %v2533, %v2529
    %v2594 = vpack.c.b16 %v2534, %v2530
    %v2595 = vpack.c.b16 %v2539, %v2535
    %v2596 = vpack.c.b16 %v2540, %v2536
    %v2597 = vpack.c.b16 %v2541, %v2537
    %v2598 = vpack.c.b16 %v2542, %v2538
    %v2599 = vpack.c.b16 %v2547, %v2543
    %v2600 = vpack.c.b16 %v2548, %v2544
    %v2601 = vpack.c.b16 %v2549, %v2545
    %v2602 = vpack.c.b16 %v2550, %v2546
    %v2603 = vpack.c.b16 %v2555, %v2551
    %v2604 = vpack.c.b16 %v2556, %v2552
    %v2605 = vpack.c.b16 %v2557, %v2553
    %v2606 = vpack.c.b16 %v2558, %v2554
    %v2607 = vpack.c.b16 %v2563, %v2559
    %v2608 = vpack.c.b16 %v2564, %v2560
    %v2609 = vpack.c.b16 %v2565, %v2561
    %v2610 = vpack.c.b16 %v2566, %v2562
    %v2611 = vpack.c.b16 %v2571, %v2567
    %v2612 = vpack.c.b16 %v2572, %v2568
    %v2613 = vpack.c.b16 %v2573, %v2569
    %v2614 = vpack.c.b16 %v2574, %v2570
    %v2615 = vpack.c.b16 %v2579, %v2575
    %v2616 = vpack.c.b16 %v2580, %v2576
    %v2617 = vpack.c.b16 %v2581, %v2577
    %v2618 = vpack.c.b16 %v2582, %v2578
    %v2619 = vpack.c.b16 %v2587, %v2583
    %v2620 = vpack.c.b16 %v2588, %v2584
    %v2621 = vpack.c.b16 %v2589, %v2585
    %v2622 = vpack.c.b16 %v2590, %v2586
    %2655 = vmatprep.subr.bf16.mxu0 %v2620
    %2656 = vmatpush1.bf16.msra.mxu0 %v2619
    %2657 = vmatprep.subr.bf16.mxu0 %v2616
    %2658 = vmatpush1.bf16.msra.mxu0 %v2615
    %2659 = vmatprep.subr.bf16.mxu0 %v2612
    %2660 = vmatpush1.bf16.msra.mxu0 %v2611
    %2661 = vmatprep.subr.bf16.mxu0 %v2608
    %2662 = vmatpush1.bf16.msra.mxu0 %v2607
    %2663 = vmatprep.subr.bf16.mxu0 %v2604
    %2664 = vmatpush1.bf16.msra.mxu0 %v2603
    %2665 = vmatprep.subr.bf16.mxu0 %v2600
    %2666 = vmatpush1.bf16.msra.mxu0 %v2599
    %2667 = vmatprep.subr.bf16.mxu0 %v2596
    %2668 = vmatpush1.bf16.msra.mxu0 %v2595
    %2669 = vmatprep.subr.bf16.mxu0 %v2592
    %2670 = vmatpush1.bf16.msra.mxu0 %v2591
    %2671 = vmatprep.subr.bf16.mxu0 0
    %2672 = vmatpush2.bf16.msra.mxu0 0
    %2673 = vmatprep.subr.bf16.mxu0 0
    %2674 = vmatpush2.bf16.msra.mxu0 0
    %2675 = vmatprep.subr.bf16.mxu0 0
    %2676 = vmatpush2.bf16.msra.mxu0 0
    %2677 = vmatprep.subr.bf16.mxu0 0
    %2678 = vmatpush2.bf16.msra.mxu0 0
    %2679 = vmatprep.subr.bf16.mxu0 0
    %2680 = vmatpush2.bf16.msra.mxu0 0
    %2681 = vmatprep.subr.bf16.mxu0 0
    %2682 = vmatpush2.bf16.msra.mxu0 0
    %2683 = vmatprep.subr.bf16.mxu0 0
    %2684 = vmatpush2.bf16.msra.mxu0 0
    %2685 = vmatprep.subr.bf16.mxu0 0
    %2686 = vmatpush2.bf16.msra.mxu0 0
    %2687 = vmatprep.mubr.bf16.mxu0 0
    %2688 = vmatmul.mubr.bf16.gmra.mxu0 %v2439
    %v2689 = vpop.f32.mrf.mxu0
    %v2690 = vadd.f32 %v2478, %v2689
    %v2691 = vpop.f32.mrf.mxu0
    %v2692 = vadd.f32 %v2482, %v2691
    %v2693 = vpop.f32.mrf.mxu0
    %v2694 = vadd.f32 %v2478, %v2693
    %v2695 = vpop.f32.mrf.mxu0
    %v2696 = vadd.f32 %v2482, %v2695
    %2697 = vmatprep.mubr.bf16.mxu0 0
    %2698 = vmatmul.mubr.bf16.gmra.mxu0 %v2440
    %v2699 = vpop.f32.mrf.mxu0
    %v2700 = vadd.f32 %v2478, %v2699
    %v2701 = vpop.f32.mrf.mxu0
    %v2702 = vadd.f32 %v2482, %v2701
    %v2703 = vpop.f32.mrf.mxu0
    %v2704 = vadd.f32 %v2478, %v2703
    %v2705 = vpop.f32.mrf.mxu0
    %v2706 = vadd.f32 %v2482, %v2705
    %2707 = vdwg.mxu0
    %2708 = vmatprep.subr.bf16.mxu0 %v2622
    %2709 = vmatpush1.bf16.msra.mxu0 %v2621
    %2710 = vmatprep.subr.bf16.mxu0 %v2618
    %2711 = vmatpush1.bf16.msra.mxu0 %v2617
    %2712 = vmatprep.subr.bf16.mxu0 %v2614
    %2713 = vmatpush1.bf16.msra.mxu0 %v2613
    %2714 = vmatprep.subr.bf16.mxu0 %v2610
    %2715 = vmatpush1.bf16.msra.mxu0 %v2609
    %2716 = vmatprep.subr.bf16.mxu0 %v2606
    %2717 = vmatpush1.bf16.msra.mxu0 %v2605
    %2718 = vmatprep.subr.bf16.mxu0 %v2602
    %2719 = vmatpush1.bf16.msra.mxu0 %v2601
    %2720 = vmatprep.subr.bf16.mxu0 %v2598
    %2721 = vmatpush1.bf16.msra.mxu0 %v2597
    %2722 = vmatprep.subr.bf16.mxu0 %v2594
    %2723 = vmatpush1.bf16.msra.mxu0 %v2593
    %2724 = vmatprep.subr.bf16.mxu0 0
    %2725 = vmatpush2.bf16.msra.mxu0 0
    %2726 = vmatprep.subr.bf16.mxu0 0
    %2727 = vmatpush2.bf16.msra.mxu0 0
    %2728 = vmatprep.subr.bf16.mxu0 0
    %2729 = vmatpush2.bf16.msra.mxu0 0
    %2730 = vmatprep.subr.bf16.mxu0 0
    %2731 = vmatpush2.bf16.msra.mxu0 0
    %2732 = vmatprep.subr.bf16.mxu0 0
    %2733 = vmatpush2.bf16.msra.mxu0 0
    %2734 = vmatprep.subr.bf16.mxu0 0
    %2735 = vmatpush2.bf16.msra.mxu0 0
    %2736 = vmatprep.subr.bf16.mxu0 0
    %2737 = vmatpush2.bf16.msra.mxu0 0
    %2738 = vmatprep.subr.bf16.mxu0 0
    %2739 = vmatpush2.bf16.msra.mxu0 0
    %2740 = vmatprep.mubr.bf16.mxu0 0
    %2741 = vmatmul.mubr.bf16.gmra.mxu0 %v2439
    %v2742 = vpop.f32.mrf.mxu0
    %v2743 = vadd.f32 %v2486, %v2742
    %v2744 = vpop.f32.mrf.mxu0
    %v2745 = vadd.f32 %v2490, %v2744
    %v2746 = vpop.f32.mrf.mxu0
    %v2747 = vadd.f32 %v2486, %v2746
    %v2748 = vpop.f32.mrf.mxu0
    %v2749 = vadd.f32 %v2490, %v2748
    %2750 = vmatprep.mubr.bf16.mxu0 0
    %2751 = vmatmul.mubr.bf16.gmra.mxu0 %v2440
    %v2752 = vpop.f32.mrf.mxu0
    %v2753 = vadd.f32 %v2486, %v2752
    %v2754 = vpop.f32.mrf.mxu0
    %v2755 = vadd.f32 %v2490, %v2754
    %v2756 = vpop.f32.mrf.mxu0
    %v2757 = vadd.f32 %v2486, %v2756
    %v2758 = vpop.f32.mrf.mxu0
    %v2759 = vadd.f32 %v2490, %v2758
    %2760 = vdwg.mxu0
    %v2761 = vmax.f32 %v2690, 0.0
    %v2762 = vmax.f32 %v2692, 0.0
    %v2763 = vmax.f32 %v2743, 0.0
    %v2764 = vmax.f32 %v2745, 0.0
    %v2765 = vmax.f32 %v2694, 0.0
    %v2766 = vmax.f32 %v2696, 0.0
    %v2767 = vmax.f32 %v2747, 0.0
    %v2768 = vmax.f32 %v2749, 0.0
    %v2769 = vmax.f32 %v2700, 0.0
    %v2770 = vmax.f32 %v2702, 0.0
    %v2771 = vmax.f32 %v2753, 0.0
    %v2772 = vmax.f32 %v2755, 0.0
    %v2773 = vmax.f32 %v2704, 0.0
    %v2774 = vmax.f32 %v2706, 0.0
    %v2775 = vmax.f32 %v2757, 0.0
    %v2776 = vmax.f32 %v2759, 0.0
    %v2777 = vpack.c.bf16 %v2765, %v2761
    %v2778 = vpack.c.bf16 %v2766, %v2762
    %v2779 = vpack.c.bf16 %v2767, %v2763
    %v2780 = vpack.c.bf16 %v2768, %v2764
    %v2781 = vpack.c.bf16 %v2773, %v2769
    %v2782 = vpack.c.bf16 %v2774, %v2770
    %v2783 = vpack.c.bf16 %v2775, %v2771
    %v2784 = vpack.c.bf16 %v2776, %v2772
    %v2785 = vld [vmem:[#allocation16] sm:$0xf]
    %v2786 = vld [vmem:[#allocation16 + $0x4] sm:$0xf]
    %v2787 = vld [vmem:[#allocation16 + $0x8] sm:$0xf]
    %v2788 = vld [vmem:[#allocation16 + $0xc] sm:$0xf]
    %v2789 = vld [vmem:[#allocation16 + $0x10] sm:$0xf]
    %v2790 = vld [vmem:[#allocation16 + $0x14] sm:$0xf]
    %v2791 = vld [vmem:[#allocation16 + $0x18] sm:$0xf]
    %v2792 = vld [vmem:[#allocation16 + $0x1c] sm:$0xf]
    %v2793 = vld [vmem:[#allocation16 + $0x20] sm:$0xf]
    %v2794 = vld [vmem:[#allocation16 + $0x24] sm:$0xf]
    %v2795 = vld [vmem:[#allocation16 + $0x28] sm:$0xf]
    %v2796 = vld [vmem:[#allocation16 + $0x2c] sm:$0xf]
    %v2797 = vld [vmem:[#allocation16 + $0x30] sm:$0xf]
    %v2798 = vld [vmem:[#allocation16 + $0x34] sm:$0xf]
    %v2799 = vld [vmem:[#allocation16 + $0x38] sm:$0xf]
    %v2800 = vld [vmem:[#allocation16 + $0x3c] sm:$0xf]
    %v2801 = vld [vmem:[#allocation16 + $0x40] sm:$0xf]
    %v2802 = vld [vmem:[#allocation16 + $0x44] sm:$0xf]
    %v2803 = vld [vmem:[#allocation16 + $0x48] sm:$0xf]
    %v2804 = vld [vmem:[#allocation16 + $0x4c] sm:$0xf]
    %v2805 = vld [vmem:[#allocation16 + $0x50] sm:$0xf]
    %v2806 = vld [vmem:[#allocation16 + $0x54] sm:$0xf]
    %v2807 = vld [vmem:[#allocation16 + $0x58] sm:$0xf]
    %v2808 = vld [vmem:[#allocation16 + $0x5c] sm:$0xf]
    %v2809 = vld [vmem:[#allocation16 + $0x60] sm:$0xf]
    %v2810 = vld [vmem:[#allocation16 + $0x64] sm:$0xf]
    %v2811 = vld [vmem:[#allocation16 + $0x68] sm:$0xf]
    %v2812 = vld [vmem:[#allocation16 + $0x6c] sm:$0xf]
    %v2813 = vld [vmem:[#allocation16 + $0x70] sm:$0xf]
    %v2814 = vld [vmem:[#allocation16 + $0x74] sm:$0xf]
    %v2815 = vld [vmem:[#allocation16 + $0x78] sm:$0xf]
    %v2816 = vld [vmem:[#allocation16 + $0x7c] sm:$0xf]
    %v2817 = vld [vmem:[#allocation16 + $0x80] sm:$0xf]
    %v2818 = vld [vmem:[#allocation16 + $0x84] sm:$0xf]
    %v2819 = vld [vmem:[#allocation16 + $0x88] sm:$0xf]
    %v2820 = vld [vmem:[#allocation16 + $0x8c] sm:$0xf]
    %v2821 = vld [vmem:[#allocation16 + $0x90] sm:$0xf]
    %v2822 = vld [vmem:[#allocation16 + $0x94] sm:$0xf]
    %v2823 = vld [vmem:[#allocation16 + $0x98] sm:$0xf]
    %v2824 = vld [vmem:[#allocation16 + $0x9c] sm:$0xf]
    %v2825 = vld [vmem:[#allocation16 + $0xa0] sm:$0xf]
    %v2826 = vld [vmem:[#allocation16 + $0xa4] sm:$0xf]
    %v2827 = vld [vmem:[#allocation16 + $0xa8] sm:$0xf]
    %v2828 = vld [vmem:[#allocation16 + $0xac] sm:$0xf]
    %v2829 = vld [vmem:[#allocation16 + $0xb0] sm:$0xf]
    %v2830 = vld [vmem:[#allocation16 + $0xb4] sm:$0xf]
    %v2831 = vld [vmem:[#allocation16 + $0xb8] sm:$0xf]
    %v2832 = vld [vmem:[#allocation16 + $0xbc] sm:$0xf]
    %v2833 = vld [vmem:[#allocation16 + $0xc0] sm:$0xf]
    %v2834 = vld [vmem:[#allocation16 + $0xc4] sm:$0xf]
    %v2835 = vld [vmem:[#allocation16 + $0xc8] sm:$0xf]
    %v2836 = vld [vmem:[#allocation16 + $0xcc] sm:$0xf]
    %v2837 = vld [vmem:[#allocation16 + $0xd0] sm:$0xf]
    %v2838 = vld [vmem:[#allocation16 + $0xd4] sm:$0xf]
    %v2839 = vld [vmem:[#allocation16 + $0xd8] sm:$0xf]
    %v2840 = vld [vmem:[#allocation16 + $0xdc] sm:$0xf]
    %v2841 = vld [vmem:[#allocation16 + $0xe0] sm:$0xf]
    %v2842 = vld [vmem:[#allocation16 + $0xe4] sm:$0xf]
    %v2843 = vld [vmem:[#allocation16 + $0xe8] sm:$0xf]
    %v2844 = vld [vmem:[#allocation16 + $0xec] sm:$0xf]
    %v2845 = vld [vmem:[#allocation16 + $0xf0] sm:$0xf]
    %v2846 = vld [vmem:[#allocation16 + $0xf4] sm:$0xf]
    %v2847 = vld [vmem:[#allocation16 + $0xf8] sm:$0xf]
    %v2848 = vld [vmem:[#allocation16 + $0xfc] sm:$0xf]
    %v2849 = vld [vmem:[#allocation18] sm:$0x1]
    %v2851 = vlaneseq
    %v2852 = vshrl.u32 %v2851, 7
    %v2853 = vsub.s32 0, %v2852
    %v2854 = vrot.slane %v2849, %v2853
    %v2920 = vunpack.c.l.b16 %v2785
    %v2921 = vunpack.c.l.b16 %v2786
    %v2922 = vunpack.c.l.b16 %v2787
    %v2923 = vunpack.c.l.b16 %v2788
    %v2924 = vunpack.c.l.b16 %v2789
    %v2925 = vunpack.c.l.b16 %v2790
    %v2926 = vunpack.c.l.b16 %v2791
    %v2927 = vunpack.c.l.b16 %v2792
    %v2928 = vunpack.c.l.b16 %v2793
    %v2929 = vunpack.c.l.b16 %v2794
    %v2930 = vunpack.c.l.b16 %v2795
    %v2931 = vunpack.c.l.b16 %v2796
    %v2932 = vunpack.c.l.b16 %v2797
    %v2933 = vunpack.c.l.b16 %v2798
    %v2934 = vunpack.c.l.b16 %v2799
    %v2935 = vunpack.c.l.b16 %v2800
    %v2936 = vunpack.c.l.b16 %v2801
    %v2937 = vunpack.c.l.b16 %v2802
    %v2938 = vunpack.c.l.b16 %v2803
    %v2939 = vunpack.c.l.b16 %v2804
    %v2940 = vunpack.c.l.b16 %v2805
    %v2941 = vunpack.c.l.b16 %v2806
    %v2942 = vunpack.c.l.b16 %v2807
    %v2943 = vunpack.c.l.b16 %v2808
    %v2944 = vunpack.c.l.b16 %v2809
    %v2945 = vunpack.c.l.b16 %v2810
    %v2946 = vunpack.c.l.b16 %v2811
    %v2947 = vunpack.c.l.b16 %v2812
    %v2948 = vunpack.c.l.b16 %v2813
    %v2949 = vunpack.c.l.b16 %v2814
    %v2950 = vunpack.c.l.b16 %v2815
    %v2951 = vunpack.c.l.b16 %v2816
    %v2952 = vunpack.c.l.b16 %v2817
    %v2953 = vunpack.c.l.b16 %v2818
    %v2954 = vunpack.c.l.b16 %v2819
    %v2955 = vunpack.c.l.b16 %v2820
    %v2956 = vunpack.c.l.b16 %v2821
    %v2957 = vunpack.c.l.b16 %v2822
    %v2958 = vunpack.c.l.b16 %v2823
    %v2959 = vunpack.c.l.b16 %v2824
    %v2960 = vunpack.c.l.b16 %v2825
    %v2961 = vunpack.c.l.b16 %v2826
    %v2962 = vunpack.c.l.b16 %v2827
    %v2963 = vunpack.c.l.b16 %v2828
    %v2964 = vunpack.c.l.b16 %v2829
    %v2965 = vunpack.c.l.b16 %v2830
    %v2966 = vunpack.c.l.b16 %v2831
    %v2967 = vunpack.c.l.b16 %v2832
    %v2968 = vunpack.c.l.b16 %v2833
    %v2969 = vunpack.c.l.b16 %v2834
    %v2970 = vunpack.c.l.b16 %v2835
    %v2971 = vunpack.c.l.b16 %v2836
    %v2972 = vunpack.c.l.b16 %v2837
    %v2973 = vunpack.c.l.b16 %v2838
    %v2974 = vunpack.c.l.b16 %v2839
    %v2975 = vunpack.c.l.b16 %v2840
    %v2976 = vunpack.c.l.b16 %v2841
    %v2977 = vunpack.c.l.b16 %v2842
    %v2978 = vunpack.c.l.b16 %v2843
    %v2979 = vunpack.c.l.b16 %v2844
    %v2980 = vunpack.c.l.b16 %v2845
    %v2981 = vunpack.c.l.b16 %v2846
    %v2982 = vunpack.c.l.b16 %v2847
    %v2983 = vunpack.c.l.b16 %v2848
    %v2984 = vpack.c.b16 %v2921, %v2920
    %v2985 = vpack.c.b16 %v2923, %v2922
    %v2986 = vpack.c.b16 %v2925, %v2924
    %v2987 = vpack.c.b16 %v2927, %v2926
    %v2988 = vpack.c.b16 %v2929, %v2928
    %v2989 = vpack.c.b16 %v2931, %v2930
    %v2990 = vpack.c.b16 %v2933, %v2932
    %v2991 = vpack.c.b16 %v2935, %v2934
    %v2992 = vpack.c.b16 %v2937, %v2936
    %v2993 = vpack.c.b16 %v2939, %v2938
    %v2994 = vpack.c.b16 %v2941, %v2940
    %v2995 = vpack.c.b16 %v2943, %v2942
    %v2996 = vpack.c.b16 %v2945, %v2944
    %v2997 = vpack.c.b16 %v2947, %v2946
    %v2998 = vpack.c.b16 %v2949, %v2948
    %v2999 = vpack.c.b16 %v2951, %v2950
    %v3000 = vpack.c.b16 %v2953, %v2952
    %v3001 = vpack.c.b16 %v2955, %v2954
    %v3002 = vpack.c.b16 %v2957, %v2956
    %v3003 = vpack.c.b16 %v2959, %v2958
    %v3004 = vpack.c.b16 %v2961, %v2960
    %v3005 = vpack.c.b16 %v2963, %v2962
    %v3006 = vpack.c.b16 %v2965, %v2964
    %v3007 = vpack.c.b16 %v2967, %v2966
    %v3008 = vpack.c.b16 %v2969, %v2968
    %v3009 = vpack.c.b16 %v2971, %v2970
    %v3010 = vpack.c.b16 %v2973, %v2972
    %v3011 = vpack.c.b16 %v2975, %v2974
    %v3012 = vpack.c.b16 %v2977, %v2976
    %v3013 = vpack.c.b16 %v2979, %v2978
    %v3014 = vpack.c.b16 %v2981, %v2980
    %v3015 = vpack.c.b16 %v2983, %v2982
    %3048 = vmatprep.subr.bf16.mxu0 0
    %3049 = vmatpush1.bf16.msra.mxu0 %v2991
    %3050 = vmatprep.subr.bf16.mxu0 0
    %3051 = vmatpush1.bf16.msra.mxu0 %v2990
    %3052 = vmatprep.subr.bf16.mxu0 0
    %3053 = vmatpush1.bf16.msra.mxu0 %v2989
    %3054 = vmatprep.subr.bf16.mxu0 0
    %3055 = vmatpush1.bf16.msra.mxu0 %v2988
    %3056 = vmatprep.subr.bf16.mxu0 0
    %3057 = vmatpush1.bf16.msra.mxu0 %v2987
    %3058 = vmatprep.subr.bf16.mxu0 0
    %3059 = vmatpush1.bf16.msra.mxu0 %v2986
    %3060 = vmatprep.subr.bf16.mxu0 0
    %3061 = vmatpush1.bf16.msra.mxu0 %v2985
    %3062 = vmatprep.subr.bf16.mxu0 0
    %3063 = vmatpush1.bf16.msra.mxu0 %v2984
    %3064 = vmatprep.subr.bf16.mxu0 0
    %3065 = vmatpush2.bf16.msra.mxu0 %v2999
    %3066 = vmatprep.subr.bf16.mxu0 0
    %3067 = vmatpush2.bf16.msra.mxu0 %v2998
    %3068 = vmatprep.subr.bf16.mxu0 0
    %3069 = vmatpush2.bf16.msra.mxu0 %v2997
    %3070 = vmatprep.subr.bf16.mxu0 0
    %3071 = vmatpush2.bf16.msra.mxu0 %v2996
    %3072 = vmatprep.subr.bf16.mxu0 0
    %3073 = vmatpush2.bf16.msra.mxu0 %v2995
    %3074 = vmatprep.subr.bf16.mxu0 0
    %3075 = vmatpush2.bf16.msra.mxu0 %v2994
    %3076 = vmatprep.subr.bf16.mxu0 0
    %3077 = vmatpush2.bf16.msra.mxu0 %v2993
    %3078 = vmatprep.subr.bf16.mxu0 0
    %3079 = vmatpush2.bf16.msra.mxu0 %v2992
    %3080 = vmatprep.mubr.bf16.mxu0 %v2778
    %3081 = vmatmul.mubr.bf16.gmra.mxu0 %v2777
    %v3082 = vpop.f32.mrf.mxu0
    %v3083 = vadd.f32 %v2854, %v3082
    %v3084 = vpop.f32.mrf.mxu0
    %v3085 = vpop.f32.mrf.mxu0
    %v3086 = vadd.f32 %v2854, %v3085
    %v3087 = vpop.f32.mrf.mxu0
    %3088 = vmatprep.mubr.bf16.mxu0 %v2782
    %3089 = vmatmul.mubr.bf16.gmra.mxu0 %v2781
    %v3090 = vpop.f32.mrf.mxu0
    %v3091 = vadd.f32 %v2854, %v3090
    %v3092 = vpop.f32.mrf.mxu0
    %v3093 = vpop.f32.mrf.mxu0
    %v3094 = vadd.f32 %v2854, %v3093
    %v3095 = vpop.f32.mrf.mxu0
    %3096 = vdwg.mxu0
    %3097 = vmatprep.subr.bf16.mxu0 0
    %3098 = vmatpush1.bf16.msra.mxu0 %v3007
    %3099 = vmatprep.subr.bf16.mxu0 0
    %3100 = vmatpush1.bf16.msra.mxu0 %v3006
    %3101 = vmatprep.subr.bf16.mxu0 0
    %3102 = vmatpush1.bf16.msra.mxu0 %v3005
    %3103 = vmatprep.subr.bf16.mxu0 0
    %3104 = vmatpush1.bf16.msra.mxu0 %v3004
    %3105 = vmatprep.subr.bf16.mxu0 0
    %3106 = vmatpush1.bf16.msra.mxu0 %v3003
    %3107 = vmatprep.subr.bf16.mxu0 0
    %3108 = vmatpush1.bf16.msra.mxu0 %v3002
    %3109 = vmatprep.subr.bf16.mxu0 0
    %3110 = vmatpush1.bf16.msra.mxu0 %v3001
    %3111 = vmatprep.subr.bf16.mxu0 0
    %3112 = vmatpush1.bf16.msra.mxu0 %v3000
    %3113 = vmatprep.subr.bf16.mxu0 0
    %3114 = vmatpush2.bf16.msra.mxu0 %v3015
    %3115 = vmatprep.subr.bf16.mxu0 0
    %3116 = vmatpush2.bf16.msra.mxu0 %v3014
    %3117 = vmatprep.subr.bf16.mxu0 0
    %3118 = vmatpush2.bf16.msra.mxu0 %v3013
    %3119 = vmatprep.subr.bf16.mxu0 0
    %3120 = vmatpush2.bf16.msra.mxu0 %v3012
    %3121 = vmatprep.subr.bf16.mxu0 0
    %3122 = vmatpush2.bf16.msra.mxu0 %v3011
    %3123 = vmatprep.subr.bf16.mxu0 0
    %3124 = vmatpush2.bf16.msra.mxu0 %v3010
    %3125 = vmatprep.subr.bf16.mxu0 0
    %3126 = vmatpush2.bf16.msra.mxu0 %v3009
    %3127 = vmatprep.subr.bf16.mxu0 0
    %3128 = vmatpush2.bf16.msra.mxu0 %v3008
    %3129 = vmatprep.mubr.bf16.mxu0 %v2780
    %3130 = vmatmul.mubr.bf16.gmra.mxu0 %v2779
    %v3131 = vpop.f32.mrf.mxu0
    %v3132 = vadd.f32 %v3083, %v3131
    %v3133 = vpop.f32.mrf.mxu0
    %v3134 = vpop.f32.mrf.mxu0
    %v3135 = vadd.f32 %v3086, %v3134
    %v3136 = vpop.f32.mrf.mxu0
    %3137 = vmatprep.mubr.bf16.mxu0 %v2784
    %3138 = vmatmul.mubr.bf16.gmra.mxu0 %v2783
    %v3139 = vpop.f32.mrf.mxu0
    %v3140 = vadd.f32 %v3091, %v3139
    %v3141 = vpop.f32.mrf.mxu0
    %v3142 = vpop.f32.mrf.mxu0
    %v3143 = vadd.f32 %v3094, %v3142
    %v3144 = vpop.f32.mrf.mxu0
    %3145 = vdwg.mxu0
    %v3146 = vadd.f32 %v2435, %v3132
    %v3147 = vadd.f32 %v2436, %v3135
    %v3148 = vadd.f32 %v2437, %v3140
    %v3149 = vadd.f32 %v2438, %v3143
    %v3150 = vld [vmem:[#allocation19] sm:$0x1]
    %v3151 = vld [vmem:[#allocation21] sm:$0x1]
    %3152 = vadd.xlane.f32.xlu0 %v3146
    %v3153 = vpop.xlane.xlu0 %3152
    %3154 = vadd.xlane.f32.xlu0 %v3147
    %v3155 = vpop.xlane.xlu0 %3154
    %3156 = vadd.xlane.f32.xlu0 %v3148
    %v3157 = vpop.xlane.xlu0 %3156
    %3158 = vadd.xlane.f32.xlu0 %v3149
    %v3159 = vpop.xlane.xlu0 %3158
    %v3160 = vmul.f32 %v3153, %v2382
    %v3161 = vmul.f32 %v3155, %v2382
    %v3162 = vmul.f32 %v3157, %v2382
    %v3163 = vmul.f32 %v3159, %v2382
    %v3164 = vsub.f32 %v3146, %v3160
    %v3165 = vsub.f32 %v3147, %v3161
    %v3166 = vsub.f32 %v3148, %v3162
    %v3167 = vsub.f32 %v3149, %v3163
    %v3168 = vmul.f32 %v3164, %v3164
    %v3169 = vmul.f32 %v3165, %v3165
    %v3170 = vmul.f32 %v3166, %v3166
    %v3171 = vmul.f32 %v3167, %v3167
    %3172 = vadd.xlane.f32.xlu0 %v3168
    %v3173 = vpop.xlane.xlu0 %3172
    %3174 = vadd.xlane.f32.xlu0 %v3169
    %v3175 = vpop.xlane.xlu0 %3174
    %3176 = vadd.xlane.f32.xlu0 %v3170
    %v3177 = vpop.xlane.xlu0 %3176
    %3178 = vadd.xlane.f32.xlu0 %v3171
    %v3179 = vpop.xlane.xlu0 %3178
    %v3180 = vmul.f32 %v3173, %v2382
    %v3181 = vmul.f32 %v3175, %v2382
    %v3182 = vmul.f32 %v3177, %v2382
    %v3183 = vmul.f32 %v3179, %v2382
    %v3184 = vadd.f32 %v3180, 1e-05
    %v3185 = vadd.f32 %v3181, 1e-05
    %v3186 = vadd.f32 %v3182, 1e-05
    %v3187 = vadd.f32 %v3183, 1e-05
    %v3188 = vrsqrt.pop %v3184
    %v3189 = vrsqrt.pop %v3185
    %v3190 = vrsqrt.pop %v3186
    %v3191 = vrsqrt.pop %v3187
    %v3192 = vmul.f32 %v3164, %v3188
    %v3193 = vmul.f32 %v3165, %v3189
    %v3194 = vmul.f32 %v3166, %v3190
    %v3195 = vmul.f32 %v3167, %v3191
    %v3197 = vlaneseq
    %v3198 = vshrl.u32 %v3197, 7
    %v3199 = vsub.s32 0, %v3198
    %v3200 = vrot.slane %v3150, %v3199
    %v3202 = vmul.f32 %v3192, %v3200
    %v3203 = vmul.f32 %v3193, %v3200
    %v3204 = vmul.f32 %v3194, %v3200
    %v3205 = vmul.f32 %v3195, %v3200
    %v3207 = vlaneseq
    %v3208 = vshrl.u32 %v3207, 7
    %v3209 = vsub.s32 0, %v3208
    %v3210 = vrot.slane %v3151, %v3209
    %v3212 = vadd.f32 %v3202, %v3210
    %v3213 = vadd.f32 %v3203, %v3210
    %v3214 = vadd.f32 %v3204, %v3210
    %v3215 = vadd.f32 %v3205, %v3210
    %v3216 = vpack.c.bf16 %v3213, %v3212
    %v3217 = vpack.c.bf16 %v3215, %v3214
    %s3218 = scalar_lea.vmem [#allocation4], 192
    %v3219 = vld [vmem:[%s3218] sm:$0xff]
    %v3220 = vld [vmem:[%s3218 + $0x8] sm:$0xf]
    %v3221 = vld [vmem:[%s3218 + $0xc] sm:$0xff]
    %v3222 = vld [vmem:[%s3218 + $0x14] sm:$0xf]
    %v3223 = vld [vmem:[%s3218 + $0x18] sm:$0xff]
    %v3224 = vld [vmem:[%s3218 + $0x20] sm:$0xf]
    %v3225 = vld [vmem:[%s3218 + $0x24] sm:$0xff]
    %v3226 = vld [vmem:[%s3218 + $0x2c] sm:$0xf]
    %v3227 = vld [vmem:[%s3218 + $0x30] sm:$0xff]
    %v3228 = vld [vmem:[%s3218 + $0x38] sm:$0xf]
    %v3229 = vld [vmem:[%s3218 + $0x3c] sm:$0xff]
    %v3230 = vld [vmem:[%s3218 + $0x44] sm:$0xf]
    %v3231 = vld [vmem:[%s3218 + $0x48] sm:$0xff]
    %v3232 = vld [vmem:[%s3218 + $0x50] sm:$0xf]
    %v3233 = vld [vmem:[%s3218 + $0x54] sm:$0xff]
    %v3234 = vld [vmem:[%s3218 + $0x5c] sm:$0xf]
    %v3235 = vld [vmem:[%s3218 + $0x60] sm:$0xff]
    %v3236 = vld [vmem:[%s3218 + $0x68] sm:$0xf]
    %v3237 = vld [vmem:[%s3218 + $0x6c] sm:$0xff]
    %v3238 = vld [vmem:[%s3218 + $0x74] sm:$0xf]
    %v3239 = vld [vmem:[%s3218 + $0x78] sm:$0xff]
    %v3240 = vld [vmem:[%s3218 + $0x80] sm:$0xf]
    %v3241 = vld [vmem:[%s3218 + $0x84] sm:$0xff]
    %v3242 = vld [vmem:[%s3218 + $0x8c] sm:$0xf]
    %v3243 = vld [vmem:[%s3218 + $0x90] sm:$0xff]
    %v3244 = vld [vmem:[%s3218 + $0x98] sm:$0xf]
    %v3245 = vld [vmem:[%s3218 + $0x9c] sm:$0xff]
    %v3246 = vld [vmem:[%s3218 + $0xa4] sm:$0xf]
    %v3247 = vld [vmem:[%s3218 + $0xa8] sm:$0xff]
    %v3248 = vld [vmem:[%s3218 + $0xb0] sm:$0xf]
    %v3249 = vld [vmem:[%s3218 + $0xb4] sm:$0xff]
    %v3250 = vld [vmem:[%s3218 + $0xbc] sm:$0xf]
    %s3251 = scalar_lea.vmem [#allocation6], 3
    %v3252 = vld [vmem:[%s3251] sm:$0x7]
    %v3254 = vlaneseq
    %v3255 = vshrl.u32 %v3254, 7
    %v3256 = vsub.s32 0, %v3255
    %v3257 = vrot.slane %v3252, %v3256
    %v3258 = vlaneseq
    %v3259 = vshrl.u32 %v3258, 7
    %v3260 = vsub.s32 1, %v3259
    %v3261 = vrot.slane %v3252, %v3260
    %v3262 = vlaneseq
    %v3263 = vshrl.u32 %v3262, 7
    %v3264 = vsub.s32 2, %v3263
    %v3265 = vrot.slane %v3252, %v3264
    %v3301 = vunpack.c.l.b16 %v3219
    %v3302 = vunpack.c.h.b16 %v3219
    %v3303 = vunpack.c.l.b16 %v3220
    %v3304 = vunpack.c.l.b16 %v3221
    %v3305 = vunpack.c.h.b16 %v3221
    %v3306 = vunpack.c.l.b16 %v3222
    %v3307 = vunpack.c.l.b16 %v3223
    %v3308 = vunpack.c.h.b16 %v3223
    %v3309 = vunpack.c.l.b16 %v3224
    %v3310 = vunpack.c.l.b16 %v3225
    %v3311 = vunpack.c.h.b16 %v3225
    %v3312 = vunpack.c.l.b16 %v3226
    %v3313 = vunpack.c.l.b16 %v3227
    %v3314 = vunpack.c.h.b16 %v3227
    %v3315 = vunpack.c.l.b16 %v3228
    %v3316 = vunpack.c.l.b16 %v3229
    %v3317 = vunpack.c.h.b16 %v3229
    %v3318 = vunpack.c.l.b16 %v3230
    %v3319 = vunpack.c.l.b16 %v3231
    %v3320 = vunpack.c.h.b16 %v3231
    %v3321 = vunpack.c.l.b16 %v3232
    %v3322 = vunpack.c.l.b16 %v3233
    %v3323 = vunpack.c.h.b16 %v3233
    %v3324 = vunpack.c.l.b16 %v3234
    %v3325 = vunpack.c.l.b16 %v3235
    %v3326 = vunpack.c.h.b16 %v3235
    %v3327 = vunpack.c.l.b16 %v3236
    %v3328 = vunpack.c.l.b16 %v3237
    %v3329 = vunpack.c.h.b16 %v3237
    %v3330 = vunpack.c.l.b16 %v3238
    %v3331 = vunpack.c.l.b16 %v3239
    %v3332 = vunpack.c.h.b16 %v3239
    %v3333 = vunpack.c.l.b16 %v3240
    %v3334 = vunpack.c.l.b16 %v3241
    %v3335 = vunpack.c.h.b16 %v3241
    %v3336 = vunpack.c.l.b16 %v3242
    %v3337 = vunpack.c.l.b16 %v3243
    %v3338 = vunpack.c.h.b16 %v3243
    %v3339 = vunpack.c.l.b16 %v3244
    %v3340 = vunpack.c.l.b16 %v3245
    %v3341 = vunpack.c.h.b16 %v3245
    %v3342 = vunpack.c.l.b16 %v3246
    %v3343 = vunpack.c.l.b16 %v3247
    %v3344 = vunpack.c.h.b16 %v3247
    %v3345 = vunpack.c.l.b16 %v3248
    %v3346 = vunpack.c.l.b16 %v3249
    %v3347 = vunpack.c.h.b16 %v3249
    %v3348 = vunpack.c.l.b16 %v3250
    %v3349 = vpack.c.b16 %v3304, %v3301
    %v3350 = vpack.c.b16 %v3305, %v3302
    %v3351 = vpack.c.b16 %v3306, %v3303
    %v3352 = vpack.c.b16 %v3310, %v3307
    %v3353 = vpack.c.b16 %v3311, %v3308
    %v3354 = vpack.c.b16 %v3312, %v3309
    %v3355 = vpack.c.b16 %v3316, %v3313
    %v3356 = vpack.c.b16 %v3317, %v3314
    %v3357 = vpack.c.b16 %v3318, %v3315
    %v3358 = vpack.c.b16 %v3322, %v3319
    %v3359 = vpack.c.b16 %v3323, %v3320
    %v3360 = vpack.c.b16 %v3324, %v3321
    %v3361 = vpack.c.b16 %v3328, %v3325
    %v3362 = vpack.c.b16 %v3329, %v3326
    %v3363 = vpack.c.b16 %v3330, %v3327
    %v3364 = vpack.c.b16 %v3334, %v3331
    %v3365 = vpack.c.b16 %v3335, %v3332
    %v3366 = vpack.c.b16 %v3336, %v3333
    %v3367 = vpack.c.b16 %v3340, %v3337
    %v3368 = vpack.c.b16 %v3341, %v3338
    %v3369 = vpack.c.b16 %v3342, %v3339
    %v3370 = vpack.c.b16 %v3346, %v3343
    %v3371 = vpack.c.b16 %v3347, %v3344
    %v3372 = vpack.c.b16 %v3348, %v3345
    %3397 = vmatprep.subr.bf16.mxu0 %v3371
    %3398 = vmatpush1.bf16.msra.mxu0 %v3370
    %3399 = vmatprep.subr.bf16.mxu0 %v3368
    %3400 = vmatpush1.bf16.msra.mxu0 %v3367
    %3401 = vmatprep.subr.bf16.mxu0 %v3365
    %3402 = vmatpush1.bf16.msra.mxu0 %v3364
    %3403 = vmatprep.subr.bf16.mxu0 %v3362
    %3404 = vmatpush1.bf16.msra.mxu0 %v3361
    %3405 = vmatprep.subr.bf16.mxu0 %v3359
    %3406 = vmatpush1.bf16.msra.mxu0 %v3358
    %3407 = vmatprep.subr.bf16.mxu0 %v3356
    %3408 = vmatpush1.bf16.msra.mxu0 %v3355
    %3409 = vmatprep.subr.bf16.mxu0 %v3353
    %3410 = vmatpush1.bf16.msra.mxu0 %v3352
    %3411 = vmatprep.subr.bf16.mxu0 %v3350
    %3412 = vmatpush1.bf16.msra.mxu0 %v3349
    %3413 = vmatprep.subr.bf16.mxu0 0
    %3414 = vmatpush2.bf16.msra.mxu0 0
    %3415 = vmatprep.subr.bf16.mxu0 0
    %3416 = vmatpush2.bf16.msra.mxu0 0
    %3417 = vmatprep.subr.bf16.mxu0 0
    %3418 = vmatpush2.bf16.msra.mxu0 0
    %3419 = vmatprep.subr.bf16.mxu0 0
    %3420 = vmatpush2.bf16.msra.mxu0 0
    %3421 = vmatprep.subr.bf16.mxu0 0
    %3422 = vmatpush2.bf16.msra.mxu0 0
    %3423 = vmatprep.subr.bf16.mxu0 0
    %3424 = vmatpush2.bf16.msra.mxu0 0
    %3425 = vmatprep.subr.bf16.mxu0 0
    %3426 = vmatpush2.bf16.msra.mxu0 0
    %3427 = vmatprep.subr.bf16.mxu0 0
    %3428 = vmatpush2.bf16.msra.mxu0 0
    %3429 = vmatprep.mubr.bf16.mxu0 0
    %3430 = vmatmul.mubr.bf16.gmra.mxu0 %v3216
    %v3431 = vpop.f32.mrf.mxu0
    %v3432 = vadd.f32 %v3257, %v3431
    %v3433 = vpop.f32.mrf.mxu0
    %v3434 = vadd.f32 %v3261, %v3433
    %v3435 = vpop.f32.mrf.mxu0
    %v3436 = vadd.f32 %v3257, %v3435
    %v3437 = vpop.f32.mrf.mxu0
    %v3438 = vadd.f32 %v3261, %v3437
    %3439 = vmatprep.mubr.bf16.mxu0 0
    %3440 = vmatmul.mubr.bf16.gmra.mxu0 %v3217
    %v3441 = vpop.f32.mrf.mxu0
    %v3442 = vadd.f32 %v3257, %v3441
    %v3443 = vpop.f32.mrf.mxu0
    %v3444 = vadd.f32 %v3261, %v3443
    %v3445 = vpop.f32.mrf.mxu0
    %v3446 = vadd.f32 %v3257, %v3445
    %v3447 = vpop.f32.mrf.mxu0
    %v3448 = vadd.f32 %v3261, %v3447
    %3449 = vdwg.mxu0
    %3450 = vmatprep.subr.bf16.mxu0 0
    %3451 = vmatpush1.bf16.msra.mxu0 %v3372
    %3452 = vmatprep.subr.bf16.mxu0 0
    %3453 = vmatpush1.bf16.msra.mxu0 %v3369
    %3454 = vmatprep.subr.bf16.mxu0 0
    %3455 = vmatpush1.bf16.msra.mxu0 %v3366
    %3456 = vmatprep.subr.bf16.mxu0 0
    %3457 = vmatpush1.bf16.msra.mxu0 %v3363
    %3458 = vmatprep.subr.bf16.mxu0 0
    %3459 = vmatpush1.bf16.msra.mxu0 %v3360
    %3460 = vmatprep.subr.bf16.mxu0 0
    %3461 = vmatpush1.bf16.msra.mxu0 %v3357
    %3462 = vmatprep.subr.bf16.mxu0 0
    %3463 = vmatpush1.bf16.msra.mxu0 %v3354
    %3464 = vmatprep.subr.bf16.mxu0 0
    %3465 = vmatpush1.bf16.msra.mxu0 %v3351
    %3466 = vmatprep.subr.bf16.mxu0 0
    %3467 = vmatpush2.bf16.msra.mxu0 0
    %3468 = vmatprep.subr.bf16.mxu0 0
    %3469 = vmatpush2.bf16.msra.mxu0 0
    %3470 = vmatprep.subr.bf16.mxu0 0
    %3471 = vmatpush2.bf16.msra.mxu0 0
    %3472 = vmatprep.subr.bf16.mxu0 0
    %3473 = vmatpush2.bf16.msra.mxu0 0
    %3474 = vmatprep.subr.bf16.mxu0 0
    %3475 = vmatpush2.bf16.msra.mxu0 0
    %3476 = vmatprep.subr.bf16.mxu0 0
    %3477 = vmatpush2.bf16.msra.mxu0 0
    %3478 = vmatprep.subr.bf16.mxu0 0
    %3479 = vmatpush2.bf16.msra.mxu0 0
    %3480 = vmatprep.subr.bf16.mxu0 0
    %3481 = vmatpush2.bf16.msra.mxu0 0
    %3482 = vmatprep.mubr.bf16.mxu0 0
    %3483 = vmatmul.mubr.bf16.gmra.mxu0 %v3216
    %v3484 = vpop.f32.mrf.mxu0
    %v3485 = vadd.f32 %v3265, %v3484
    %v3486 = vpop.f32.mrf.mxu0
    %v3487 = vpop.f32.mrf.mxu0
    %v3488 = vadd.f32 %v3265, %v3487
    %v3489 = vpop.f32.mrf.mxu0
    %3490 = vmatprep.mubr.bf16.mxu0 0
    %3491 = vmatmul.mubr.bf16.gmra.mxu0 %v3217
    %v3492 = vpop.f32.mrf.mxu0
    %v3493 = vadd.f32 %v3265, %v3492
    %v3494 = vpop.f32.mrf.mxu0
    %v3495 = vpop.f32.mrf.mxu0
    %v3496 = vadd.f32 %v3265, %v3495
    %v3497 = vpop.f32.mrf.mxu0
    %3498 = vdwg.mxu0
    %v3503 = vcombine.high %v3432, %v3432
    %v3505 = vunpack.c.l.s4 1966171168
    %v3506 = vunpack.c.0.s8 %v3505
    %v3507 = vlaneseq
    %v3508 = vshrl.u32 %v3507, 7
    %v3509 = vsub.s32 %v3506, %v3508
    %v3510 = vrot.slane %v3432, %v3509
    %v3512 = vunpack.c.l.s4 1966171168
    %v3513 = vunpack.c.0.s8 %v3512
    %v3514 = vlaneseq
    %v3515 = vshrl.u32 %v3514, 7
    %v3516 = vsub.s32 %v3513, %v3515
    %v3517 = vrot.slane %v3503, %v3516
    %v3518 = vcombine.high %v3510, %v3510
    %v3519 = vcombine.high %v3517, %v3517
    %v3521 = vunpack.c.l.s4 1966171168
    %v3522 = vunpack.c.0.s8 %v3521
    %v3523 = vlaneseq
    %v3524 = vshrl.u32 %v3523, 7
    %v3525 = vsub.s32 %v3522, %v3524
    %v3526 = vrot.slane %v3510, %v3525
    %v3528 = vunpack.c.l.s4 1966171168
    %v3529 = vunpack.c.0.s8 %v3528
    %v3530 = vlaneseq
    %v3531 = vshrl.u32 %v3530, 7
    %v3532 = vsub.s32 %v3529, %v3531
    %v3533 = vrot.slane %v3517, %v3532
    %v3535 = vunpack.c.l.s4 1966171168
    %v3536 = vunpack.c.0.s8 %v3535
    %v3537 = vlaneseq
    %v3538 = vshrl.u32 %v3537, 7
    %v3539 = vsub.s32 %v3536, %v3538
    %v3540 = vrot.slane %v3518, %v3539
    %v3542 = vunpack.c.l.s4 1966171168
    %v3543 = vunpack.c.0.s8 %v3542
    %v3544 = vlaneseq
    %v3545 = vshrl.u32 %v3544, 7
    %v3546 = vsub.s32 %v3543, %v3545
    %v3547 = vrot.slane %v3519, %v3546
    %v3548 = vcombine.high %v3526, %v3526
    %v3549 = vcombine.high %v3533, %v3533
    %v3550 = vcombine.high %v3540, %v3540
    %v3551 = vcombine.high %v3547, %v3547
    %v3552 = vcombine.high %v3436, %v3436
    %v3554 = vunpack.c.l.s4 1966171168
    %v3555 = vunpack.c.0.s8 %v3554
    %v3556 = vlaneseq
    %v3557 = vshrl.u32 %v3556, 7
    %v3558 = vsub.s32 %v3555, %v3557
    %v3559 = vrot.slane %v3436, %v3558
    %v3561 = vunpack.c.l.s4 1966171168
    %v3562 = vunpack.c.0.s8 %v3561
    %v3563 = vlaneseq
    %v3564 = vshrl.u32 %v3563, 7
    %v3565 = vsub.s32 %v3562, %v3564
    %v3566 = vrot.slane %v3552, %v3565
    %v3567 = vcombine.high %v3559, %v3559
    %v3568 = vcombine.high %v3566, %v3566
    %v3570 = vunpack.c.l.s4 1966171168
    %v3571 = vunpack.c.0.s8 %v3570
    %v3572 = vlaneseq
    %v3573 = vshrl.u32 %v3572, 7
    %v3574 = vsub.s32 %v3571, %v3573
    %v3575 = vrot.slane %v3559, %v3574
    %v3577 = vunpack.c.l.s4 1966171168
    %v3578 = vunpack.c.0.s8 %v3577
    %v3579 = vlaneseq
    %v3580 = vshrl.u32 %v3579, 7
    %v3581 = vsub.s32 %v3578, %v3580
    %v3582 = vrot.slane %v3566, %v3581
    %v3584 = vunpack.c.l.s4 1966171168
    %v3585 = vunpack.c.0.s8 %v3584
    %v3586 = vlaneseq
    %v3587 = vshrl.u32 %v3586, 7
    %v3588 = vsub.s32 %v3585, %v3587
    %v3589 = vrot.slane %v3567, %v3588
    %v3591 = vunpack.c.l.s4 1966171168
    %v3592 = vunpack.c.0.s8 %v3591
    %v3593 = vlaneseq
    %v3594 = vshrl.u32 %v3593, 7
    %v3595 = vsub.s32 %v3592, %v3594
    %v3596 = vrot.slane %v3568, %v3595
    %v3597 = vcombine.high %v3575, %v3575
    %v3598 = vcombine.high %v3582, %v3582
    %v3599 = vcombine.high %v3589, %v3589
    %v3600 = vcombine.high %v3596, %v3596
    %v3601 = vcombine.high %v3442, %v3442
    %v3603 = vunpack.c.l.s4 1966171168
    %v3604 = vunpack.c.0.s8 %v3603
    %v3605 = vlaneseq
    %v3606 = vshrl.u32 %v3605, 7
    %v3607 = vsub.s32 %v3604, %v3606
    %v3608 = vrot.slane %v3442, %v3607
    %v3610 = vunpack.c.l.s4 1966171168
    %v3611 = vunpack.c.0.s8 %v3610
    %v3612 = vlaneseq
    %v3613 = vshrl.u32 %v3612, 7
    %v3614 = vsub.s32 %v3611, %v3613
    %v3615 = vrot.slane %v3601, %v3614
    %v3616 = vcombine.high %v3608, %v3608
    %v3617 = vcombine.high %v3615, %v3615
    %v3619 = vunpack.c.l.s4 1966171168
    %v3620 = vunpack.c.0.s8 %v3619
    %v3621 = vlaneseq
    %v3622 = vshrl.u32 %v3621, 7
    %v3623 = vsub.s32 %v3620, %v3622
    %v3624 = vrot.slane %v3608, %v3623
    %v3626 = vunpack.c.l.s4 1966171168
    %v3627 = vunpack.c.0.s8 %v3626
    %v3628 = vlaneseq
    %v3629 = vshrl.u32 %v3628, 7
    %v3630 = vsub.s32 %v3627, %v3629
    %v3631 = vrot.slane %v3615, %v3630
    %v3633 = vunpack.c.l.s4 1966171168
    %v3634 = vunpack.c.0.s8 %v3633
    %v3635 = vlaneseq
    %v3636 = vshrl.u32 %v3635, 7
    %v3637 = vsub.s32 %v3634, %v3636
    %v3638 = vrot.slane %v3616, %v3637
    %v3640 = vunpack.c.l.s4 1966171168
    %v3641 = vunpack.c.0.s8 %v3640
    %v3642 = vlaneseq
    %v3643 = vshrl.u32 %v3642, 7
    %v3644 = vsub.s32 %v3641, %v3643
    %v3645 = vrot.slane %v3617, %v3644
    %v3646 = vcombine.high %v3624, %v3624
    %v3647 = vcombine.high %v3631, %v3631
    %v3648 = vcombine.high %v3638, %v3638
    %v3649 = vcombine.high %v3645, %v3645
    %v3650 = vcombine.high %v3446, %v3446
    %v3652 = vunpack.c.l.s4 1966171168
    %v3653 = vunpack.c.0.s8 %v3652
    %v3654 = vlaneseq
    %v3655 = vshrl.u32 %v3654, 7
    %v3656 = vsub.s32 %v3653, %v3655
    %v3657 = vrot.slane %v3446, %v3656
    %v3659 = vunpack.c.l.s4 1966171168
    %v3660 = vunpack.c.0.s8 %v3659
    %v3661 = vlaneseq
    %v3662 = vshrl.u32 %v3661, 7
    %v3663 = vsub.s32 %v3660, %v3662
    %v3664 = vrot.slane %v3650, %v3663
    %v3665 = vcombine.high %v3657, %v3657
    %v3666 = vcombine.high %v3664, %v3664
    %v3668 = vunpack.c.l.s4 1966171168
    %v3669 = vunpack.c.0.s8 %v3668
    %v3670 = vlaneseq
    %v3671 = vshrl.u32 %v3670, 7
    %v3672 = vsub.s32 %v3669, %v3671
    %v3673 = vrot.slane %v3657, %v3672
    %v3675 = vunpack.c.l.s4 1966171168
    %v3676 = vunpack.c.0.s8 %v3675
    %v3677 = vlaneseq
    %v3678 = vshrl.u32 %v3677, 7
    %v3679 = vsub.s32 %v3676, %v3678
    %v3680 = vrot.slane %v3664, %v3679
    %v3682 = vunpack.c.l.s4 1966171168
    %v3683 = vunpack.c.0.s8 %v3682
    %v3684 = vlaneseq
    %v3685 = vshrl.u32 %v3684, 7
    %v3686 = vsub.s32 %v3683, %v3685
    %v3687 = vrot.slane %v3665, %v3686
    %v3689 = vunpack.c.l.s4 1966171168
    %v3690 = vunpack.c.0.s8 %v3689
    %v3691 = vlaneseq
    %v3692 = vshrl.u32 %v3691, 7
    %v3693 = vsub.s32 %v3690, %v3692
    %v3694 = vrot.slane %v3666, %v3693
    %v3695 = vcombine.high %v3673, %v3673
    %v3696 = vcombine.high %v3680, %v3680
    %v3697 = vcombine.high %v3687, %v3687
    %v3698 = vcombine.high %v3694, %v3694
    %v3703 = vcombine.high %v3434, %v3434
    %v3704 = vcombine.high %v3438, %v3438
    %v3705 = vcombine.high %v3444, %v3444
    %v3706 = vcombine.high %v3448, %v3448
    %v3711 = vlaneseq
    %v3712 = vshrl.u32 %v3711, 7
    %v3713 = vsub.s32 0, %v3712
    %v3714 = vrot.slane %v3526, %v3713
    %v3715 = vlaneseq
    %v3716 = vshrl.u32 %v3715, 7
    %v3717 = vsub.s32 0, %v3716
    %v3718 = vrot.slane %v3540, %v3717
    %v3719 = vlaneseq
    %v3720 = vshrl.u32 %v3719, 7
    %v3721 = vsub.s32 0, %v3720
    %v3722 = vrot.slane %v3548, %v3721
    %v3723 = vlaneseq
    %v3724 = vshrl.u32 %v3723, 7
    %v3725 = vsub.s32 0, %v3724
    %v3726 = vrot.slane %v3550, %v3725
    %v3727 = vlaneseq
    %v3728 = vshrl.u32 %v3727, 7
    %v3729 = vsub.s32 0, %v3728
    %v3730 = vrot.slane %v3533, %v3729
    %v3731 = vlaneseq
    %v3732 = vshrl.u32 %v3731, 7
    %v3733 = vsub.s32 0, %v3732
    %v3734 = vrot.slane %v3547, %v3733
    %v3735 = vlaneseq
    %v3736 = vshrl.u32 %v3735, 7
    %v3737 = vsub.s32 0, %v3736
    %v3738 = vrot.slane %v3549, %v3737
    %v3739 = vlaneseq
    %v3740 = vshrl.u32 %v3739, 7
    %v3741 = vsub.s32 0, %v3740
    %v3742 = vrot.slane %v3551, %v3741
    %v3743 = vlaneseq
    %v3744 = vshrl.u32 %v3743, 7
    %v3745 = vsub.s32 0, %v3744
    %v3746 = vrot.slane %v3575, %v3745
    %v3747 = vlaneseq
    %v3748 = vshrl.u32 %v3747, 7
    %v3749 = vsub.s32 0, %v3748
    %v3750 = vrot.slane %v3589, %v3749
    %v3751 = vlaneseq
    %v3752 = vshrl.u32 %v3751, 7
    %v3753 = vsub.s32 0, %v3752
    %v3754 = vrot.slane %v3597, %v3753
    %v3755 = vlaneseq
    %v3756 = vshrl.u32 %v3755, 7
    %v3757 = vsub.s32 0, %v3756
    %v3758 = vrot.slane %v3599, %v3757
    %v3759 = vlaneseq
    %v3760 = vshrl.u32 %v3759, 7
    %v3761 = vsub.s32 0, %v3760
    %v3762 = vrot.slane %v3582, %v3761
    %v3763 = vlaneseq
    %v3764 = vshrl.u32 %v3763, 7
    %v3765 = vsub.s32 0, %v3764
    %v3766 = vrot.slane %v3596, %v3765
    %v3767 = vlaneseq
    %v3768 = vshrl.u32 %v3767, 7
    %v3769 = vsub.s32 0, %v3768
    %v3770 = vrot.slane %v3598, %v3769
    %v3771 = vlaneseq
    %v3772 = vshrl.u32 %v3771, 7
    %v3773 = vsub.s32 0, %v3772
    %v3774 = vrot.slane %v3600, %v3773
    %v3775 = vlaneseq
    %v3776 = vshrl.u32 %v3775, 7
    %v3777 = vsub.s32 0, %v3776
    %v3778 = vrot.slane %v3624, %v3777
    %v3779 = vlaneseq
    %v3780 = vshrl.u32 %v3779, 7
    %v3781 = vsub.s32 0, %v3780
    %v3782 = vrot.slane %v3638, %v3781
    %v3783 = vlaneseq
    %v3784 = vshrl.u32 %v3783, 7
    %v3785 = vsub.s32 0, %v3784
    %v3786 = vrot.slane %v3646, %v3785
    %v3787 = vlaneseq
    %v3788 = vshrl.u32 %v3787, 7
    %v3789 = vsub.s32 0, %v3788
    %v3790 = vrot.slane %v3648, %v3789
    %v3791 = vlaneseq
    %v3792 = vshrl.u32 %v3791, 7
    %v3793 = vsub.s32 0, %v3792
    %v3794 = vrot.slane %v3631, %v3793
    %v3795 = vlaneseq
    %v3796 = vshrl.u32 %v3795, 7
    %v3797 = vsub.s32 0, %v3796
    %v3798 = vrot.slane %v3645, %v3797
    %v3799 = vlaneseq
    %v3800 = vshrl.u32 %v3799, 7
    %v3801 = vsub.s32 0, %v3800
    %v3802 = vrot.slane %v3647, %v3801
    %v3803 = vlaneseq
    %v3804 = vshrl.u32 %v3803, 7
    %v3805 = vsub.s32 0, %v3804
    %v3806 = vrot.slane %v3649, %v3805
    %v3807 = vlaneseq
    %v3808 = vshrl.u32 %v3807, 7
    %v3809 = vsub.s32 0, %v3808
    %v3810 = vrot.slane %v3673, %v3809
    %v3811 = vlaneseq
    %v3812 = vshrl.u32 %v3811, 7
    %v3813 = vsub.s32 0, %v3812
    %v3814 = vrot.slane %v3687, %v3813
    %v3815 = vlaneseq
    %v3816 = vshrl.u32 %v3815, 7
    %v3817 = vsub.s32 0, %v3816
    %v3818 = vrot.slane %v3695, %v3817
    %v3819 = vlaneseq
    %v3820 = vshrl.u32 %v3819, 7
    %v3821 = vsub.s32 0, %v3820
    %v3822 = vrot.slane %v3697, %v3821
    %v3823 = vlaneseq
    %v3824 = vshrl.u32 %v3823, 7
    %v3825 = vsub.s32 0, %v3824
    %v3826 = vrot.slane %v3680, %v3825
    %v3827 = vlaneseq
    %v3828 = vshrl.u32 %v3827, 7
    %v3829 = vsub.s32 0, %v3828
    %v3830 = vrot.slane %v3694, %v3829
    %v3831 = vlaneseq
    %v3832 = vshrl.u32 %v3831, 7
    %v3833 = vsub.s32 0, %v3832
    %v3834 = vrot.slane %v3696, %v3833
    %v3835 = vlaneseq
    %v3836 = vshrl.u32 %v3835, 7
    %v3837 = vsub.s32 0, %v3836
    %v3838 = vrot.slane %v3698, %v3837
    %v3871 = vmul.f32 %v3714, %v3434
    %v3872 = vmul.f32 %v3718, %v3434
    %v3873 = vmul.f32 %v3722, %v3434
    %v3874 = vmul.f32 %v3726, %v3434
    %v3875 = vmul.f32 %v3730, %v3703
    %v3876 = vmul.f32 %v3734, %v3703
    %v3877 = vmul.f32 %v3738, %v3703
    %v3878 = vmul.f32 %v3742, %v3703
    %v3879 = vmul.f32 %v3746, %v3438
    %v3880 = vmul.f32 %v3750, %v3438
    %v3881 = vmul.f32 %v3754, %v3438
    %v3882 = vmul.f32 %v3758, %v3438
    %v3883 = vmul.f32 %v3762, %v3704
    %v3884 = vmul.f32 %v3766, %v3704
    %v3885 = vmul.f32 %v3770, %v3704
    %v3886 = vmul.f32 %v3774, %v3704
    %v3887 = vmul.f32 %v3778, %v3444
    %v3888 = vmul.f32 %v3782, %v3444
    %v3889 = vmul.f32 %v3786, %v3444
    %v3890 = vmul.f32 %v3790, %v3444
    %v3891 = vmul.f32 %v3794, %v3705
    %v3892 = vmul.f32 %v3798, %v3705
    %v3893 = vmul.f32 %v3802, %v3705
    %v3894 = vmul.f32 %v3806, %v3705
    %v3895 = vmul.f32 %v3810, %v3448
    %v3896 = vmul.f32 %v3814, %v3448
    %v3897 = vmul.f32 %v3818, %v3448
    %v3898 = vmul.f32 %v3822, %v3448
    %v3899 = vmul.f32 %v3826, %v3706
    %v3900 = vmul.f32 %v3830, %v3706
    %v3901 = vmul.f32 %v3834, %v3706
    %v3902 = vmul.f32 %v3838, %v3706
    %v3935 = vcombine.low %v3871, %v3872
    %v3936 = vcombine.low %v3873, %v3874
    %v3937 = vcombine.low %v3875, %v3876
    %v3938 = vcombine.low %v3877, %v3878
    %v3939 = vcombine.low %v3879, %v3880
    %v3940 = vcombine.low %v3881, %v3882
    %v3941 = vcombine.low %v3883, %v3884
    %v3942 = vcombine.low %v3885, %v3886
    %v3943 = vcombine.low %v3887, %v3888
    %v3944 = vcombine.low %v3889, %v3890
    %v3945 = vcombine.low %v3891, %v3892
    %v3946 = vcombine.low %v3893, %v3894
    %v3947 = vcombine.low %v3895, %v3896
    %v3948 = vcombine.low %v3897, %v3898
    %v3949 = vcombine.low %v3899, %v3900
    %v3950 = vcombine.low %v3901, %v3902
    %3967 = vmatprep.subr.mxu0 0.0
    %3968 = vmatpush1.msra.mxu0 %v261
    %3969 = vmatprep.subr.mxu0 0.0
    %3970 = vmatpush1.msra.mxu0 %v260
    %3971 = vmatprep.subr.mxu0 0.0
    %3972 = vmatpush1.msra.mxu0 %v259
    %3973 = vmatprep.subr.mxu0 0.0
    %3974 = vmatpush1.msra.mxu0 %v258
    %3975 = vmatprep.subr.mxu0 0.0
    %3976 = vmatpush1.msra.mxu0 %v257
    %3977 = vmatprep.subr.mxu0 0.0
    %3978 = vmatpush1.msra.mxu0 %v256
    %3979 = vmatprep.subr.mxu0 0.0
    %3980 = vmatpush1.msra.mxu0 %v255
    %3981 = vmatprep.subr.mxu0 0.0
    %3982 = vmatpush1.msra.mxu0 %v254
    %3983 = vmatprep.subr.mxu0 0.0
    %3984 = vmatpush1.msra.mxu0 %v253
    %3985 = vmatprep.subr.mxu0 0.0
    %3986 = vmatpush1.msra.mxu0 %v252
    %3987 = vmatprep.subr.mxu0 0.0
    %3988 = vmatpush1.msra.mxu0 %v251
    %3989 = vmatprep.subr.mxu0 0.0
    %3990 = vmatpush1.msra.mxu0 %v250
    %3991 = vmatprep.subr.mxu0 0.0
    %3992 = vmatpush1.msra.mxu0 %v249
    %3993 = vmatprep.subr.mxu0 0.0
    %3994 = vmatpush1.msra.mxu0 %v248
    %3995 = vmatprep.subr.mxu0 0.0
    %3996 = vmatpush1.msra.mxu0 %v247
    %3997 = vmatprep.subr.mxu0 0.0
    %3998 = vmatpush1.msra.mxu0 %v246
    %3999 = vmatprep.subr.mxu0 0.0
    %4000 = vmatpush2.msra.mxu0 0.0
    %4001 = vmatprep.subr.mxu0 0.0
    %4002 = vmatpush2.msra.mxu0 0.0
    %4003 = vmatprep.subr.mxu0 0.0
    %4004 = vmatpush2.msra.mxu0 0.0
    %4005 = vmatprep.subr.mxu0 0.0
    %4006 = vmatpush2.msra.mxu0 0.0
    %4007 = vmatprep.subr.mxu0 0.0
    %4008 = vmatpush2.msra.mxu0 0.0
    %4009 = vmatprep.subr.mxu0 0.0
    %4010 = vmatpush2.msra.mxu0 0.0
    %4011 = vmatprep.subr.mxu0 0.0
    %4012 = vmatpush2.msra.mxu0 0.0
    %4013 = vmatprep.subr.mxu0 0.0
    %4014 = vmatpush2.msra.mxu0 0.0
    %4015 = vmatprep.subr.mxu0 0.0
    %4016 = vmatpush2.msra.mxu0 0.0
    %4017 = vmatprep.subr.mxu0 0.0
    %4018 = vmatpush2.msra.mxu0 0.0
    %4019 = vmatprep.subr.mxu0 0.0
    %4020 = vmatpush2.msra.mxu0 0.0
    %4021 = vmatprep.subr.mxu0 0.0
    %4022 = vmatpush2.msra.mxu0 0.0
    %4023 = vmatprep.subr.mxu0 0.0
    %4024 = vmatpush2.msra.mxu0 0.0
    %4025 = vmatprep.subr.mxu0 0.0
    %4026 = vmatpush2.msra.mxu0 0.0
    %4027 = vmatprep.subr.mxu0 0.0
    %4028 = vmatpush2.msra.mxu0 0.0
    %4029 = vmatprep.subr.mxu0 0.0
    %4030 = vmatpush2.msra.mxu0 0.0
    %4031 = vmatprep.mubr.f32.mxu0 0.0
    %4032 = vmatmul.mubr.f32.gmra.mxu0 %v3935
    %v4033 = vpop.f32.mrf.mxu0
    %v4034 = vadd.f32 0.0, %v4033
    %v4035 = vpop.f32.mrf.mxu0
    %4036 = vmatprep.mubr.f32.mxu0 0.0
    %4037 = vmatmul.mubr.f32.gmra.mxu0 %v3936
    %v4038 = vpop.f32.mrf.mxu0
    %v4039 = vadd.f32 0.0, %v4038
    %v4040 = vpop.f32.mrf.mxu0
    %4041 = vmatprep.mubr.f32.mxu0 0.0
    %4042 = vmatmul.mubr.f32.gmra.mxu0 %v3937
    %v4043 = vpop.f32.mrf.mxu0
    %v4044 = vadd.f32 0.0, %v4043
    %v4045 = vpop.f32.mrf.mxu0
    %4046 = vmatprep.mubr.f32.mxu0 0.0
    %4047 = vmatmul.mubr.f32.gmra.mxu0 %v3938
    %v4048 = vpop.f32.mrf.mxu0
    %v4049 = vadd.f32 0.0, %v4048
    %v4050 = vpop.f32.mrf.mxu0
    %4051 = vmatprep.mubr.f32.mxu0 0.0
    %4052 = vmatmul.mubr.f32.gmra.mxu0 %v3939
    %v4053 = vpop.f32.mrf.mxu0
    %v4054 = vadd.f32 0.0, %v4053
    %v4055 = vpop.f32.mrf.mxu0
    %4056 = vmatprep.mubr.f32.mxu0 0.0
    %4057 = vmatmul.mubr.f32.gmra.mxu0 %v3940
    %v4058 = vpop.f32.mrf.mxu0
    %v4059 = vadd.f32 0.0, %v4058
    %v4060 = vpop.f32.mrf.mxu0
    %4061 = vmatprep.mubr.f32.mxu0 0.0
    %4062 = vmatmul.mubr.f32.gmra.mxu0 %v3941
    %v4063 = vpop.f32.mrf.mxu0
    %v4064 = vadd.f32 0.0, %v4063
    %v4065 = vpop.f32.mrf.mxu0
    %4066 = vmatprep.mubr.f32.mxu0 0.0
    %4067 = vmatmul.mubr.f32.gmra.mxu0 %v3942
    %v4068 = vpop.f32.mrf.mxu0
    %v4069 = vadd.f32 0.0, %v4068
    %v4070 = vpop.f32.mrf.mxu0
    %4071 = vmatprep.mubr.f32.mxu0 0.0
    %4072 = vmatmul.mubr.f32.gmra.mxu0 %v3943
    %v4073 = vpop.f32.mrf.mxu0
    %v4074 = vadd.f32 0.0, %v4073
    %v4075 = vpop.f32.mrf.mxu0
    %4076 = vmatprep.mubr.f32.mxu0 0.0
    %4077 = vmatmul.mubr.f32.gmra.mxu0 %v3944
    %v4078 = vpop.f32.mrf.mxu0
    %v4079 = vadd.f32 0.0, %v4078
    %v4080 = vpop.f32.mrf.mxu0
    %4081 = vmatprep.mubr.f32.mxu0 0.0
    %4082 = vmatmul.mubr.f32.gmra.mxu0 %v3945
    %v4083 = vpop.f32.mrf.mxu0
    %v4084 = vadd.f32 0.0, %v4083
    %v4085 = vpop.f32.mrf.mxu0
    %4086 = vmatprep.mubr.f32.mxu0 0.0
    %4087 = vmatmul.mubr.f32.gmra.mxu0 %v3946
    %v4088 = vpop.f32.mrf.mxu0
    %v4089 = vadd.f32 0.0, %v4088
    %v4090 = vpop.f32.mrf.mxu0
    %4091 = vmatprep.mubr.f32.mxu0 0.0
    %4092 = vmatmul.mubr.f32.gmra.mxu0 %v3947
    %v4093 = vpop.f32.mrf.mxu0
    %v4094 = vadd.f32 0.0, %v4093
    %v4095 = vpop.f32.mrf.mxu0
    %4096 = vmatprep.mubr.f32.mxu0 0.0
    %4097 = vmatmul.mubr.f32.gmra.mxu0 %v3948
    %v4098 = vpop.f32.mrf.mxu0
    %v4099 = vadd.f32 0.0, %v4098
    %v4100 = vpop.f32.mrf.mxu0
    %4101 = vmatprep.mubr.f32.mxu0 0.0
    %4102 = vmatmul.mubr.f32.gmra.mxu0 %v3949
    %v4103 = vpop.f32.mrf.mxu0
    %v4104 = vadd.f32 0.0, %v4103
    %v4105 = vpop.f32.mrf.mxu0
    %4106 = vmatprep.mubr.f32.mxu0 0.0
    %4107 = vmatmul.mubr.f32.gmra.mxu0 %v3950
    %v4108 = vpop.f32.mrf.mxu0
    %v4109 = vadd.f32 0.0, %v4108
    %v4110 = vpop.f32.mrf.mxu0
    %4111 = vdwg.mxu0
    %v4128 = vcombine.high %v4034, %v4034
    %v4129 = vcombine.high %v4039, %v4039
    %v4130 = vcombine.high %v4044, %v4044
    %v4131 = vcombine.high %v4049, %v4049
    %v4132 = vcombine.high %v4054, %v4054
    %v4133 = vcombine.high %v4059, %v4059
    %v4134 = vcombine.high %v4064, %v4064
    %v4135 = vcombine.high %v4069, %v4069
    %v4136 = vcombine.high %v4074, %v4074
    %v4137 = vcombine.high %v4079, %v4079
    %v4138 = vcombine.high %v4084, %v4084
    %v4139 = vcombine.high %v4089, %v4089
    %v4140 = vcombine.high %v4094, %v4094
    %v4141 = vcombine.high %v4099, %v4099
    %v4142 = vcombine.high %v4104, %v4104
    %v4143 = vcombine.high %v4109, %v4109
    %v4160 = vmul.f32 %v4034, 0.17677669
    %v4161 = vmul.f32 %v4128, 0.17677669
    %v4162 = vmul.f32 %v4039, 0.17677669
    %v4163 = vmul.f32 %v4129, 0.17677669
    %v4164 = vmul.f32 %v4044, 0.17677669
    %v4165 = vmul.f32 %v4130, 0.17677669
    %v4166 = vmul.f32 %v4049, 0.17677669
    %v4167 = vmul.f32 %v4131, 0.17677669
    %v4168 = vmul.f32 %v4054, 0.17677669
    %v4169 = vmul.f32 %v4132, 0.17677669
    %v4170 = vmul.f32 %v4059, 0.17677669
    %v4171 = vmul.f32 %v4133, 0.17677669
    %v4172 = vmul.f32 %v4064, 0.17677669
    %v4173 = vmul.f32 %v4134, 0.17677669
    %v4174 = vmul.f32 %v4069, 0.17677669
    %v4175 = vmul.f32 %v4135, 0.17677669
    %v4176 = vmul.f32 %v4074, 0.17677669
    %v4177 = vmul.f32 %v4136, 0.17677669
    %v4178 = vmul.f32 %v4079, 0.17677669
    %v4179 = vmul.f32 %v4137, 0.17677669
    %v4180 = vmul.f32 %v4084, 0.17677669
    %v4181 = vmul.f32 %v4138, 0.17677669
    %v4182 = vmul.f32 %v4089, 0.17677669
    %v4183 = vmul.f32 %v4139, 0.17677669
    %v4184 = vmul.f32 %v4094, 0.17677669
    %v4185 = vmul.f32 %v4140, 0.17677669
    %v4186 = vmul.f32 %v4099, 0.17677669
    %v4187 = vmul.f32 %v4141, 0.17677669
    %v4188 = vmul.f32 %v4104, 0.17677669
    %v4189 = vmul.f32 %v4142, 0.17677669
    %v4190 = vmul.f32 %v4109, 0.17677669
    %v4191 = vmul.f32 %v4143, 0.17677669
    %v4192 = vsel %vm1236, %v4160, -inf
    %v4193 = vrot.slane %v4192, 4
    %v4194 = vmax.f32 %v4192, %v4193
    %v4195 = vrot.slane %v4194, 2
    %v4196 = vmax.f32 %v4194, %v4195
    %v4197 = vrot.slane %v4196, 1
    %v4198 = vmax.f32 %v4196, %v4197
    %v4199 = vsel %vm1236, %v4161, -inf
    %v4200 = vrot.slane %v4199, 4
    %v4201 = vmax.f32 %v4199, %v4200
    %v4202 = vrot.slane %v4201, 2
    %v4203 = vmax.f32 %v4201, %v4202
    %v4204 = vrot.slane %v4203, 1
    %v4205 = vmax.f32 %v4203, %v4204
    %v4206 = vsel %vm1236, %v4162, -inf
    %v4207 = vrot.slane %v4206, 4
    %v4208 = vmax.f32 %v4206, %v4207
    %v4209 = vrot.slane %v4208, 2
    %v4210 = vmax.f32 %v4208, %v4209
    %v4211 = vrot.slane %v4210, 1
    %v4212 = vmax.f32 %v4210, %v4211
    %v4213 = vsel %vm1236, %v4163, -inf
    %v4214 = vrot.slane %v4213, 4
    %v4215 = vmax.f32 %v4213, %v4214
    %v4216 = vrot.slane %v4215, 2
    %v4217 = vmax.f32 %v4215, %v4216
    %v4218 = vrot.slane %v4217, 1
    %v4219 = vmax.f32 %v4217, %v4218
    %v4220 = vsel %vm1236, %v4164, -inf
    %v4221 = vrot.slane %v4220, 4
    %v4222 = vmax.f32 %v4220, %v4221
    %v4223 = vrot.slane %v4222, 2
    %v4224 = vmax.f32 %v4222, %v4223
    %v4225 = vrot.slane %v4224, 1
    %v4226 = vmax.f32 %v4224, %v4225
    %v4227 = vsel %vm1236, %v4165, -inf
    %v4228 = vrot.slane %v4227, 4
    %v4229 = vmax.f32 %v4227, %v4228
    %v4230 = vrot.slane %v4229, 2
    %v4231 = vmax.f32 %v4229, %v4230
    %v4232 = vrot.slane %v4231, 1
    %v4233 = vmax.f32 %v4231, %v4232
    %v4234 = vsel %vm1236, %v4166, -inf
    %v4235 = vrot.slane %v4234, 4
    %v4236 = vmax.f32 %v4234, %v4235
    %v4237 = vrot.slane %v4236, 2
    %v4238 = vmax.f32 %v4236, %v4237
    %v4239 = vrot.slane %v4238, 1
    %v4240 = vmax.f32 %v4238, %v4239
    %v4241 = vsel %vm1236, %v4167, -inf
    %v4242 = vrot.slane %v4241, 4
    %v4243 = vmax.f32 %v4241, %v4242
    %v4244 = vrot.slane %v4243, 2
    %v4245 = vmax.f32 %v4243, %v4244
    %v4246 = vrot.slane %v4245, 1
    %v4247 = vmax.f32 %v4245, %v4246
    %v4248 = vsel %vm1236, %v4168, -inf
    %v4249 = vrot.slane %v4248, 4
    %v4250 = vmax.f32 %v4248, %v4249
    %v4251 = vrot.slane %v4250, 2
    %v4252 = vmax.f32 %v4250, %v4251
    %v4253 = vrot.slane %v4252, 1
    %v4254 = vmax.f32 %v4252, %v4253
    %v4255 = vsel %vm1236, %v4169, -inf
    %v4256 = vrot.slane %v4255, 4
    %v4257 = vmax.f32 %v4255, %v4256
    %v4258 = vrot.slane %v4257, 2
    %v4259 = vmax.f32 %v4257, %v4258
    %v4260 = vrot.slane %v4259, 1
    %v4261 = vmax.f32 %v4259, %v4260
    %v4262 = vsel %vm1236, %v4170, -inf
    %v4263 = vrot.slane %v4262, 4
    %v4264 = vmax.f32 %v4262, %v4263
    %v4265 = vrot.slane %v4264, 2
    %v4266 = vmax.f32 %v4264, %v4265
    %v4267 = vrot.slane %v4266, 1
    %v4268 = vmax.f32 %v4266, %v4267
    %v4269 = vsel %vm1236, %v4171, -inf
    %v4270 = vrot.slane %v4269, 4
    %v4271 = vmax.f32 %v4269, %v4270
    %v4272 = vrot.slane %v4271, 2
    %v4273 = vmax.f32 %v4271, %v4272
    %v4274 = vrot.slane %v4273, 1
    %v4275 = vmax.f32 %v4273, %v4274
    %v4276 = vsel %vm1236, %v4172, -inf
    %v4277 = vrot.slane %v4276, 4
    %v4278 = vmax.f32 %v4276, %v4277
    %v4279 = vrot.slane %v4278, 2
    %v4280 = vmax.f32 %v4278, %v4279
    %v4281 = vrot.slane %v4280, 1
    %v4282 = vmax.f32 %v4280, %v4281
    %v4283 = vsel %vm1236, %v4173, -inf
    %v4284 = vrot.slane %v4283, 4
    %v4285 = vmax.f32 %v4283, %v4284
    %v4286 = vrot.slane %v4285, 2
    %v4287 = vmax.f32 %v4285, %v4286
    %v4288 = vrot.slane %v4287, 1
    %v4289 = vmax.f32 %v4287, %v4288
    %v4290 = vsel %vm1236, %v4174, -inf
    %v4291 = vrot.slane %v4290, 4
    %v4292 = vmax.f32 %v4290, %v4291
    %v4293 = vrot.slane %v4292, 2
    %v4294 = vmax.f32 %v4292, %v4293
    %v4295 = vrot.slane %v4294, 1
    %v4296 = vmax.f32 %v4294, %v4295
    %v4297 = vsel %vm1236, %v4175, -inf
    %v4298 = vrot.slane %v4297, 4
    %v4299 = vmax.f32 %v4297, %v4298
    %v4300 = vrot.slane %v4299, 2
    %v4301 = vmax.f32 %v4299, %v4300
    %v4302 = vrot.slane %v4301, 1
    %v4303 = vmax.f32 %v4301, %v4302
    %v4304 = vsel %vm1236, %v4176, -inf
    %v4305 = vrot.slane %v4304, 4
    %v4306 = vmax.f32 %v4304, %v4305
    %v4307 = vrot.slane %v4306, 2
    %v4308 = vmax.f32 %v4306, %v4307
    %v4309 = vrot.slane %v4308, 1
    %v4310 = vmax.f32 %v4308, %v4309
    %v4311 = vsel %vm1236, %v4177, -inf
    %v4312 = vrot.slane %v4311, 4
    %v4313 = vmax.f32 %v4311, %v4312
    %v4314 = vrot.slane %v4313, 2
    %v4315 = vmax.f32 %v4313, %v4314
    %v4316 = vrot.slane %v4315, 1
    %v4317 = vmax.f32 %v4315, %v4316
    %v4318 = vsel %vm1236, %v4178, -inf
    %v4319 = vrot.slane %v4318, 4
    %v4320 = vmax.f32 %v4318, %v4319
    %v4321 = vrot.slane %v4320, 2
    %v4322 = vmax.f32 %v4320, %v4321
    %v4323 = vrot.slane %v4322, 1
    %v4324 = vmax.f32 %v4322, %v4323
    %v4325 = vsel %vm1236, %v4179, -inf
    %v4326 = vrot.slane %v4325, 4
    %v4327 = vmax.f32 %v4325, %v4326
    %v4328 = vrot.slane %v4327, 2
    %v4329 = vmax.f32 %v4327, %v4328
    %v4330 = vrot.slane %v4329, 1
    %v4331 = vmax.f32 %v4329, %v4330
    %v4332 = vsel %vm1236, %v4180, -inf
    %v4333 = vrot.slane %v4332, 4
    %v4334 = vmax.f32 %v4332, %v4333
    %v4335 = vrot.slane %v4334, 2
    %v4336 = vmax.f32 %v4334, %v4335
    %v4337 = vrot.slane %v4336, 1
    %v4338 = vmax.f32 %v4336, %v4337
    %v4339 = vsel %vm1236, %v4181, -inf
    %v4340 = vrot.slane %v4339, 4
    %v4341 = vmax.f32 %v4339, %v4340
    %v4342 = vrot.slane %v4341, 2
    %v4343 = vmax.f32 %v4341, %v4342
    %v4344 = vrot.slane %v4343, 1
    %v4345 = vmax.f32 %v4343, %v4344
    %v4346 = vsel %vm1236, %v4182, -inf
    %v4347 = vrot.slane %v4346, 4
    %v4348 = vmax.f32 %v4346, %v4347
    %v4349 = vrot.slane %v4348, 2
    %v4350 = vmax.f32 %v4348, %v4349
    %v4351 = vrot.slane %v4350, 1
    %v4352 = vmax.f32 %v4350, %v4351
    %v4353 = vsel %vm1236, %v4183, -inf
    %v4354 = vrot.slane %v4353, 4
    %v4355 = vmax.f32 %v4353, %v4354
    %v4356 = vrot.slane %v4355, 2
    %v4357 = vmax.f32 %v4355, %v4356
    %v4358 = vrot.slane %v4357, 1
    %v4359 = vmax.f32 %v4357, %v4358
    %v4360 = vsel %vm1236, %v4184, -inf
    %v4361 = vrot.slane %v4360, 4
    %v4362 = vmax.f32 %v4360, %v4361
    %v4363 = vrot.slane %v4362, 2
    %v4364 = vmax.f32 %v4362, %v4363
    %v4365 = vrot.slane %v4364, 1
    %v4366 = vmax.f32 %v4364, %v4365
    %v4367 = vsel %vm1236, %v4185, -inf
    %v4368 = vrot.slane %v4367, 4
    %v4369 = vmax.f32 %v4367, %v4368
    %v4370 = vrot.slane %v4369, 2
    %v4371 = vmax.f32 %v4369, %v4370
    %v4372 = vrot.slane %v4371, 1
    %v4373 = vmax.f32 %v4371, %v4372
    %v4374 = vsel %vm1236, %v4186, -inf
    %v4375 = vrot.slane %v4374, 4
    %v4376 = vmax.f32 %v4374, %v4375
    %v4377 = vrot.slane %v4376, 2
    %v4378 = vmax.f32 %v4376, %v4377
    %v4379 = vrot.slane %v4378, 1
    %v4380 = vmax.f32 %v4378, %v4379
    %v4381 = vsel %vm1236, %v4187, -inf
    %v4382 = vrot.slane %v4381, 4
    %v4383 = vmax.f32 %v4381, %v4382
    %v4384 = vrot.slane %v4383, 2
    %v4385 = vmax.f32 %v4383, %v4384
    %v4386 = vrot.slane %v4385, 1
    %v4387 = vmax.f32 %v4385, %v4386
    %v4388 = vsel %vm1236, %v4188, -inf
    %v4389 = vrot.slane %v4388, 4
    %v4390 = vmax.f32 %v4388, %v4389
    %v4391 = vrot.slane %v4390, 2
    %v4392 = vmax.f32 %v4390, %v4391
    %v4393 = vrot.slane %v4392, 1
    %v4394 = vmax.f32 %v4392, %v4393
    %v4395 = vsel %vm1236, %v4189, -inf
    %v4396 = vrot.slane %v4395, 4
    %v4397 = vmax.f32 %v4395, %v4396
    %v4398 = vrot.slane %v4397, 2
    %v4399 = vmax.f32 %v4397, %v4398
    %v4400 = vrot.slane %v4399, 1
    %v4401 = vmax.f32 %v4399, %v4400
    %v4402 = vsel %vm1236, %v4190, -inf
    %v4403 = vrot.slane %v4402, 4
    %v4404 = vmax.f32 %v4402, %v4403
    %v4405 = vrot.slane %v4404, 2
    %v4406 = vmax.f32 %v4404, %v4405
    %v4407 = vrot.slane %v4406, 1
    %v4408 = vmax.f32 %v4406, %v4407
    %v4409 = vsel %vm1236, %v4191, -inf
    %v4410 = vrot.slane %v4409, 4
    %v4411 = vmax.f32 %v4409, %v4410
    %v4412 = vrot.slane %v4411, 2
    %v4413 = vmax.f32 %v4411, %v4412
    %v4414 = vrot.slane %v4413, 1
    %v4415 = vmax.f32 %v4413, %v4414
    %v4416 = vsub.f32 %v4160, %v4198
    %v4417 = vsub.f32 %v4161, %v4205
    %v4418 = vsub.f32 %v4162, %v4212
    %v4419 = vsub.f32 %v4163, %v4219
    %v4420 = vsub.f32 %v4164, %v4226
    %v4421 = vsub.f32 %v4165, %v4233
    %v4422 = vsub.f32 %v4166, %v4240
    %v4423 = vsub.f32 %v4167, %v4247
    %v4424 = vsub.f32 %v4168, %v4254
    %v4425 = vsub.f32 %v4169, %v4261
    %v4426 = vsub.f32 %v4170, %v4268
    %v4427 = vsub.f32 %v4171, %v4275
    %v4428 = vsub.f32 %v4172, %v4282
    %v4429 = vsub.f32 %v4173, %v4289
    %v4430 = vsub.f32 %v4174, %v4296
    %v4431 = vsub.f32 %v4175, %v4303
    %v4432 = vsub.f32 %v4176, %v4310
    %v4433 = vsub.f32 %v4177, %v4317
    %v4434 = vsub.f32 %v4178, %v4324
    %v4435 = vsub.f32 %v4179, %v4331
    %v4436 = vsub.f32 %v4180, %v4338
    %v4437 = vsub.f32 %v4181, %v4345
    %v4438 = vsub.f32 %v4182, %v4352
    %v4439 = vsub.f32 %v4183, %v4359
    %v4440 = vsub.f32 %v4184, %v4366
    %v4441 = vsub.f32 %v4185, %v4373
    %v4442 = vsub.f32 %v4186, %v4380
    %v4443 = vsub.f32 %v4187, %v4387
    %v4444 = vsub.f32 %v4188, %v4394
    %v4445 = vsub.f32 %v4189, %v4401
    %v4446 = vsub.f32 %v4190, %v4408
    %v4447 = vsub.f32 %v4191, %v4415
    %v4448 = vmul.f32 %v4416, 1.442695
    %v4449 = vpow.pop %v4448
    %v4450 = vmul.f32 %v4417, 1.442695
    %v4451 = vpow.pop %v4450
    %v4452 = vmul.f32 %v4418, 1.442695
    %v4453 = vpow.pop %v4452
    %v4454 = vmul.f32 %v4419, 1.442695
    %v4455 = vpow.pop %v4454
    %v4456 = vmul.f32 %v4420, 1.442695
    %v4457 = vpow.pop %v4456
    %v4458 = vmul.f32 %v4421, 1.442695
    %v4459 = vpow.pop %v4458
    %v4460 = vmul.f32 %v4422, 1.442695
    %v4461 = vpow.pop %v4460
    %v4462 = vmul.f32 %v4423, 1.442695
    %v4463 = vpow.pop %v4462
    %v4464 = vmul.f32 %v4424, 1.442695
    %v4465 = vpow.pop %v4464
    %v4466 = vmul.f32 %v4425, 1.442695
    %v4467 = vpow.pop %v4466
    %v4468 = vmul.f32 %v4426, 1.442695
    %v4469 = vpow.pop %v4468
    %v4470 = vmul.f32 %v4427, 1.442695
    %v4471 = vpow.pop %v4470
    %v4472 = vmul.f32 %v4428, 1.442695
    %v4473 = vpow.pop %v4472
    %v4474 = vmul.f32 %v4429, 1.442695
    %v4475 = vpow.pop %v4474
    %v4476 = vmul.f32 %v4430, 1.442695
    %v4477 = vpow.pop %v4476
    %v4478 = vmul.f32 %v4431, 1.442695
    %v4479 = vpow.pop %v4478
    %v4480 = vmul.f32 %v4432, 1.442695
    %v4481 = vpow.pop %v4480
    %v4482 = vmul.f32 %v4433, 1.442695
    %v4483 = vpow.pop %v4482
    %v4484 = vmul.f32 %v4434, 1.442695
    %v4485 = vpow.pop %v4484
    %v4486 = vmul.f32 %v4435, 1.442695
    %v4487 = vpow.pop %v4486
    %v4488 = vmul.f32 %v4436, 1.442695
    %v4489 = vpow.pop %v4488
    %v4490 = vmul.f32 %v4437, 1.442695
    %v4491 = vpow.pop %v4490
    %v4492 = vmul.f32 %v4438, 1.442695
    %v4493 = vpow.pop %v4492
    %v4494 = vmul.f32 %v4439, 1.442695
    %v4495 = vpow.pop %v4494
    %v4496 = vmul.f32 %v4440, 1.442695
    %v4497 = vpow.pop %v4496
    %v4498 = vmul.f32 %v4441, 1.442695
    %v4499 = vpow.pop %v4498
    %v4500 = vmul.f32 %v4442, 1.442695
    %v4501 = vpow.pop %v4500
    %v4502 = vmul.f32 %v4443, 1.442695
    %v4503 = vpow.pop %v4502
    %v4504 = vmul.f32 %v4444, 1.442695
    %v4505 = vpow.pop %v4504
    %v4506 = vmul.f32 %v4445, 1.442695
    %v4507 = vpow.pop %v4506
    %v4508 = vmul.f32 %v4446, 1.442695
    %v4509 = vpow.pop %v4508
    %v4510 = vmul.f32 %v4447, 1.442695
    %v4511 = vpow.pop %v4510
    %v4512 = vsel %vm1236, %v4449, 0.0
    %v4513 = vrot.slane %v4512, 4
    %v4514 = vadd.f32 %v4512, %v4513
    %v4515 = vrot.slane %v4514, 2
    %v4516 = vadd.f32 %v4514, %v4515
    %v4517 = vrot.slane %v4516, 1
    %v4518 = vadd.f32 %v4516, %v4517
    %v4519 = vsel %vm1236, %v4451, 0.0
    %v4520 = vrot.slane %v4519, 4
    %v4521 = vadd.f32 %v4519, %v4520
    %v4522 = vrot.slane %v4521, 2
    %v4523 = vadd.f32 %v4521, %v4522
    %v4524 = vrot.slane %v4523, 1
    %v4525 = vadd.f32 %v4523, %v4524
    %v4526 = vsel %vm1236, %v4453, 0.0
    %v4527 = vrot.slane %v4526, 4
    %v4528 = vadd.f32 %v4526, %v4527
    %v4529 = vrot.slane %v4528, 2
    %v4530 = vadd.f32 %v4528, %v4529
    %v4531 = vrot.slane %v4530, 1
    %v4532 = vadd.f32 %v4530, %v4531
    %v4533 = vsel %vm1236, %v4455, 0.0
    %v4534 = vrot.slane %v4533, 4
    %v4535 = vadd.f32 %v4533, %v4534
    %v4536 = vrot.slane %v4535, 2
    %v4537 = vadd.f32 %v4535, %v4536
    %v4538 = vrot.slane %v4537, 1
    %v4539 = vadd.f32 %v4537, %v4538
    %v4540 = vsel %vm1236, %v4457, 0.0
    %v4541 = vrot.slane %v4540, 4
    %v4542 = vadd.f32 %v4540, %v4541
    %v4543 = vrot.slane %v4542, 2
    %v4544 = vadd.f32 %v4542, %v4543
    %v4545 = vrot.slane %v4544, 1
    %v4546 = vadd.f32 %v4544, %v4545
    %v4547 = vsel %vm1236, %v4459, 0.0
    %v4548 = vrot.slane %v4547, 4
    %v4549 = vadd.f32 %v4547, %v4548
    %v4550 = vrot.slane %v4549, 2
    %v4551 = vadd.f32 %v4549, %v4550
    %v4552 = vrot.slane %v4551, 1
    %v4553 = vadd.f32 %v4551, %v4552
    %v4554 = vsel %vm1236, %v4461, 0.0
    %v4555 = vrot.slane %v4554, 4
    %v4556 = vadd.f32 %v4554, %v4555
    %v4557 = vrot.slane %v4556, 2
    %v4558 = vadd.f32 %v4556, %v4557
    %v4559 = vrot.slane %v4558, 1
    %v4560 = vadd.f32 %v4558, %v4559
    %v4561 = vsel %vm1236, %v4463, 0.0
    %v4562 = vrot.slane %v4561, 4
    %v4563 = vadd.f32 %v4561, %v4562
    %v4564 = vrot.slane %v4563, 2
    %v4565 = vadd.f32 %v4563, %v4564
    %v4566 = vrot.slane %v4565, 1
    %v4567 = vadd.f32 %v4565, %v4566
    %v4568 = vsel %vm1236, %v4465, 0.0
    %v4569 = vrot.slane %v4568, 4
    %v4570 = vadd.f32 %v4568, %v4569
    %v4571 = vrot.slane %v4570, 2
    %v4572 = vadd.f32 %v4570, %v4571
    %v4573 = vrot.slane %v4572, 1
    %v4574 = vadd.f32 %v4572, %v4573
    %v4575 = vsel %vm1236, %v4467, 0.0
    %v4576 = vrot.slane %v4575, 4
    %v4577 = vadd.f32 %v4575, %v4576
    %v4578 = vrot.slane %v4577, 2
    %v4579 = vadd.f32 %v4577, %v4578
    %v4580 = vrot.slane %v4579, 1
    %v4581 = vadd.f32 %v4579, %v4580
    %v4582 = vsel %vm1236, %v4469, 0.0
    %v4583 = vrot.slane %v4582, 4
    %v4584 = vadd.f32 %v4582, %v4583
    %v4585 = vrot.slane %v4584, 2
    %v4586 = vadd.f32 %v4584, %v4585
    %v4587 = vrot.slane %v4586, 1
    %v4588 = vadd.f32 %v4586, %v4587
    %v4589 = vsel %vm1236, %v4471, 0.0
    %v4590 = vrot.slane %v4589, 4
    %v4591 = vadd.f32 %v4589, %v4590
    %v4592 = vrot.slane %v4591, 2
    %v4593 = vadd.f32 %v4591, %v4592
    %v4594 = vrot.slane %v4593, 1
    %v4595 = vadd.f32 %v4593, %v4594
    %v4596 = vsel %vm1236, %v4473, 0.0
    %v4597 = vrot.slane %v4596, 4
    %v4598 = vadd.f32 %v4596, %v4597
    %v4599 = vrot.slane %v4598, 2
    %v4600 = vadd.f32 %v4598, %v4599
    %v4601 = vrot.slane %v4600, 1
    %v4602 = vadd.f32 %v4600, %v4601
    %v4603 = vsel %vm1236, %v4475, 0.0
    %v4604 = vrot.slane %v4603, 4
    %v4605 = vadd.f32 %v4603, %v4604
    %v4606 = vrot.slane %v4605, 2
    %v4607 = vadd.f32 %v4605, %v4606
    %v4608 = vrot.slane %v4607, 1
    %v4609 = vadd.f32 %v4607, %v4608
    %v4610 = vsel %vm1236, %v4477, 0.0
    %v4611 = vrot.slane %v4610, 4
    %v4612 = vadd.f32 %v4610, %v4611
    %v4613 = vrot.slane %v4612, 2
    %v4614 = vadd.f32 %v4612, %v4613
    %v4615 = vrot.slane %v4614, 1
    %v4616 = vadd.f32 %v4614, %v4615
    %v4617 = vsel %vm1236, %v4479, 0.0
    %v4618 = vrot.slane %v4617, 4
    %v4619 = vadd.f32 %v4617, %v4618
    %v4620 = vrot.slane %v4619, 2
    %v4621 = vadd.f32 %v4619, %v4620
    %v4622 = vrot.slane %v4621, 1
    %v4623 = vadd.f32 %v4621, %v4622
    %v4624 = vsel %vm1236, %v4481, 0.0
    %v4625 = vrot.slane %v4624, 4
    %v4626 = vadd.f32 %v4624, %v4625
    %v4627 = vrot.slane %v4626, 2
    %v4628 = vadd.f32 %v4626, %v4627
    %v4629 = vrot.slane %v4628, 1
    %v4630 = vadd.f32 %v4628, %v4629
    %v4631 = vsel %vm1236, %v4483, 0.0
    %v4632 = vrot.slane %v4631, 4
    %v4633 = vadd.f32 %v4631, %v4632
    %v4634 = vrot.slane %v4633, 2
    %v4635 = vadd.f32 %v4633, %v4634
    %v4636 = vrot.slane %v4635, 1
    %v4637 = vadd.f32 %v4635, %v4636
    %v4638 = vsel %vm1236, %v4485, 0.0
    %v4639 = vrot.slane %v4638, 4
    %v4640 = vadd.f32 %v4638, %v4639
    %v4641 = vrot.slane %v4640, 2
    %v4642 = vadd.f32 %v4640, %v4641
    %v4643 = vrot.slane %v4642, 1
    %v4644 = vadd.f32 %v4642, %v4643
    %v4645 = vsel %vm1236, %v4487, 0.0
    %v4646 = vrot.slane %v4645, 4
    %v4647 = vadd.f32 %v4645, %v4646
    %v4648 = vrot.slane %v4647, 2
    %v4649 = vadd.f32 %v4647, %v4648
    %v4650 = vrot.slane %v4649, 1
    %v4651 = vadd.f32 %v4649, %v4650
    %v4652 = vsel %vm1236, %v4489, 0.0
    %v4653 = vrot.slane %v4652, 4
    %v4654 = vadd.f32 %v4652, %v4653
    %v4655 = vrot.slane %v4654, 2
    %v4656 = vadd.f32 %v4654, %v4655
    %v4657 = vrot.slane %v4656, 1
    %v4658 = vadd.f32 %v4656, %v4657
    %v4659 = vsel %vm1236, %v4491, 0.0
    %v4660 = vrot.slane %v4659, 4
    %v4661 = vadd.f32 %v4659, %v4660
    %v4662 = vrot.slane %v4661, 2
    %v4663 = vadd.f32 %v4661, %v4662
    %v4664 = vrot.slane %v4663, 1
    %v4665 = vadd.f32 %v4663, %v4664
    %v4666 = vsel %vm1236, %v4493, 0.0
    %v4667 = vrot.slane %v4666, 4
    %v4668 = vadd.f32 %v4666, %v4667
    %v4669 = vrot.slane %v4668, 2
    %v4670 = vadd.f32 %v4668, %v4669
    %v4671 = vrot.slane %v4670, 1
    %v4672 = vadd.f32 %v4670, %v4671
    %v4673 = vsel %vm1236, %v4495, 0.0
    %v4674 = vrot.slane %v4673, 4
    %v4675 = vadd.f32 %v4673, %v4674
    %v4676 = vrot.slane %v4675, 2
    %v4677 = vadd.f32 %v4675, %v4676
    %v4678 = vrot.slane %v4677, 1
    %v4679 = vadd.f32 %v4677, %v4678
    %v4680 = vsel %vm1236, %v4497, 0.0
    %v4681 = vrot.slane %v4680, 4
    %v4682 = vadd.f32 %v4680, %v4681
    %v4683 = vrot.slane %v4682, 2
    %v4684 = vadd.f32 %v4682, %v4683
    %v4685 = vrot.slane %v4684, 1
    %v4686 = vadd.f32 %v4684, %v4685
    %v4687 = vsel %vm1236, %v4499, 0.0
    %v4688 = vrot.slane %v4687, 4
    %v4689 = vadd.f32 %v4687, %v4688
    %v4690 = vrot.slane %v4689, 2
    %v4691 = vadd.f32 %v4689, %v4690
    %v4692 = vrot.slane %v4691, 1
    %v4693 = vadd.f32 %v4691, %v4692
    %v4694 = vsel %vm1236, %v4501, 0.0
    %v4695 = vrot.slane %v4694, 4
    %v4696 = vadd.f32 %v4694, %v4695
    %v4697 = vrot.slane %v4696, 2
    %v4698 = vadd.f32 %v4696, %v4697
    %v4699 = vrot.slane %v4698, 1
    %v4700 = vadd.f32 %v4698, %v4699
    %v4701 = vsel %vm1236, %v4503, 0.0
    %v4702 = vrot.slane %v4701, 4
    %v4703 = vadd.f32 %v4701, %v4702
    %v4704 = vrot.slane %v4703, 2
    %v4705 = vadd.f32 %v4703, %v4704
    %v4706 = vrot.slane %v4705, 1
    %v4707 = vadd.f32 %v4705, %v4706
    %v4708 = vsel %vm1236, %v4505, 0.0
    %v4709 = vrot.slane %v4708, 4
    %v4710 = vadd.f32 %v4708, %v4709
    %v4711 = vrot.slane %v4710, 2
    %v4712 = vadd.f32 %v4710, %v4711
    %v4713 = vrot.slane %v4712, 1
    %v4714 = vadd.f32 %v4712, %v4713
    %v4715 = vsel %vm1236, %v4507, 0.0
    %v4716 = vrot.slane %v4715, 4
    %v4717 = vadd.f32 %v4715, %v4716
    %v4718 = vrot.slane %v4717, 2
    %v4719 = vadd.f32 %v4717, %v4718
    %v4720 = vrot.slane %v4719, 1
    %v4721 = vadd.f32 %v4719, %v4720
    %v4722 = vsel %vm1236, %v4509, 0.0
    %v4723 = vrot.slane %v4722, 4
    %v4724 = vadd.f32 %v4722, %v4723
    %v4725 = vrot.slane %v4724, 2
    %v4726 = vadd.f32 %v4724, %v4725
    %v4727 = vrot.slane %v4726, 1
    %v4728 = vadd.f32 %v4726, %v4727
    %v4729 = vsel %vm1236, %v4511, 0.0
    %v4730 = vrot.slane %v4729, 4
    %v4731 = vadd.f32 %v4729, %v4730
    %v4732 = vrot.slane %v4731, 2
    %v4733 = vadd.f32 %v4731, %v4732
    %v4734 = vrot.slane %v4733, 1
    %v4735 = vadd.f32 %v4733, %v4734
    %v4736 = vrcp.pop %v4518
    %v4737 = vrcp.pop %v4525
    %v4738 = vrcp.pop %v4532
    %v4739 = vrcp.pop %v4539
    %v4740 = vrcp.pop %v4546
    %v4741 = vrcp.pop %v4553
    %v4742 = vrcp.pop %v4560
    %v4743 = vrcp.pop %v4567
    %v4744 = vrcp.pop %v4574
    %v4745 = vrcp.pop %v4581
    %v4746 = vrcp.pop %v4588
    %v4747 = vrcp.pop %v4595
    %v4748 = vrcp.pop %v4602
    %v4749 = vrcp.pop %v4609
    %v4750 = vrcp.pop %v4616
    %v4751 = vrcp.pop %v4623
    %v4752 = vrcp.pop %v4630
    %v4753 = vrcp.pop %v4637
    %v4754 = vrcp.pop %v4644
    %v4755 = vrcp.pop %v4651
    %v4756 = vrcp.pop %v4658
    %v4757 = vrcp.pop %v4665
    %v4758 = vrcp.pop %v4672
    %v4759 = vrcp.pop %v4679
    %v4760 = vrcp.pop %v4686
    %v4761 = vrcp.pop %v4693
    %v4762 = vrcp.pop %v4700
    %v4763 = vrcp.pop %v4707
    %v4764 = vrcp.pop %v4714
    %v4765 = vrcp.pop %v4721
    %v4766 = vrcp.pop %v4728
    %v4767 = vrcp.pop %v4735
    %v4768 = vmul.f32 %v4449, %v4736
    %v4769 = vmul.f32 %v4451, %v4737
    %v4770 = vmul.f32 %v4453, %v4738
    %v4771 = vmul.f32 %v4455, %v4739
    %v4772 = vmul.f32 %v4457, %v4740
    %v4773 = vmul.f32 %v4459, %v4741
    %v4774 = vmul.f32 %v4461, %v4742
    %v4775 = vmul.f32 %v4463, %v4743
    %v4776 = vmul.f32 %v4465, %v4744
    %v4777 = vmul.f32 %v4467, %v4745
    %v4778 = vmul.f32 %v4469, %v4746
    %v4779 = vmul.f32 %v4471, %v4747
    %v4780 = vmul.f32 %v4473, %v4748
    %v4781 = vmul.f32 %v4475, %v4749
    %v4782 = vmul.f32 %v4477, %v4750
    %v4783 = vmul.f32 %v4479, %v4751
    %v4784 = vmul.f32 %v4481, %v4752
    %v4785 = vmul.f32 %v4483, %v4753
    %v4786 = vmul.f32 %v4485, %v4754
    %v4787 = vmul.f32 %v4487, %v4755
    %v4788 = vmul.f32 %v4489, %v4756
    %v4789 = vmul.f32 %v4491, %v4757
    %v4790 = vmul.f32 %v4493, %v4758
    %v4791 = vmul.f32 %v4495, %v4759
    %v4792 = vmul.f32 %v4497, %v4760
    %v4793 = vmul.f32 %v4499, %v4761
    %v4794 = vmul.f32 %v4501, %v4762
    %v4795 = vmul.f32 %v4503, %v4763
    %v4796 = vmul.f32 %v4505, %v4764
    %v4797 = vmul.f32 %v4507, %v4765
    %v4798 = vmul.f32 %v4509, %v4766
    %v4799 = vmul.f32 %v4511, %v4767
    %v4804 = vcombine.high %v3485, %v3485
    %v4805 = vcombine.high %v3488, %v3488
    %v4806 = vcombine.high %v3493, %v3493
    %v4807 = vcombine.high %v3496, %v3496
    %v4812 = vmul.f32 %v4768, %v3485
    %v4813 = vmul.f32 %v4769, %v3485
    %v4814 = vmul.f32 %v4770, %v3485
    %v4815 = vmul.f32 %v4771, %v3485
    %v4816 = vmul.f32 %v4772, %v4804
    %v4817 = vmul.f32 %v4773, %v4804
    %v4818 = vmul.f32 %v4774, %v4804
    %v4819 = vmul.f32 %v4775, %v4804
    %v4820 = vmul.f32 %v4776, %v3488
    %v4821 = vmul.f32 %v4777, %v3488
    %v4822 = vmul.f32 %v4778, %v3488
    %v4823 = vmul.f32 %v4779, %v3488
    %v4824 = vmul.f32 %v4780, %v4805
    %v4825 = vmul.f32 %v4781, %v4805
    %v4826 = vmul.f32 %v4782, %v4805
    %v4827 = vmul.f32 %v4783, %v4805
    %v4828 = vmul.f32 %v4784, %v3493
    %v4829 = vmul.f32 %v4785, %v3493
    %v4830 = vmul.f32 %v4786, %v3493
    %v4831 = vmul.f32 %v4787, %v3493
    %v4832 = vmul.f32 %v4788, %v4806
    %v4833 = vmul.f32 %v4789, %v4806
    %v4834 = vmul.f32 %v4790, %v4806
    %v4835 = vmul.f32 %v4791, %v4806
    %v4836 = vmul.f32 %v4792, %v3496
    %v4837 = vmul.f32 %v4793, %v3496
    %v4838 = vmul.f32 %v4794, %v3496
    %v4839 = vmul.f32 %v4795, %v3496
    %v4840 = vmul.f32 %v4796, %v4807
    %v4841 = vmul.f32 %v4797, %v4807
    %v4842 = vmul.f32 %v4798, %v4807
    %v4843 = vmul.f32 %v4799, %v4807
    %v4844 = vsel %vm1236, %v4812, 0.0
    %v4845 = vrot.slane %v4844, 4
    %v4846 = vadd.f32 %v4844, %v4845
    %v4847 = vrot.slane %v4846, 2
    %v4848 = vadd.f32 %v4846, %v4847
    %v4849 = vrot.slane %v4848, 1
    %v4850 = vadd.f32 %v4848, %v4849
    %v4851 = vsel %vm1236, %v4813, 0.0
    %v4852 = vrot.slane %v4851, 4
    %v4853 = vadd.f32 %v4851, %v4852
    %v4854 = vrot.slane %v4853, 2
    %v4855 = vadd.f32 %v4853, %v4854
    %v4856 = vrot.slane %v4855, 1
    %v4857 = vadd.f32 %v4855, %v4856
    %v4858 = vsel %vm1236, %v4814, 0.0
    %v4859 = vrot.slane %v4858, 4
    %v4860 = vadd.f32 %v4858, %v4859
    %v4861 = vrot.slane %v4860, 2
    %v4862 = vadd.f32 %v4860, %v4861
    %v4863 = vrot.slane %v4862, 1
    %v4864 = vadd.f32 %v4862, %v4863
    %v4865 = vsel %vm1236, %v4815, 0.0
    %v4866 = vrot.slane %v4865, 4
    %v4867 = vadd.f32 %v4865, %v4866
    %v4868 = vrot.slane %v4867, 2
    %v4869 = vadd.f32 %v4867, %v4868
    %v4870 = vrot.slane %v4869, 1
    %v4871 = vadd.f32 %v4869, %v4870
    %v4872 = vsel %vm1236, %v4816, 0.0
    %v4873 = vrot.slane %v4872, 4
    %v4874 = vadd.f32 %v4872, %v4873
    %v4875 = vrot.slane %v4874, 2
    %v4876 = vadd.f32 %v4874, %v4875
    %v4877 = vrot.slane %v4876, 1
    %v4878 = vadd.f32 %v4876, %v4877
    %v4879 = vsel %vm1236, %v4817, 0.0
    %v4880 = vrot.slane %v4879, 4
    %v4881 = vadd.f32 %v4879, %v4880
    %v4882 = vrot.slane %v4881, 2
    %v4883 = vadd.f32 %v4881, %v4882
    %v4884 = vrot.slane %v4883, 1
    %v4885 = vadd.f32 %v4883, %v4884
    %v4886 = vsel %vm1236, %v4818, 0.0
    %v4887 = vrot.slane %v4886, 4
    %v4888 = vadd.f32 %v4886, %v4887
    %v4889 = vrot.slane %v4888, 2
    %v4890 = vadd.f32 %v4888, %v4889
    %v4891 = vrot.slane %v4890, 1
    %v4892 = vadd.f32 %v4890, %v4891
    %v4893 = vsel %vm1236, %v4819, 0.0
    %v4894 = vrot.slane %v4893, 4
    %v4895 = vadd.f32 %v4893, %v4894
    %v4896 = vrot.slane %v4895, 2
    %v4897 = vadd.f32 %v4895, %v4896
    %v4898 = vrot.slane %v4897, 1
    %v4899 = vadd.f32 %v4897, %v4898
    %v4900 = vsel %vm1236, %v4820, 0.0
    %v4901 = vrot.slane %v4900, 4
    %v4902 = vadd.f32 %v4900, %v4901
    %v4903 = vrot.slane %v4902, 2
    %v4904 = vadd.f32 %v4902, %v4903
    %v4905 = vrot.slane %v4904, 1
    %v4906 = vadd.f32 %v4904, %v4905
    %v4907 = vsel %vm1236, %v4821, 0.0
    %v4908 = vrot.slane %v4907, 4
    %v4909 = vadd.f32 %v4907, %v4908
    %v4910 = vrot.slane %v4909, 2
    %v4911 = vadd.f32 %v4909, %v4910
    %v4912 = vrot.slane %v4911, 1
    %v4913 = vadd.f32 %v4911, %v4912
    %v4914 = vsel %vm1236, %v4822, 0.0
    %v4915 = vrot.slane %v4914, 4
    %v4916 = vadd.f32 %v4914, %v4915
    %v4917 = vrot.slane %v4916, 2
    %v4918 = vadd.f32 %v4916, %v4917
    %v4919 = vrot.slane %v4918, 1
    %v4920 = vadd.f32 %v4918, %v4919
    %v4921 = vsel %vm1236, %v4823, 0.0
    %v4922 = vrot.slane %v4921, 4
    %v4923 = vadd.f32 %v4921, %v4922
    %v4924 = vrot.slane %v4923, 2
    %v4925 = vadd.f32 %v4923, %v4924
    %v4926 = vrot.slane %v4925, 1
    %v4927 = vadd.f32 %v4925, %v4926
    %v4928 = vsel %vm1236, %v4824, 0.0
    %v4929 = vrot.slane %v4928, 4
    %v4930 = vadd.f32 %v4928, %v4929
    %v4931 = vrot.slane %v4930, 2
    %v4932 = vadd.f32 %v4930, %v4931
    %v4933 = vrot.slane %v4932, 1
    %v4934 = vadd.f32 %v4932, %v4933
    %v4935 = vsel %vm1236, %v4825, 0.0
    %v4936 = vrot.slane %v4935, 4
    %v4937 = vadd.f32 %v4935, %v4936
    %v4938 = vrot.slane %v4937, 2
    %v4939 = vadd.f32 %v4937, %v4938
    %v4940 = vrot.slane %v4939, 1
    %v4941 = vadd.f32 %v4939, %v4940
    %v4942 = vsel %vm1236, %v4826, 0.0
    %v4943 = vrot.slane %v4942, 4
    %v4944 = vadd.f32 %v4942, %v4943
    %v4945 = vrot.slane %v4944, 2
    %v4946 = vadd.f32 %v4944, %v4945
    %v4947 = vrot.slane %v4946, 1
    %v4948 = vadd.f32 %v4946, %v4947
    %v4949 = vsel %vm1236, %v4827, 0.0
    %v4950 = vrot.slane %v4949, 4
    %v4951 = vadd.f32 %v4949, %v4950
    %v4952 = vrot.slane %v4951, 2
    %v4953 = vadd.f32 %v4951, %v4952
    %v4954 = vrot.slane %v4953, 1
    %v4955 = vadd.f32 %v4953, %v4954
    %v4956 = vsel %vm1236, %v4828, 0.0
    %v4957 = vrot.slane %v4956, 4
    %v4958 = vadd.f32 %v4956, %v4957
    %v4959 = vrot.slane %v4958, 2
    %v4960 = vadd.f32 %v4958, %v4959
    %v4961 = vrot.slane %v4960, 1
    %v4962 = vadd.f32 %v4960, %v4961
    %v4963 = vsel %vm1236, %v4829, 0.0
    %v4964 = vrot.slane %v4963, 4
    %v4965 = vadd.f32 %v4963, %v4964
    %v4966 = vrot.slane %v4965, 2
    %v4967 = vadd.f32 %v4965, %v4966
    %v4968 = vrot.slane %v4967, 1
    %v4969 = vadd.f32 %v4967, %v4968
    %v4970 = vsel %vm1236, %v4830, 0.0
    %v4971 = vrot.slane %v4970, 4
    %v4972 = vadd.f32 %v4970, %v4971
    %v4973 = vrot.slane %v4972, 2
    %v4974 = vadd.f32 %v4972, %v4973
    %v4975 = vrot.slane %v4974, 1
    %v4976 = vadd.f32 %v4974, %v4975
    %v4977 = vsel %vm1236, %v4831, 0.0
    %v4978 = vrot.slane %v4977, 4
    %v4979 = vadd.f32 %v4977, %v4978
    %v4980 = vrot.slane %v4979, 2
    %v4981 = vadd.f32 %v4979, %v4980
    %v4982 = vrot.slane %v4981, 1
    %v4983 = vadd.f32 %v4981, %v4982
    %v4984 = vsel %vm1236, %v4832, 0.0
    %v4985 = vrot.slane %v4984, 4
    %v4986 = vadd.f32 %v4984, %v4985
    %v4987 = vrot.slane %v4986, 2
    %v4988 = vadd.f32 %v4986, %v4987
    %v4989 = vrot.slane %v4988, 1
    %v4990 = vadd.f32 %v4988, %v4989
    %v4991 = vsel %vm1236, %v4833, 0.0
    %v4992 = vrot.slane %v4991, 4
    %v4993 = vadd.f32 %v4991, %v4992
    %v4994 = vrot.slane %v4993, 2
    %v4995 = vadd.f32 %v4993, %v4994
    %v4996 = vrot.slane %v4995, 1
    %v4997 = vadd.f32 %v4995, %v4996
    %v4998 = vsel %vm1236, %v4834, 0.0
    %v4999 = vrot.slane %v4998, 4
    %v5000 = vadd.f32 %v4998, %v4999
    %v5001 = vrot.slane %v5000, 2
    %v5002 = vadd.f32 %v5000, %v5001
    %v5003 = vrot.slane %v5002, 1
    %v5004 = vadd.f32 %v5002, %v5003
    %v5005 = vsel %vm1236, %v4835, 0.0
    %v5006 = vrot.slane %v5005, 4
    %v5007 = vadd.f32 %v5005, %v5006
    %v5008 = vrot.slane %v5007, 2
    %v5009 = vadd.f32 %v5007, %v5008
    %v5010 = vrot.slane %v5009, 1
    %v5011 = vadd.f32 %v5009, %v5010
    %v5012 = vsel %vm1236, %v4836, 0.0
    %v5013 = vrot.slane %v5012, 4
    %v5014 = vadd.f32 %v5012, %v5013
    %v5015 = vrot.slane %v5014, 2
    %v5016 = vadd.f32 %v5014, %v5015
    %v5017 = vrot.slane %v5016, 1
    %v5018 = vadd.f32 %v5016, %v5017
    %v5019 = vsel %vm1236, %v4837, 0.0
    %v5020 = vrot.slane %v5019, 4
    %v5021 = vadd.f32 %v5019, %v5020
    %v5022 = vrot.slane %v5021, 2
    %v5023 = vadd.f32 %v5021, %v5022
    %v5024 = vrot.slane %v5023, 1
    %v5025 = vadd.f32 %v5023, %v5024
    %v5026 = vsel %vm1236, %v4838, 0.0
    %v5027 = vrot.slane %v5026, 4
    %v5028 = vadd.f32 %v5026, %v5027
    %v5029 = vrot.slane %v5028, 2
    %v5030 = vadd.f32 %v5028, %v5029
    %v5031 = vrot.slane %v5030, 1
    %v5032 = vadd.f32 %v5030, %v5031
    %v5033 = vsel %vm1236, %v4839, 0.0
    %v5034 = vrot.slane %v5033, 4
    %v5035 = vadd.f32 %v5033, %v5034
    %v5036 = vrot.slane %v5035, 2
    %v5037 = vadd.f32 %v5035, %v5036
    %v5038 = vrot.slane %v5037, 1
    %v5039 = vadd.f32 %v5037, %v5038
    %v5040 = vsel %vm1236, %v4840, 0.0
    %v5041 = vrot.slane %v5040, 4
    %v5042 = vadd.f32 %v5040, %v5041
    %v5043 = vrot.slane %v5042, 2
    %v5044 = vadd.f32 %v5042, %v5043
    %v5045 = vrot.slane %v5044, 1
    %v5046 = vadd.f32 %v5044, %v5045
    %v5047 = vsel %vm1236, %v4841, 0.0
    %v5048 = vrot.slane %v5047, 4
    %v5049 = vadd.f32 %v5047, %v5048
    %v5050 = vrot.slane %v5049, 2
    %v5051 = vadd.f32 %v5049, %v5050
    %v5052 = vrot.slane %v5051, 1
    %v5053 = vadd.f32 %v5051, %v5052
    %v5054 = vsel %vm1236, %v4842, 0.0
    %v5055 = vrot.slane %v5054, 4
    %v5056 = vadd.f32 %v5054, %v5055
    %v5057 = vrot.slane %v5056, 2
    %v5058 = vadd.f32 %v5056, %v5057
    %v5059 = vrot.slane %v5058, 1
    %v5060 = vadd.f32 %v5058, %v5059
    %v5061 = vsel %vm1236, %v4843, 0.0
    %v5062 = vrot.slane %v5061, 4
    %v5063 = vadd.f32 %v5061, %v5062
    %v5064 = vrot.slane %v5063, 2
    %v5065 = vadd.f32 %v5063, %v5064
    %v5066 = vrot.slane %v5065, 1
    %v5067 = vadd.f32 %v5065, %v5066
    %v5068 = vpack.c.bf16 %v4850, %v4850
    %v5069 = vpack.c.bf16 %v4857, %v4857
    %v5070 = vpack.c.bf16 %v4864, %v4864
    %v5071 = vpack.c.bf16 %v4871, %v4871
    %v5072 = vpack.c.bf16 %v4878, %v4878
    %v5073 = vpack.c.bf16 %v4885, %v4885
    %v5074 = vpack.c.bf16 %v4892, %v4892
    %v5075 = vpack.c.bf16 %v4899, %v4899
    %v5076 = vpack.c.bf16 %v4906, %v4906
    %v5077 = vpack.c.bf16 %v4913, %v4913
    %v5078 = vpack.c.bf16 %v4920, %v4920
    %v5079 = vpack.c.bf16 %v4927, %v4927
    %v5080 = vpack.c.bf16 %v4934, %v4934
    %v5081 = vpack.c.bf16 %v4941, %v4941
    %v5082 = vpack.c.bf16 %v4948, %v4948
    %v5083 = vpack.c.bf16 %v4955, %v4955
    %v5084 = vpack.c.bf16 %v4962, %v4962
    %v5085 = vpack.c.bf16 %v4969, %v4969
    %v5086 = vpack.c.bf16 %v4976, %v4976
    %v5087 = vpack.c.bf16 %v4983, %v4983
    %v5088 = vpack.c.bf16 %v4990, %v4990
    %v5089 = vpack.c.bf16 %v4997, %v4997
    %v5090 = vpack.c.bf16 %v5004, %v5004
    %v5091 = vpack.c.bf16 %v5011, %v5011
    %v5092 = vpack.c.bf16 %v5018, %v5018
    %v5093 = vpack.c.bf16 %v5025, %v5025
    %v5094 = vpack.c.bf16 %v5032, %v5032
    %v5095 = vpack.c.bf16 %v5039, %v5039
    %v5096 = vpack.c.bf16 %v5046, %v5046
    %v5097 = vpack.c.bf16 %v5053, %v5053
    %v5098 = vpack.c.bf16 %v5060, %v5060
    %v5099 = vpack.c.bf16 %v5067, %v5067
    %s5100 = scalar_lea.vmem [#allocation7], 64
    %v5101 = vld [vmem:[%s5100] sm:$0xf]
    %v5102 = vld [vmem:[%s5100 + $0x4] sm:$0xf]
    %v5103 = vld [vmem:[%s5100 + $0x8] sm:$0xf]
    %v5104 = vld [vmem:[%s5100 + $0xc] sm:$0xf]
    %v5105 = vld [vmem:[%s5100 + $0x10] sm:$0xf]
    %v5106 = vld [vmem:[%s5100 + $0x14] sm:$0xf]
    %v5107 = vld [vmem:[%s5100 + $0x18] sm:$0xf]
    %v5108 = vld [vmem:[%s5100 + $0x1c] sm:$0xf]
    %v5109 = vld [vmem:[%s5100 + $0x20] sm:$0xf]
    %v5110 = vld [vmem:[%s5100 + $0x24] sm:$0xf]
    %v5111 = vld [vmem:[%s5100 + $0x28] sm:$0xf]
    %v5112 = vld [vmem:[%s5100 + $0x2c] sm:$0xf]
    %v5113 = vld [vmem:[%s5100 + $0x30] sm:$0xf]
    %v5114 = vld [vmem:[%s5100 + $0x34] sm:$0xf]
    %v5115 = vld [vmem:[%s5100 + $0x38] sm:$0xf]
    %v5116 = vld [vmem:[%s5100 + $0x3c] sm:$0xf]
    %s5117 = scalar_lea.vmem [#allocation9], 1
    %v5118 = vld [vmem:[%s5117] sm:$0x1]
    %v5120 = vlaneseq
    %v5121 = vshrl.u32 %v5120, 7
    %v5122 = vsub.s32 0, %v5121
    %v5123 = vrot.slane %v5118, %v5122
    %v5157 = vunpack.c.l.b16 %v5068
    %v5158 = vunpack.c.l.b16 %v5069
    %v5159 = vunpack.c.l.b16 %v5070
    %v5160 = vunpack.c.l.b16 %v5071
    %v5161 = vunpack.c.l.b16 %v5072
    %v5162 = vunpack.c.l.b16 %v5073
    %v5163 = vunpack.c.l.b16 %v5074
    %v5164 = vunpack.c.l.b16 %v5075
    %v5165 = vunpack.c.l.b16 %v5076
    %v5166 = vunpack.c.l.b16 %v5077
    %v5167 = vunpack.c.l.b16 %v5078
    %v5168 = vunpack.c.l.b16 %v5079
    %v5169 = vunpack.c.l.b16 %v5080
    %v5170 = vunpack.c.l.b16 %v5081
    %v5171 = vunpack.c.l.b16 %v5082
    %v5172 = vunpack.c.l.b16 %v5083
    %v5173 = vunpack.c.l.b16 %v5084
    %v5174 = vunpack.c.l.b16 %v5085
    %v5175 = vunpack.c.l.b16 %v5086
    %v5176 = vunpack.c.l.b16 %v5087
    %v5177 = vunpack.c.l.b16 %v5088
    %v5178 = vunpack.c.l.b16 %v5089
    %v5179 = vunpack.c.l.b16 %v5090
    %v5180 = vunpack.c.l.b16 %v5091
    %v5181 = vunpack.c.l.b16 %v5092
    %v5182 = vunpack.c.l.b16 %v5093
    %v5183 = vunpack.c.l.b16 %v5094
    %v5184 = vunpack.c.l.b16 %v5095
    %v5185 = vunpack.c.l.b16 %v5096
    %v5186 = vunpack.c.l.b16 %v5097
    %v5187 = vunpack.c.l.b16 %v5098
    %v5188 = vunpack.c.l.b16 %v5099
    %v5189 = vsel %vm2232, %v5158, %v5157
    %v5190 = vsel %vm2234, %v5159, %v5189
    %v5191 = vsel %vm2236, %v5160, %v5190
    %v5192 = vsel %vm2238, %v5161, %v5191
    %v5193 = vsel %vm2240, %v5162, %v5192
    %v5194 = vsel %vm2242, %v5163, %v5193
    %v5195 = vsel %vm2244, %v5164, %v5194
    %v5196 = vsel %vm2232, %v5166, %v5165
    %v5197 = vsel %vm2234, %v5167, %v5196
    %v5198 = vsel %vm2236, %v5168, %v5197
    %v5199 = vsel %vm2238, %v5169, %v5198
    %v5200 = vsel %vm2240, %v5170, %v5199
    %v5201 = vsel %vm2242, %v5171, %v5200
    %v5202 = vsel %vm2244, %v5172, %v5201
    %v5203 = vsel %vm2232, %v5174, %v5173
    %v5204 = vsel %vm2234, %v5175, %v5203
    %v5205 = vsel %vm2236, %v5176, %v5204
    %v5206 = vsel %vm2238, %v5177, %v5205
    %v5207 = vsel %vm2240, %v5178, %v5206
    %v5208 = vsel %vm2242, %v5179, %v5207
    %v5209 = vsel %vm2244, %v5180, %v5208
    %v5210 = vsel %vm2232, %v5182, %v5181
    %v5211 = vsel %vm2234, %v5183, %v5210
    %v5212 = vsel %vm2236, %v5184, %v5211
    %v5213 = vsel %vm2238, %v5185, %v5212
    %v5214 = vsel %vm2240, %v5186, %v5213
    %v5215 = vsel %vm2242, %v5187, %v5214
    %v5216 = vsel %vm2244, %v5188, %v5215
    %v5217 = vpack.c.b16 %v5202, %v5195
    %v5218 = vpack.c.b16 %v5216, %v5209
    %v5237 = vunpack.c.l.b16 %v5101
    %v5238 = vunpack.c.l.b16 %v5102
    %v5239 = vunpack.c.l.b16 %v5103
    %v5240 = vunpack.c.l.b16 %v5104
    %v5241 = vunpack.c.l.b16 %v5105
    %v5242 = vunpack.c.l.b16 %v5106
    %v5243 = vunpack.c.l.b16 %v5107
    %v5244 = vunpack.c.l.b16 %v5108
    %v5245 = vunpack.c.l.b16 %v5109
    %v5246 = vunpack.c.l.b16 %v5110
    %v5247 = vunpack.c.l.b16 %v5111
    %v5248 = vunpack.c.l.b16 %v5112
    %v5249 = vunpack.c.l.b16 %v5113
    %v5250 = vunpack.c.l.b16 %v5114
    %v5251 = vunpack.c.l.b16 %v5115
    %v5252 = vunpack.c.l.b16 %v5116
    %v5253 = vpack.c.b16 %v5238, %v5237
    %v5254 = vpack.c.b16 %v5240, %v5239
    %v5255 = vpack.c.b16 %v5242, %v5241
    %v5256 = vpack.c.b16 %v5244, %v5243
    %v5257 = vpack.c.b16 %v5246, %v5245
    %v5258 = vpack.c.b16 %v5248, %v5247
    %v5259 = vpack.c.b16 %v5250, %v5249
    %v5260 = vpack.c.b16 %v5252, %v5251
    %5269 = vmatprep.subr.bf16.mxu0 0
    %5270 = vmatpush1.bf16.msra.mxu0 %v5260
    %5271 = vmatprep.subr.bf16.mxu0 0
    %5272 = vmatpush1.bf16.msra.mxu0 %v5259
    %5273 = vmatprep.subr.bf16.mxu0 0
    %5274 = vmatpush1.bf16.msra.mxu0 %v5258
    %5275 = vmatprep.subr.bf16.mxu0 0
    %5276 = vmatpush1.bf16.msra.mxu0 %v5257
    %5277 = vmatprep.subr.bf16.mxu0 0
    %5278 = vmatpush1.bf16.msra.mxu0 %v5256
    %5279 = vmatprep.subr.bf16.mxu0 0
    %5280 = vmatpush1.bf16.msra.mxu0 %v5255
    %5281 = vmatprep.subr.bf16.mxu0 0
    %5282 = vmatpush1.bf16.msra.mxu0 %v5254
    %5283 = vmatprep.subr.bf16.mxu0 0
    %5284 = vmatpush1.bf16.msra.mxu0 %v5253
    %5285 = vmatprep.subr.bf16.mxu0 0
    %5286 = vmatpush2.bf16.msra.mxu0 0
    %5287 = vmatprep.subr.bf16.mxu0 0
    %5288 = vmatpush2.bf16.msra.mxu0 0
    %5289 = vmatprep.subr.bf16.mxu0 0
    %5290 = vmatpush2.bf16.msra.mxu0 0
    %5291 = vmatprep.subr.bf16.mxu0 0
    %5292 = vmatpush2.bf16.msra.mxu0 0
    %5293 = vmatprep.subr.bf16.mxu0 0
    %5294 = vmatpush2.bf16.msra.mxu0 0
    %5295 = vmatprep.subr.bf16.mxu0 0
    %5296 = vmatpush2.bf16.msra.mxu0 0
    %5297 = vmatprep.subr.bf16.mxu0 0
    %5298 = vmatpush2.bf16.msra.mxu0 0
    %5299 = vmatprep.subr.bf16.mxu0 0
    %5300 = vmatpush2.bf16.msra.mxu0 0
    %5301 = vmatprep.mubr.bf16.mxu0 0
    %5302 = vmatmul.mubr.bf16.gmra.mxu0 %v5217
    %v5303 = vpop.f32.mrf.mxu0
    %v5304 = vadd.f32 %v5123, %v5303
    %v5305 = vpop.f32.mrf.mxu0
    %v5306 = vpop.f32.mrf.mxu0
    %v5307 = vadd.f32 %v5123, %v5306
    %v5308 = vpop.f32.mrf.mxu0
    %5309 = vmatprep.mubr.bf16.mxu0 0
    %5310 = vmatmul.mubr.bf16.gmra.mxu0 %v5218
    %v5311 = vpop.f32.mrf.mxu0
    %v5312 = vadd.f32 %v5123, %v5311
    %v5313 = vpop.f32.mrf.mxu0
    %v5314 = vpop.f32.mrf.mxu0
    %v5315 = vadd.f32 %v5123, %v5314
    %v5316 = vpop.f32.mrf.mxu0
    %5317 = vdwg.mxu0
    %v5318 = vadd.f32 %v3212, %v5304
    %v5319 = vadd.f32 %v3213, %v5307
    %v5320 = vadd.f32 %v3214, %v5312
    %v5321 = vadd.f32 %v3215, %v5315
    %s5322 = scalar_lea.vmem [#allocation10], 1
    %v5323 = vld [vmem:[%s5322] sm:$0x1]
    %s5324 = scalar_lea.vmem [#allocation12], 1
    %v5325 = vld [vmem:[%s5324] sm:$0x1]
    %5326 = vadd.xlane.f32.xlu0 %v5318
    %v5327 = vpop.xlane.xlu0 %5326
    %5328 = vadd.xlane.f32.xlu0 %v5319
    %v5329 = vpop.xlane.xlu0 %5328
    %5330 = vadd.xlane.f32.xlu0 %v5320
    %v5331 = vpop.xlane.xlu0 %5330
    %5332 = vadd.xlane.f32.xlu0 %v5321
    %v5333 = vpop.xlane.xlu0 %5332
    %v5334 = vmul.f32 %v5327, %v2382
    %v5335 = vmul.f32 %v5329, %v2382
    %v5336 = vmul.f32 %v5331, %v2382
    %v5337 = vmul.f32 %v5333, %v2382
    %v5338 = vsub.f32 %v5318, %v5334
    %v5339 = vsub.f32 %v5319, %v5335
    %v5340 = vsub.f32 %v5320, %v5336
    %v5341 = vsub.f32 %v5321, %v5337
    %v5342 = vmul.f32 %v5338, %v5338
    %v5343 = vmul.f32 %v5339, %v5339
    %v5344 = vmul.f32 %v5340, %v5340
    %v5345 = vmul.f32 %v5341, %v5341
    %5346 = vadd.xlane.f32.xlu0 %v5342
    %v5347 = vpop.xlane.xlu0 %5346
    %5348 = vadd.xlane.f32.xlu0 %v5343
    %v5349 = vpop.xlane.xlu0 %5348
    %5350 = vadd.xlane.f32.xlu0 %v5344
    %v5351 = vpop.xlane.xlu0 %5350
    %5352 = vadd.xlane.f32.xlu0 %v5345
    %v5353 = vpop.xlane.xlu0 %5352
    %v5354 = vmul.f32 %v5347, %v2382
    %v5355 = vmul.f32 %v5349, %v2382
    %v5356 = vmul.f32 %v5351, %v2382
    %v5357 = vmul.f32 %v5353, %v2382
    %v5358 = vadd.f32 %v5354, 1e-05
    %v5359 = vadd.f32 %v5355, 1e-05
    %v5360 = vadd.f32 %v5356, 1e-05
    %v5361 = vadd.f32 %v5357, 1e-05
    %v5362 = vrsqrt.pop %v5358
    %v5363 = vrsqrt.pop %v5359
    %v5364 = vrsqrt.pop %v5360
    %v5365 = vrsqrt.pop %v5361
    %v5366 = vmul.f32 %v5338, %v5362
    %v5367 = vmul.f32 %v5339, %v5363
    %v5368 = vmul.f32 %v5340, %v5364
    %v5369 = vmul.f32 %v5341, %v5365
    %v5371 = vlaneseq
    %v5372 = vshrl.u32 %v5371, 7
    %v5373 = vsub.s32 0, %v5372
    %v5374 = vrot.slane %v5323, %v5373
    %v5376 = vmul.f32 %v5366, %v5374
    %v5377 = vmul.f32 %v5367, %v5374
    %v5378 = vmul.f32 %v5368, %v5374
    %v5379 = vmul.f32 %v5369, %v5374
    %v5381 = vlaneseq
    %v5382 = vshrl.u32 %v5381, 7
    %v5383 = vsub.s32 0, %v5382
    %v5384 = vrot.slane %v5325, %v5383
    %v5386 = vadd.f32 %v5376, %v5384
    %v5387 = vadd.f32 %v5377, %v5384
    %v5388 = vadd.f32 %v5378, %v5384
    %v5389 = vadd.f32 %v5379, %v5384
    %v5390 = vpack.c.bf16 %v5387, %v5386
    %v5391 = vpack.c.bf16 %v5389, %v5388
    %s5392 = scalar_lea.vmem [#allocation13], 256
    %v5393 = vld [vmem:[%s5392] sm:$0xff]
    %v5394 = vld [vmem:[%s5392 + $0x8] sm:$0xff]
    %v5395 = vld [vmem:[%s5392 + $0x10] sm:$0xff]
    %v5396 = vld [vmem:[%s5392 + $0x18] sm:$0xff]
    %v5397 = vld [vmem:[%s5392 + $0x20] sm:$0xff]
    %v5398 = vld [vmem:[%s5392 + $0x28] sm:$0xff]
    %v5399 = vld [vmem:[%s5392 + $0x30] sm:$0xff]
    %v5400 = vld [vmem:[%s5392 + $0x38] sm:$0xff]
    %v5401 = vld [vmem:[%s5392 + $0x40] sm:$0xff]
    %v5402 = vld [vmem:[%s5392 + $0x48] sm:$0xff]
    %v5403 = vld [vmem:[%s5392 + $0x50] sm:$0xff]
    %v5404 = vld [vmem:[%s5392 + $0x58] sm:$0xff]
    %v5405 = vld [vmem:[%s5392 + $0x60] sm:$0xff]
    %v5406 = vld [vmem:[%s5392 + $0x68] sm:$0xff]
    %v5407 = vld [vmem:[%s5392 + $0x70] sm:$0xff]
    %v5408 = vld [vmem:[%s5392 + $0x78] sm:$0xff]
    %v5409 = vld [vmem:[%s5392 + $0x80] sm:$0xff]
    %v5410 = vld [vmem:[%s5392 + $0x88] sm:$0xff]
    %v5411 = vld [vmem:[%s5392 + $0x90] sm:$0xff]
    %v5412 = vld [vmem:[%s5392 + $0x98] sm:$0xff]
    %v5413 = vld [vmem:[%s5392 + $0xa0] sm:$0xff]
    %v5414 = vld [vmem:[%s5392 + $0xa8] sm:$0xff]
    %v5415 = vld [vmem:[%s5392 + $0xb0] sm:$0xff]
    %v5416 = vld [vmem:[%s5392 + $0xb8] sm:$0xff]
    %v5417 = vld [vmem:[%s5392 + $0xc0] sm:$0xff]
    %v5418 = vld [vmem:[%s5392 + $0xc8] sm:$0xff]
    %v5419 = vld [vmem:[%s5392 + $0xd0] sm:$0xff]
    %v5420 = vld [vmem:[%s5392 + $0xd8] sm:$0xff]
    %v5421 = vld [vmem:[%s5392 + $0xe0] sm:$0xff]
    %v5422 = vld [vmem:[%s5392 + $0xe8] sm:$0xff]
    %v5423 = vld [vmem:[%s5392 + $0xf0] sm:$0xff]
    %v5424 = vld [vmem:[%s5392 + $0xf8] sm:$0xff]
    %s5425 = scalar_lea.vmem [#allocation15], 4
    %v5426 = vld [vmem:[%s5425] sm:$0xf]
    %v5428 = vlaneseq
    %v5429 = vshrl.u32 %v5428, 7
    %v5430 = vsub.s32 0, %v5429
    %v5431 = vrot.slane %v5426, %v5430
    %v5432 = vlaneseq
    %v5433 = vshrl.u32 %v5432, 7
    %v5434 = vsub.s32 1, %v5433
    %v5435 = vrot.slane %v5426, %v5434
    %v5436 = vlaneseq
    %v5437 = vshrl.u32 %v5436, 7
    %v5438 = vsub.s32 2, %v5437
    %v5439 = vrot.slane %v5426, %v5438
    %v5440 = vlaneseq
    %v5441 = vshrl.u32 %v5440, 7
    %v5442 = vsub.s32 3, %v5441
    %v5443 = vrot.slane %v5426, %v5442
    %v5480 = vunpack.c.l.b16 %v5393
    %v5481 = vunpack.c.h.b16 %v5393
    %v5482 = vunpack.c.l.b16 %v5394
    %v5483 = vunpack.c.h.b16 %v5394
    %v5484 = vunpack.c.l.b16 %v5395
    %v5485 = vunpack.c.h.b16 %v5395
    %v5486 = vunpack.c.l.b16 %v5396
    %v5487 = vunpack.c.h.b16 %v5396
    %v5488 = vunpack.c.l.b16 %v5397
    %v5489 = vunpack.c.h.b16 %v5397
    %v5490 = vunpack.c.l.b16 %v5398
    %v5491 = vunpack.c.h.b16 %v5398
    %v5492 = vunpack.c.l.b16 %v5399
    %v5493 = vunpack.c.h.b16 %v5399
    %v5494 = vunpack.c.l.b16 %v5400
    %v5495 = vunpack.c.h.b16 %v5400
    %v5496 = vunpack.c.l.b16 %v5401
    %v5497 = vunpack.c.h.b16 %v5401
    %v5498 = vunpack.c.l.b16 %v5402
    %v5499 = vunpack.c.h.b16 %v5402
    %v5500 = vunpack.c.l.b16 %v5403
    %v5501 = vunpack.c.h.b16 %v5403
    %v5502 = vunpack.c.l.b16 %v5404
    %v5503 = vunpack.c.h.b16 %v5404
    %v5504 = vunpack.c.l.b16 %v5405
    %v5505 = vunpack.c.h.b16 %v5405
    %v5506 = vunpack.c.l.b16 %v5406
    %v5507 = vunpack.c.h.b16 %v5406
    %v5508 = vunpack.c.l.b16 %v5407
    %v5509 = vunpack.c.h.b16 %v5407
    %v5510 = vunpack.c.l.b16 %v5408
    %v5511 = vunpack.c.h.b16 %v5408
    %v5512 = vunpack.c.l.b16 %v5409
    %v5513 = vunpack.c.h.b16 %v5409
    %v5514 = vunpack.c.l.b16 %v5410
    %v5515 = vunpack.c.h.b16 %v5410
    %v5516 = vunpack.c.l.b16 %v5411
    %v5517 = vunpack.c.h.b16 %v5411
    %v5518 = vunpack.c.l.b16 %v5412
    %v5519 = vunpack.c.h.b16 %v5412
    %v5520 = vunpack.c.l.b16 %v5413
    %v5521 = vunpack.c.h.b16 %v5413
    %v5522 = vunpack.c.l.b16 %v5414
    %v5523 = vunpack.c.h.b16 %v5414
    %v5524 = vunpack.c.l.b16 %v5415
    %v5525 = vunpack.c.h.b16 %v5415
    %v5526 = vunpack.c.l.b16 %v5416
    %v5527 = vunpack.c.h.b16 %v5416
    %v5528 = vunpack.c.l.b16 %v5417
    %v5529 = vunpack.c.h.b16 %v5417
    %v5530 = vunpack.c.l.b16 %v5418
    %v5531 = vunpack.c.h.b16 %v5418
    %v5532 = vunpack.c.l.b16 %v5419
    %v5533 = vunpack.c.h.b16 %v5419
    %v5534 = vunpack.c.l.b16 %v5420
    %v5535 = vunpack.c.h.b16 %v5420
    %v5536 = vunpack.c.l.b16 %v5421
    %v5537 = vunpack.c.h.b16 %v5421
    %v5538 = vunpack.c.l.b16 %v5422
    %v5539 = vunpack.c.h.b16 %v5422
    %v5540 = vunpack.c.l.b16 %v5423
    %v5541 = vunpack.c.h.b16 %v5423
    %v5542 = vunpack.c.l.b16 %v5424
    %v5543 = vunpack.c.h.b16 %v5424
    %v5544 = vpack.c.b16 %v5484, %v5480
    %v5545 = vpack.c.b16 %v5485, %v5481
    %v5546 = vpack.c.b16 %v5486, %v5482
    %v5547 = vpack.c.b16 %v5487, %v5483
    %v5548 = vpack.c.b16 %v5492, %v5488
    %v5549 = vpack.c.b16 %v5493, %v5489
    %v5550 = vpack.c.b16 %v5494, %v5490
    %v5551 = vpack.c.b16 %v5495, %v5491
    %v5552 = vpack.c.b16 %v5500, %v5496
    %v5553 = vpack.c.b16 %v5501, %v5497
    %v5554 = vpack.c.b16 %v5502, %v5498
    %v5555 = vpack.c.b16 %v5503, %v5499
    %v5556 = vpack.c.b16 %v5508, %v5504
    %v5557 = vpack.c.b16 %v5509, %v5505
    %v5558 = vpack.c.b16 %v5510, %v5506
    %v5559 = vpack.c.b16 %v5511, %v5507
    %v5560 = vpack.c.b16 %v5516, %v5512
    %v5561 = vpack.c.b16 %v5517, %v5513
    %v5562 = vpack.c.b16 %v5518, %v5514
    %v5563 = vpack.c.b16 %v5519, %v5515
    %v5564 = vpack.c.b16 %v5524, %v5520
    %v5565 = vpack.c.b16 %v5525, %v5521
    %v5566 = vpack.c.b16 %v5526, %v5522
    %v5567 = vpack.c.b16 %v5527, %v5523
    %v5568 = vpack.c.b16 %v5532, %v5528
    %v5569 = vpack.c.b16 %v5533, %v5529
    %v5570 = vpack.c.b16 %v5534, %v5530
    %v5571 = vpack.c.b16 %v5535, %v5531
    %v5572 = vpack.c.b16 %v5540, %v5536
    %v5573 = vpack.c.b16 %v5541, %v5537
    %v5574 = vpack.c.b16 %v5542, %v5538
    %v5575 = vpack.c.b16 %v5543, %v5539
    %5608 = vmatprep.subr.bf16.mxu0 %v5573
    %5609 = vmatpush1.bf16.msra.mxu0 %v5572
    %5610 = vmatprep.subr.bf16.mxu0 %v5569
    %5611 = vmatpush1.bf16.msra.mxu0 %v5568
    %5612 = vmatprep.subr.bf16.mxu0 %v5565
    %5613 = vmatpush1.bf16.msra.mxu0 %v5564
    %5614 = vmatprep.subr.bf16.mxu0 %v5561
    %5615 = vmatpush1.bf16.msra.mxu0 %v5560
    %5616 = vmatprep.subr.bf16.mxu0 %v5557
    %5617 = vmatpush1.bf16.msra.mxu0 %v5556
    %5618 = vmatprep.subr.bf16.mxu0 %v5553
    %5619 = vmatpush1.bf16.msra.mxu0 %v5552
    %5620 = vmatprep.subr.bf16.mxu0 %v5549
    %5621 = vmatpush1.bf16.msra.mxu0 %v5548
    %5622 = vmatprep.subr.bf16.mxu0 %v5545
    %5623 = vmatpush1.bf16.msra.mxu0 %v5544
    %5624 = vmatprep.subr.bf16.mxu0 0
    %5625 = vmatpush2.bf16.msra.mxu0 0
    %5626 = vmatprep.subr.bf16.mxu0 0
    %5627 = vmatpush2.bf16.msra.mxu0 0
    %5628 = vmatprep.subr.bf16.mxu0 0
    %5629 = vmatpush2.bf16.msra.mxu0 0
    %5630 = vmatprep.subr.bf16.mxu0 0
    %5631 = vmatpush2.bf16.msra.mxu0 0
    %5632 = vmatprep.subr.bf16.mxu0 0
    %5633 = vmatpush2.bf16.msra.mxu0 0
    %5634 = vmatprep.subr.bf16.mxu0 0
    %5635 = vmatpush2.bf16.msra.mxu0 0
    %5636 = vmatprep.subr.bf16.mxu0 0
    %5637 = vmatpush2.bf16.msra.mxu0 0
    %5638 = vmatprep.subr.bf16.mxu0 0
    %5639 = vmatpush2.bf16.msra.mxu0 0
    %5640 = vmatprep.mubr.bf16.mxu0 0
    %5641 = vmatmul.mubr.bf16.gmra.mxu0 %v5390
    %v5642 = vpop.f32.mrf.mxu0
    %v5643 = vadd.f32 %v5431, %v5642
    %v5644 = vpop.f32.mrf.mxu0
    %v5645 = vadd.f32 %v5435, %v5644
    %v5646 = vpop.f32.mrf.mxu0
    %v5647 = vadd.f32 %v5431, %v5646
    %v5648 = vpop.f32.mrf.mxu0
    %v5649 = vadd.f32 %v5435, %v5648
    %5650 = vmatprep.mubr.bf16.mxu0 0
    %5651 = vmatmul.mubr.bf16.gmra.mxu0 %v5391
    %v5652 = vpop.f32.mrf.mxu0
    %v5653 = vadd.f32 %v5431, %v5652
    %v5654 = vpop.f32.mrf.mxu0
    %v5655 = vadd.f32 %v5435, %v5654
    %v5656 = vpop.f32.mrf.mxu0
    %v5657 = vadd.f32 %v5431, %v5656
    %v5658 = vpop.f32.mrf.mxu0
    %v5659 = vadd.f32 %v5435, %v5658
    %5660 = vdwg.mxu0
    %5661 = vmatprep.subr.bf16.mxu0 %v5575
    %5662 = vmatpush1.bf16.msra.mxu0 %v5574
    %5663 = vmatprep.subr.bf16.mxu0 %v5571
    %5664 = vmatpush1.bf16.msra.mxu0 %v5570
    %5665 = vmatprep.subr.bf16.mxu0 %v5567
    %5666 = vmatpush1.bf16.msra.mxu0 %v5566
    %5667 = vmatprep.subr.bf16.mxu0 %v5563
    %5668 = vmatpush1.bf16.msra.mxu0 %v5562
    %5669 = vmatprep.subr.bf16.mxu0 %v5559
    %5670 = vmatpush1.bf16.msra.mxu0 %v5558
    %5671 = vmatprep.subr.bf16.mxu0 %v5555
    %5672 = vmatpush1.bf16.msra.mxu0 %v5554
    %5673 = vmatprep.subr.bf16.mxu0 %v5551
    %5674 = vmatpush1.bf16.msra.mxu0 %v5550
    %5675 = vmatprep.subr.bf16.mxu0 %v5547
    %5676 = vmatpush1.bf16.msra.mxu0 %v5546
    %5677 = vmatprep.subr.bf16.mxu0 0
    %5678 = vmatpush2.bf16.msra.mxu0 0
    %5679 = vmatprep.subr.bf16.mxu0 0
    %5680 = vmatpush2.bf16.msra.mxu0 0
    %5681 = vmatprep.subr.bf16.mxu0 0
    %5682 = vmatpush2.bf16.msra.mxu0 0
    %5683 = vmatprep.subr.bf16.mxu0 0
    %5684 = vmatpush2.bf16.msra.mxu0 0
    %5685 = vmatprep.subr.bf16.mxu0 0
    %5686 = vmatpush2.bf16.msra.mxu0 0
    %5687 = vmatprep.subr.bf16.mxu0 0
    %5688 = vmatpush2.bf16.msra.mxu0 0
    %5689 = vmatprep.subr.bf16.mxu0 0
    %5690 = vmatpush2.bf16.msra.mxu0 0
    %5691 = vmatprep.subr.bf16.mxu0 0
    %5692 = vmatpush2.bf16.msra.mxu0 0
    %5693 = vmatprep.mubr.bf16.mxu0 0
    %5694 = vmatmul.mubr.bf16.gmra.mxu0 %v5390
    %v5695 = vpop.f32.mrf.mxu0
    %v5696 = vadd.f32 %v5439, %v5695
    %v5697 = vpop.f32.mrf.mxu0
    %v5698 = vadd.f32 %v5443, %v5697
    %v5699 = vpop.f32.mrf.mxu0
    %v5700 = vadd.f32 %v5439, %v5699
    %v5701 = vpop.f32.mrf.mxu0
    %v5702 = vadd.f32 %v5443, %v5701
    %5703 = vmatprep.mubr.bf16.mxu0 0
    %5704 = vmatmul.mubr.bf16.gmra.mxu0 %v5391
    %v5705 = vpop.f32.mrf.mxu0
    %v5706 = vadd.f32 %v5439, %v5705
    %v5707 = vpop.f32.mrf.mxu0
    %v5708 = vadd.f32 %v5443, %v5707
    %v5709 = vpop.f32.mrf.mxu0
    %v5710 = vadd.f32 %v5439, %v5709
    %v5711 = vpop.f32.mrf.mxu0
    %v5712 = vadd.f32 %v5443, %v5711
    %5713 = vdwg.mxu0
    %v5714 = vmax.f32 %v5643, 0.0
    %v5715 = vmax.f32 %v5645, 0.0
    %v5716 = vmax.f32 %v5696, 0.0
    %v5717 = vmax.f32 %v5698, 0.0
    %v5718 = vmax.f32 %v5647, 0.0
    %v5719 = vmax.f32 %v5649, 0.0
    %v5720 = vmax.f32 %v5700, 0.0
    %v5721 = vmax.f32 %v5702, 0.0
    %v5722 = vmax.f32 %v5653, 0.0
    %v5723 = vmax.f32 %v5655, 0.0
    %v5724 = vmax.f32 %v5706, 0.0
    %v5725 = vmax.f32 %v5708, 0.0
    %v5726 = vmax.f32 %v5657, 0.0
    %v5727 = vmax.f32 %v5659, 0.0
    %v5728 = vmax.f32 %v5710, 0.0
    %v5729 = vmax.f32 %v5712, 0.0
    %v5730 = vpack.c.bf16 %v5718, %v5714
    %v5731 = vpack.c.bf16 %v5719, %v5715
    %v5732 = vpack.c.bf16 %v5720, %v5716
    %v5733 = vpack.c.bf16 %v5721, %v5717
    %v5734 = vpack.c.bf16 %v5726, %v5722
    %v5735 = vpack.c.bf16 %v5727, %v5723
    %v5736 = vpack.c.bf16 %v5728, %v5724
    %v5737 = vpack.c.bf16 %v5729, %v5725
    %s5738 = scalar_lea.vmem [#allocation16], 256
    %v5739 = vld [vmem:[%s5738] sm:$0xf]
    %v5740 = vld [vmem:[%s5738 + $0x4] sm:$0xf]
    %v5741 = vld [vmem:[%s5738 + $0x8] sm:$0xf]
    %v5742 = vld [vmem:[%s5738 + $0xc] sm:$0xf]
    %v5743 = vld [vmem:[%s5738 + $0x10] sm:$0xf]
    %v5744 = vld [vmem:[%s5738 + $0x14] sm:$0xf]
    %v5745 = vld [vmem:[%s5738 + $0x18] sm:$0xf]
    %v5746 = vld [vmem:[%s5738 + $0x1c] sm:$0xf]
    %v5747 = vld [vmem:[%s5738 + $0x20] sm:$0xf]
    %v5748 = vld [vmem:[%s5738 + $0x24] sm:$0xf]
    %v5749 = vld [vmem:[%s5738 + $0x28] sm:$0xf]
    %v5750 = vld [vmem:[%s5738 + $0x2c] sm:$0xf]
    %v5751 = vld [vmem:[%s5738 + $0x30] sm:$0xf]
    %v5752 = vld [vmem:[%s5738 + $0x34] sm:$0xf]
    %v5753 = vld [vmem:[%s5738 + $0x38] sm:$0xf]
    %v5754 = vld [vmem:[%s5738 + $0x3c] sm:$0xf]
    %v5755 = vld [vmem:[%s5738 + $0x40] sm:$0xf]
    %v5756 = vld [vmem:[%s5738 + $0x44] sm:$0xf]
    %v5757 = vld [vmem:[%s5738 + $0x48] sm:$0xf]
    %v5758 = vld [vmem:[%s5738 + $0x4c] sm:$0xf]
    %v5759 = vld [vmem:[%s5738 + $0x50] sm:$0xf]
    %v5760 = vld [vmem:[%s5738 + $0x54] sm:$0xf]
    %v5761 = vld [vmem:[%s5738 + $0x58] sm:$0xf]
    %v5762 = vld [vmem:[%s5738 + $0x5c] sm:$0xf]
    %v5763 = vld [vmem:[%s5738 + $0x60] sm:$0xf]
    %v5764 = vld [vmem:[%s5738 + $0x64] sm:$0xf]
    %v5765 = vld [vmem:[%s5738 + $0x68] sm:$0xf]
    %v5766 = vld [vmem:[%s5738 + $0x6c] sm:$0xf]
    %v5767 = vld [vmem:[%s5738 + $0x70] sm:$0xf]
    %v5768 = vld [vmem:[%s5738 + $0x74] sm:$0xf]
    %v5769 = vld [vmem:[%s5738 + $0x78] sm:$0xf]
    %v5770 = vld [vmem:[%s5738 + $0x7c] sm:$0xf]
    %v5771 = vld [vmem:[%s5738 + $0x80] sm:$0xf]
    %v5772 = vld [vmem:[%s5738 + $0x84] sm:$0xf]
    %v5773 = vld [vmem:[%s5738 + $0x88] sm:$0xf]
    %v5774 = vld [vmem:[%s5738 + $0x8c] sm:$0xf]
    %v5775 = vld [vmem:[%s5738 + $0x90] sm:$0xf]
    %v5776 = vld [vmem:[%s5738 + $0x94] sm:$0xf]
    %v5777 = vld [vmem:[%s5738 + $0x98] sm:$0xf]
    %v5778 = vld [vmem:[%s5738 + $0x9c] sm:$0xf]
    %v5779 = vld [vmem:[%s5738 + $0xa0] sm:$0xf]
    %v5780 = vld [vmem:[%s5738 + $0xa4] sm:$0xf]
    %v5781 = vld [vmem:[%s5738 + $0xa8] sm:$0xf]
    %v5782 = vld [vmem:[%s5738 + $0xac] sm:$0xf]
    %v5783 = vld [vmem:[%s5738 + $0xb0] sm:$0xf]
    %v5784 = vld [vmem:[%s5738 + $0xb4] sm:$0xf]
    %v5785 = vld [vmem:[%s5738 + $0xb8] sm:$0xf]
    %v5786 = vld [vmem:[%s5738 + $0xbc] sm:$0xf]
    %v5787 = vld [vmem:[%s5738 + $0xc0] sm:$0xf]
    %v5788 = vld [vmem:[%s5738 + $0xc4] sm:$0xf]
    %v5789 = vld [vmem:[%s5738 + $0xc8] sm:$0xf]
    %v5790 = vld [vmem:[%s5738 + $0xcc] sm:$0xf]
    %v5791 = vld [vmem:[%s5738 + $0xd0] sm:$0xf]
    %v5792 = vld [vmem:[%s5738 + $0xd4] sm:$0xf]
    %v5793 = vld [vmem:[%s5738 + $0xd8] sm:$0xf]
    %v5794 = vld [vmem:[%s5738 + $0xdc] sm:$0xf]
    %v5795 = vld [vmem:[%s5738 + $0xe0] sm:$0xf]
    %v5796 = vld [vmem:[%s5738 + $0xe4] sm:$0xf]
    %v5797 = vld [vmem:[%s5738 + $0xe8] sm:$0xf]
    %v5798 = vld [vmem:[%s5738 + $0xec] sm:$0xf]
    %v5799 = vld [vmem:[%s5738 + $0xf0] sm:$0xf]
    %v5800 = vld [vmem:[%s5738 + $0xf4] sm:$0xf]
    %v5801 = vld [vmem:[%s5738 + $0xf8] sm:$0xf]
    %v5802 = vld [vmem:[%s5738 + $0xfc] sm:$0xf]
    %s5803 = scalar_lea.vmem [#allocation18], 1
    %v5804 = vld [vmem:[%s5803] sm:$0x1]
    %v5806 = vlaneseq
    %v5807 = vshrl.u32 %v5806, 7
    %v5808 = vsub.s32 0, %v5807
    %v5809 = vrot.slane %v5804, %v5808
    %v5875 = vunpack.c.l.b16 %v5739
    %v5876 = vunpack.c.l.b16 %v5740
    %v5877 = vunpack.c.l.b16 %v5741
    %v5878 = vunpack.c.l.b16 %v5742
    %v5879 = vunpack.c.l.b16 %v5743
    %v5880 = vunpack.c.l.b16 %v5744
    %v5881 = vunpack.c.l.b16 %v5745
    %v5882 = vunpack.c.l.b16 %v5746
    %v5883 = vunpack.c.l.b16 %v5747
    %v5884 = vunpack.c.l.b16 %v5748
    %v5885 = vunpack.c.l.b16 %v5749
    %v5886 = vunpack.c.l.b16 %v5750
    %v5887 = vunpack.c.l.b16 %v5751
    %v5888 = vunpack.c.l.b16 %v5752
    %v5889 = vunpack.c.l.b16 %v5753
    %v5890 = vunpack.c.l.b16 %v5754
    %v5891 = vunpack.c.l.b16 %v5755
    %v5892 = vunpack.c.l.b16 %v5756
    %v5893 = vunpack.c.l.b16 %v5757
    %v5894 = vunpack.c.l.b16 %v5758
    %v5895 = vunpack.c.l.b16 %v5759
    %v5896 = vunpack.c.l.b16 %v5760
    %v5897 = vunpack.c.l.b16 %v5761
    %v5898 = vunpack.c.l.b16 %v5762
    %v5899 = vunpack.c.l.b16 %v5763
    %v5900 = vunpack.c.l.b16 %v5764
    %v5901 = vunpack.c.l.b16 %v5765
    %v5902 = vunpack.c.l.b16 %v5766
    %v5903 = vunpack.c.l.b16 %v5767
    %v5904 = vunpack.c.l.b16 %v5768
    %v5905 = vunpack.c.l.b16 %v5769
    %v5906 = vunpack.c.l.b16 %v5770
    %v5907 = vunpack.c.l.b16 %v5771
    %v5908 = vunpack.c.l.b16 %v5772
    %v5909 = vunpack.c.l.b16 %v5773
    %v5910 = vunpack.c.l.b16 %v5774
    %v5911 = vunpack.c.l.b16 %v5775
    %v5912 = vunpack.c.l.b16 %v5776
    %v5913 = vunpack.c.l.b16 %v5777
    %v5914 = vunpack.c.l.b16 %v5778
    %v5915 = vunpack.c.l.b16 %v5779
    %v5916 = vunpack.c.l.b16 %v5780
    %v5917 = vunpack.c.l.b16 %v5781
    %v5918 = vunpack.c.l.b16 %v5782
    %v5919 = vunpack.c.l.b16 %v5783
    %v5920 = vunpack.c.l.b16 %v5784
    %v5921 = vunpack.c.l.b16 %v5785
    %v5922 = vunpack.c.l.b16 %v5786
    %v5923 = vunpack.c.l.b16 %v5787
    %v5924 = vunpack.c.l.b16 %v5788
    %v5925 = vunpack.c.l.b16 %v5789
    %v5926 = vunpack.c.l.b16 %v5790
    %v5927 = vunpack.c.l.b16 %v5791
    %v5928 = vunpack.c.l.b16 %v5792
    %v5929 = vunpack.c.l.b16 %v5793
    %v5930 = vunpack.c.l.b16 %v5794
    %v5931 = vunpack.c.l.b16 %v5795
    %v5932 = vunpack.c.l.b16 %v5796
    %v5933 = vunpack.c.l.b16 %v5797
    %v5934 = vunpack.c.l.b16 %v5798
    %v5935 = vunpack.c.l.b16 %v5799
    %v5936 = vunpack.c.l.b16 %v5800
    %v5937 = vunpack.c.l.b16 %v5801
    %v5938 = vunpack.c.l.b16 %v5802
    %v5939 = vpack.c.b16 %v5876, %v5875
    %v5940 = vpack.c.b16 %v5878, %v5877
    %v5941 = vpack.c.b16 %v5880, %v5879
    %v5942 = vpack.c.b16 %v5882, %v5881
    %v5943 = vpack.c.b16 %v5884, %v5883
    %v5944 = vpack.c.b16 %v5886, %v5885
    %v5945 = vpack.c.b16 %v5888, %v5887
    %v5946 = vpack.c.b16 %v5890, %v5889
    %v5947 = vpack.c.b16 %v5892, %v5891
    %v5948 = vpack.c.b16 %v5894, %v5893
    %v5949 = vpack.c.b16 %v5896, %v5895
    %v5950 = vpack.c.b16 %v5898, %v5897
    %v5951 = vpack.c.b16 %v5900, %v5899
    %v5952 = vpack.c.b16 %v5902, %v5901
    %v5953 = vpack.c.b16 %v5904, %v5903
    %v5954 = vpack.c.b16 %v5906, %v5905
    %v5955 = vpack.c.b16 %v5908, %v5907
    %v5956 = vpack.c.b16 %v5910, %v5909
    %v5957 = vpack.c.b16 %v5912, %v5911
    %v5958 = vpack.c.b16 %v5914, %v5913
    %v5959 = vpack.c.b16 %v5916, %v5915
    %v5960 = vpack.c.b16 %v5918, %v5917
    %v5961 = vpack.c.b16 %v5920, %v5919
    %v5962 = vpack.c.b16 %v5922, %v5921
    %v5963 = vpack.c.b16 %v5924, %v5923
    %v5964 = vpack.c.b16 %v5926, %v5925
    %v5965 = vpack.c.b16 %v5928, %v5927
    %v5966 = vpack.c.b16 %v5930, %v5929
    %v5967 = vpack.c.b16 %v5932, %v5931
    %v5968 = vpack.c.b16 %v5934, %v5933
    %v5969 = vpack.c.b16 %v5936, %v5935
    %v5970 = vpack.c.b16 %v5938, %v5937
    %6003 = vmatprep.subr.bf16.mxu0 0
    %6004 = vmatpush1.bf16.msra.mxu0 %v5946
    %6005 = vmatprep.subr.bf16.mxu0 0
    %6006 = vmatpush1.bf16.msra.mxu0 %v5945
    %6007 = vmatprep.subr.bf16.mxu0 0
    %6008 = vmatpush1.bf16.msra.mxu0 %v5944
    %6009 = vmatprep.subr.bf16.mxu0 0
    %6010 = vmatpush1.bf16.msra.mxu0 %v5943
    %6011 = vmatprep.subr.bf16.mxu0 0
    %6012 = vmatpush1.bf16.msra.mxu0 %v5942
    %6013 = vmatprep.subr.bf16.mxu0 0
    %6014 = vmatpush1.bf16.msra.mxu0 %v5941
    %6015 = vmatprep.subr.bf16.mxu0 0
    %6016 = vmatpush1.bf16.msra.mxu0 %v5940
    %6017 = vmatprep.subr.bf16.mxu0 0
    %6018 = vmatpush1.bf16.msra.mxu0 %v5939
    %6019 = vmatprep.subr.bf16.mxu0 0
    %6020 = vmatpush2.bf16.msra.mxu0 %v5954
    %6021 = vmatprep.subr.bf16.mxu0 0
    %6022 = vmatpush2.bf16.msra.mxu0 %v5953
    %6023 = vmatprep.subr.bf16.mxu0 0
    %6024 = vmatpush2.bf16.msra.mxu0 %v5952
    %6025 = vmatprep.subr.bf16.mxu0 0
    %6026 = vmatpush2.bf16.msra.mxu0 %v5951
    %6027 = vmatprep.subr.bf16.mxu0 0
    %6028 = vmatpush2.bf16.msra.mxu0 %v5950
    %6029 = vmatprep.subr.bf16.mxu0 0
    %6030 = vmatpush2.bf16.msra.mxu0 %v5949
    %6031 = vmatprep.subr.bf16.mxu0 0
    %6032 = vmatpush2.bf16.msra.mxu0 %v5948
    %6033 = vmatprep.subr.bf16.mxu0 0
    %6034 = vmatpush2.bf16.msra.mxu0 %v5947
    %6035 = vmatprep.mubr.bf16.mxu0 %v5731
    %6036 = vmatmul.mubr.bf16.gmra.mxu0 %v5730
    %v6037 = vpop.f32.mrf.mxu0
    %v6038 = vadd.f32 %v5809, %v6037
    %v6039 = vpop.f32.mrf.mxu0
    %v6040 = vpop.f32.mrf.mxu0
    %v6041 = vadd.f32 %v5809, %v6040
    %v6042 = vpop.f32.mrf.mxu0
    %6043 = vmatprep.mubr.bf16.mxu0 %v5735
    %6044 = vmatmul.mubr.bf16.gmra.mxu0 %v5734
    %v6045 = vpop.f32.mrf.mxu0
    %v6046 = vadd.f32 %v5809, %v6045
    %v6047 = vpop.f32.mrf.mxu0
    %v6048 = vpop.f32.mrf.mxu0
    %v6049 = vadd.f32 %v5809, %v6048
    %v6050 = vpop.f32.mrf.mxu0
    %6051 = vdwg.mxu0
    %6052 = vmatprep.subr.bf16.mxu0 0
    %6053 = vmatpush1.bf16.msra.mxu0 %v5962
    %6054 = vmatprep.subr.bf16.mxu0 0
    %6055 = vmatpush1.bf16.msra.mxu0 %v5961
    %6056 = vmatprep.subr.bf16.mxu0 0
    %6057 = vmatpush1.bf16.msra.mxu0 %v5960
    %6058 = vmatprep.subr.bf16.mxu0 0
    %6059 = vmatpush1.bf16.msra.mxu0 %v5959
    %6060 = vmatprep.subr.bf16.mxu0 0
    %6061 = vmatpush1.bf16.msra.mxu0 %v5958
    %6062 = vmatprep.subr.bf16.mxu0 0
    %6063 = vmatpush1.bf16.msra.mxu0 %v5957
    %6064 = vmatprep.subr.bf16.mxu0 0
    %6065 = vmatpush1.bf16.msra.mxu0 %v5956
    %6066 = vmatprep.subr.bf16.mxu0 0
    %6067 = vmatpush1.bf16.msra.mxu0 %v5955
    %6068 = vmatprep.subr.bf16.mxu0 0
    %6069 = vmatpush2.bf16.msra.mxu0 %v5970
    %6070 = vmatprep.subr.bf16.mxu0 0
    %6071 = vmatpush2.bf16.msra.mxu0 %v5969
    %6072 = vmatprep.subr.bf16.mxu0 0
    %6073 = vmatpush2.bf16.msra.mxu0 %v5968
    %6074 = vmatprep.subr.bf16.mxu0 0
    %6075 = vmatpush2.bf16.msra.mxu0 %v5967
    %6076 = vmatprep.subr.bf16.mxu0 0
    %6077 = vmatpush2.bf16.msra.mxu0 %v5966
    %6078 = vmatprep.subr.bf16.mxu0 0
    %6079 = vmatpush2.bf16.msra.mxu0 %v5965
    %6080 = vmatprep.subr.bf16.mxu0 0
    %6081 = vmatpush2.bf16.msra.mxu0 %v5964
    %6082 = vmatprep.subr.bf16.mxu0 0
    %6083 = vmatpush2.bf16.msra.mxu0 %v5963
    %6084 = vmatprep.mubr.bf16.mxu0 %v5733
    %6085 = vmatmul.mubr.bf16.gmra.mxu0 %v5732
    %v6086 = vpop.f32.mrf.mxu0
    %v6087 = vadd.f32 %v6038, %v6086
    %v6088 = vpop.f32.mrf.mxu0
    %v6089 = vpop.f32.mrf.mxu0
    %v6090 = vadd.f32 %v6041, %v6089
    %v6091 = vpop.f32.mrf.mxu0
    %6092 = vmatprep.mubr.bf16.mxu0 %v5737
    %6093 = vmatmul.mubr.bf16.gmra.mxu0 %v5736
    %v6094 = vpop.f32.mrf.mxu0
    %v6095 = vadd.f32 %v6046, %v6094
    %v6096 = vpop.f32.mrf.mxu0
    %v6097 = vpop.f32.mrf.mxu0
    %v6098 = vadd.f32 %v6049, %v6097
    %v6099 = vpop.f32.mrf.mxu0
    %6100 = vdwg.mxu0
    %v6101 = vadd.f32 %v5386, %v6087
    %v6102 = vadd.f32 %v5387, %v6090
    %v6103 = vadd.f32 %v5388, %v6095
    %v6104 = vadd.f32 %v5389, %v6098
    %s6105 = scalar_lea.vmem [#allocation19], 1
    %v6106 = vld [vmem:[%s6105] sm:$0x1]
    %s6107 = scalar_lea.vmem [#allocation21], 1
    %v6108 = vld [vmem:[%s6107] sm:$0x1]
    %6109 = vadd.xlane.f32.xlu0 %v6101
    %v6110 = vpop.xlane.xlu0 %6109
    %6111 = vadd.xlane.f32.xlu0 %v6102
    %v6112 = vpop.xlane.xlu0 %6111
    %6113 = vadd.xlane.f32.xlu0 %v6103
    %v6114 = vpop.xlane.xlu0 %6113
    %6115 = vadd.xlane.f32.xlu0 %v6104
    %v6116 = vpop.xlane.xlu0 %6115
    %v6117 = vmul.f32 %v6110, %v2382
    %v6118 = vmul.f32 %v6112, %v2382
    %v6119 = vmul.f32 %v6114, %v2382
    %v6120 = vmul.f32 %v6116, %v2382
    %v6121 = vsub.f32 %v6101, %v6117
    %v6122 = vsub.f32 %v6102, %v6118
    %v6123 = vsub.f32 %v6103, %v6119
    %v6124 = vsub.f32 %v6104, %v6120
    %v6125 = vmul.f32 %v6121, %v6121
    %v6126 = vmul.f32 %v6122, %v6122
    %v6127 = vmul.f32 %v6123, %v6123
    %v6128 = vmul.f32 %v6124, %v6124
    %6129 = vadd.xlane.f32.xlu0 %v6125
    %v6130 = vpop.xlane.xlu0 %6129
    %6131 = vadd.xlane.f32.xlu0 %v6126
    %v6132 = vpop.xlane.xlu0 %6131
    %6133 = vadd.xlane.f32.xlu0 %v6127
    %v6134 = vpop.xlane.xlu0 %6133
    %6135 = vadd.xlane.f32.xlu0 %v6128
    %v6136 = vpop.xlane.xlu0 %6135
    %v6137 = vmul.f32 %v6130, %v2382
    %v6138 = vmul.f32 %v6132, %v2382
    %v6139 = vmul.f32 %v6134, %v2382
    %v6140 = vmul.f32 %v6136, %v2382
    %v6141 = vadd.f32 %v6137, 1e-05
    %v6142 = vadd.f32 %v6138, 1e-05
    %v6143 = vadd.f32 %v6139, 1e-05
    %v6144 = vadd.f32 %v6140, 1e-05
    %v6145 = vrsqrt.pop %v6141
    %v6146 = vrsqrt.pop %v6142
    %v6147 = vrsqrt.pop %v6143
    %v6148 = vrsqrt.pop %v6144
    %v6149 = vmul.f32 %v6121, %v6145
    %v6150 = vmul.f32 %v6122, %v6146
    %v6151 = vmul.f32 %v6123, %v6147
    %v6152 = vmul.f32 %v6124, %v6148
    %v6154 = vlaneseq
    %v6155 = vshrl.u32 %v6154, 7
    %v6156 = vsub.s32 0, %v6155
    %v6157 = vrot.slane %v6106, %v6156
    %v6159 = vmul.f32 %v6149, %v6157
    %v6160 = vmul.f32 %v6150, %v6157
    %v6161 = vmul.f32 %v6151, %v6157
    %v6162 = vmul.f32 %v6152, %v6157
    %v6164 = vlaneseq
    %v6165 = vshrl.u32 %v6164, 7
    %v6166 = vsub.s32 0, %v6165
    %v6167 = vrot.slane %v6108, %v6166
    %v6169 = vadd.f32 %v6159, %v6167
    %v6170 = vadd.f32 %v6160, %v6167
    %v6171 = vadd.f32 %v6161, %v6167
    %v6172 = vadd.f32 %v6162, %v6167
    %v6173 = vld [vmem:[#allocation22] sm:$0x1]
    %v6174 = vpack.c.bf16 %v6170, %v6169
    %v6175 = vpack.c.bf16 %v6172, %v6171
    %v6176 = vld [vmem:[%s15] sm:$0x3]
    %6178 = vset.pattern.permute.xlu0 0
    %6179 = vperm.xlu0 %6178, %v6176
    %v6180 = vpop.permute.xlu0 %6179
    %6182 = vmatprep.subr.bf16.mxu0 0
    %6183 = vmatpush1.bf16.xpose.msra.mxu0 0
    %6184 = vmatprep.subr.bf16.mxu0 0
    %6185 = vmatpush1.bf16.xpose.msra.mxu0 0
    %6186 = vmatprep.subr.bf16.mxu0 0
    %6187 = vmatpush1.bf16.xpose.msra.mxu0 0
    %6188 = vmatprep.subr.bf16.mxu0 0
    %6189 = vmatpush1.bf16.xpose.msra.mxu0 0
    %6190 = vmatprep.subr.bf16.mxu0 0
    %6191 = vmatpush1.bf16.xpose.msra.mxu0 0
    %6192 = vmatprep.subr.bf16.mxu0 0
    %6193 = vmatpush1.bf16.xpose.msra.mxu0 0
    %6194 = vmatprep.subr.bf16.mxu0 0
    %6195 = vmatpush1.bf16.xpose.msra.mxu0 %v6175
    %6196 = vmatprep.subr.bf16.mxu0 0
    %6197 = vmatpush1.bf16.xpose.msra.mxu0 %v6174
    %6198 = vmatprep.subr.bf16.mxu0 0
    %6199 = vmatpush2.bf16.xpose.msra.mxu0 0
    %6200 = vmatprep.subr.bf16.mxu0 0
    %6201 = vmatpush2.bf16.xpose.msra.mxu0 0
    %6202 = vmatprep.subr.bf16.mxu0 0
    %6203 = vmatpush2.bf16.xpose.msra.mxu0 0
    %6204 = vmatprep.subr.bf16.mxu0 0
    %6205 = vmatpush2.bf16.xpose.msra.mxu0 0
    %6206 = vmatprep.subr.bf16.mxu0 0
    %6207 = vmatpush2.bf16.xpose.msra.mxu0 0
    %6208 = vmatprep.subr.bf16.mxu0 0
    %6209 = vmatpush2.bf16.xpose.msra.mxu0 0
    %6210 = vmatprep.subr.bf16.mxu0 0
    %6211 = vmatpush2.bf16.xpose.msra.mxu0 0
    %6212 = vmatprep.subr.bf16.mxu0 0
    %6213 = vmatpush2.bf16.xpose.msra.mxu0 0
    %6214 = vmatprep.mubr.bf16.mxu0 0
    %6215 = vmatmul.mubr.bf16.gmra.mxu0 %v6173
    %v6216 = vpop.f32.mrf.mxu0
    %v6217 = vadd.f32 %v6180, %v6216
    %v6218 = vpop.f32.mrf.mxu0
    %v6219 = vpop.f32.mrf.mxu0
    %v6220 = vpop.f32.mrf.mxu0
    %6221 = vdwg.mxu0
    %vm6222 = vcmask 254976
    %6223 = vst.msk [vmem:[%s16] sm:$0x3] %vm6222, %v6217
    // Predicated region
    $region122: #{sequence_labeling_forward.1} parent=1 // pred_check
      _
    $region123: #{sequence_labeling_forward.1} parent=1 // pred_check_branch
      %6225 = sbr.rel (0) target = $region125
    $region124: #{sequence_labeling_forward.1} parent=1 // pred_region
      _
    $region125: #{sequence_labeling_forward.1} parent=1 // pred_fallthru
      _
    // Predicated region
    $region126: #{sequence_labeling_forward.1} parent=1 // pred_check
      _
    $region127: #{sequence_labeling_forward.1} parent=1 // pred_check_branch
      %6227 = sbr.rel (0) target = $region129
    $region128: #{sequence_labeling_forward.1} parent=1 // pred_region
      _
    $region129: #{sequence_labeling_forward.1} parent=1 // pred_fallthru
      _
    %6228 = vsyncpa [#allocation3], 1
    %6229 = vsyncpa [#allocation5], 1
    %6230 = vsyncpa [#allocation8], 1
    %6231 = vsyncpa [#allocation11], 1
    %6232 = vsyncpa [#allocation14], 1
    %6233 = vsyncpa [#allocation17], 1
    %6234 = vsyncpa [#allocation20], 1
    %6235 = vsyncpa [#allocation23], 1

</llo_original>
